<compile_context>
chip_gen: v6e
topology: v6e:2x2x1
jax: 0.10.0
libtpu: 0.0.40
codegen_flags: <defaults>
</compile_context>

<pallas_src>
import jax
import jax.numpy as jnp
from jax.experimental import pallas as pl
from jax.experimental.pallas import tpu as pltpu

# ---- problem sizes (small, consistent with the module) ----------------------
N_NODES = 32      # number of graph nodes
NFEAT = 16        # input feature dim
NHID = 32         # hidden dim
N_EDGES = 8       # number of (x_idx, y_idx) query pairs
STEPS = 5         # num_recurrent_steps
LN_EPS = 1e-6
GPAD = 128        # per-gate lane padding (one full vreg lane group)


# -----------------------------------------------------------------------------
# Fused kernel: graph-GRU recurrence + fc stack + LayerNorm + edge decoder.
# -----------------------------------------------------------------------------
def gae_fused_kernel(idx_ref, x_ref, adj_ref, w_in_ref, b_in_ref,
                     gcn_w_ref, fc_w_ref, small_ref, dec_w_ref,
                     probs_ref, z_ref):
    f32 = jnp.float32
    x = x_ref[...]                      # (N, nfeat)  f32
    adj = adj_ref[...]                  # (N, N)      f32

    # Input projections (constant across the recurrence). Gates r|i|n live in
    # three 128-lane blocks of the 384-wide packed projection.
    proj = jnp.dot(x, w_in_ref[...], preferred_element_type=f32) + b_in_ref[...]
    proj_r = proj[:, 0 * GPAD:1 * GPAD]
    proj_i = proj[:, 1 * GPAD:2 * GPAD]
    proj_n = proj[:, 2 * GPAD:3 * GPAD]

    w_self = gcn_w_ref[0]               # (GPAD, 3*GPAD), zero outside real blocks
    w_ngb = gcn_w_ref[1]

    hidden = jnp.zeros((N_NODES, GPAD), f32)   # pad lanes stay exactly 0
    for _ in range(STEPS):
        # GraphConvolutionFirstOrder (bias=False) for all 3 gates at once:
        #   H @ Wself_cat + adj @ (H @ Wngb_cat)          -> 3 MXU ops per step
        act_self = jnp.dot(hidden, w_self, preferred_element_type=f32)
        support = jnp.dot(hidden, w_ngb, preferred_element_type=f32)
        gcn = act_self + jnp.dot(adj, support, preferred_element_type=f32)
        r = jax.nn.sigmoid(proj_r + gcn[:, 0 * GPAD:1 * GPAD])
        i = jax.nn.sigmoid(proj_i + gcn[:, 1 * GPAD:2 * GPAD])
        n = jnp.tanh(proj_n + r * gcn[:, 2 * GPAD:3 * GPAD])
        hidden = (1.0 - i) * n + i * hidden

    h = hidden[:, :NHID]                # drop lane padding (lane-0 slice, cheap)

    small = small_ref[...]              # (8, nhid) packed small vectors
    fc1_b = small[0:1, :]
    fc2_b = small[1:2, :]
    fc3_b = small[2:3, :]
    gamma = small[3:4, :]
    beta = small[4:5, :]
    dec_b1 = small[5:6, :]
    dec_b2 = small[6:7, 0:1]

    # fc1/fc2/fc3 + ReLU.
    # TODO(synk): F.dropout is treated as eval-mode identity (no training RNG).
    h = jnp.maximum(jnp.dot(h, fc_w_ref[0], preferred_element_type=f32) + fc1_b, 0.0)
    h = jnp.maximum(jnp.dot(h, fc_w_ref[1], preferred_element_type=f32) + fc2_b, 0.0)
    h = jnp.maximum(jnp.dot(h, fc_w_ref[2], preferred_element_type=f32) + fc3_b, 0.0)

    # LayerNorm, torch-style: unbiased std (ddof=1), eps added to the std.
    mean = jnp.mean(h, axis=-1, keepdims=True)
    cen = h - mean
    var_u = jnp.sum(cen * cen, axis=-1, keepdims=True) * (1.0 / (NHID - 1))
    inv_std = pl.reciprocal(jnp.sqrt(var_u) + LN_EPS, approx=True)
    z = gamma * cen * inv_std + beta
    z_ref[...] = z

    # ---- MLP edge decoder (fused) --------------------------------------------
    # In-kernel gather of the 2E endpoint rows via a one-hot matmul.
    idx = idx_ref[...]                                              # (2E, 1) int32
    cols = jax.lax.broadcasted_iota(jnp.int32, (2 * N_EDGES, N_NODES), 1)
    sel = (cols == idx).astype(f32)                                 # (2E, N)
    z_sel = jnp.dot(sel, z, preferred_element_type=f32)             # (2E, nhid)
    zx = z_sel[:N_EDGES, :]
    zy = z_sel[N_EDGES:, :]

    dec_w = dec_w_ref[...]                                          # (3*nhid, nhid)
    w1x = dec_w[0:NHID, :]              # dec fc1 weight, x half
    w1y = dec_w[NHID:2 * NHID, :]       # dec fc1 weight, y half
    w2 = dec_w[2 * NHID:3 * NHID, :]    # dec fc2 weight, real data in column 0

    h1 = jnp.maximum(jnp.dot(zx, w1x, preferred_element_type=f32)
                     + jnp.dot(zy, w1y, preferred_element_type=f32) + dec_b1, 0.0)
    logits = jnp.dot(h1, w2, preferred_element_type=f32)            # (E, nhid)
    probs_ref[...] = jax.nn.sigmoid(logits[:, 0:1] + dec_b2)


# -----------------------------------------------------------------------------
# Host-side parameter packing (done once, outside the hot path).
# -----------------------------------------------------------------------------
def pack_params(params):
    """Pack the 27 module parameters into a few contiguous, lane-padded arrays."""
    def pad_cols(w, width):
        return jnp.pad(w, ((0, 0), (0, width - w.shape[1])))

    def pad_rows(w, height):
        return jnp.pad(w, ((0, height - w.shape[0]), (0, 0)))

    w_in = jnp.concatenate(
        [pad_cols(params[k], GPAD) for k in ("w_ir", "w_ii", "w_in")], axis=1)   # (nfeat, 3*GPAD)
    b_in = jnp.concatenate(
        [pad_cols(params[k], GPAD) for k in ("b_ir", "b_ii", "b_in")], axis=1)   # (1, 3*GPAD)
    w_self = pad_rows(jnp.concatenate(
        [pad_cols(params[k], GPAD) for k in ("ws_r", "ws_i", "ws_h")], axis=1), GPAD)
    w_ngb = pad_rows(jnp.concatenate(
        [pad_cols(params[k], GPAD) for k in ("wn_r", "wn_i", "wn_h")], axis=1), GPAD)
    gcn_w = jnp.stack([w_self, w_ngb], axis=0)                                   # (2, GPAD, 3*GPAD)
    fc_w = jnp.stack([params["fc1_w"], params["fc2_w"], params["fc3_w"]], axis=0)  # (3, nhid, nhid)
    small = jnp.concatenate([
        params["fc1_b"], params["fc2_b"], params["fc3_b"],
        params["gamma"], params["beta"], params["dec_b1"],
        jnp.full((1, NHID), params["dec_b2"][0, 0], jnp.float32),
        jnp.zeros((1, NHID), jnp.float32),
    ], axis=0)                                                                   # (8, nhid)
    dec_w = jnp.concatenate([
        params["dec_w1"][:NHID],            # W1, x half
        params["dec_w1"][NHID:],            # W1, y half
        pad_cols(params["dec_w2"], NHID),   # W2, column 0 real
    ], axis=0)                                                                   # (3*nhid, nhid)
    return {"w_in": w_in, "b_in": b_in, "gcn_w": gcn_w, "fc_w": fc_w,
            "small": small, "dec_w": dec_w}


_VMEM = pl.BlockSpec(memory_space=pltpu.MemorySpace.VMEM)

# Advisory cost for XLA scheduling (dominated by 5 x (2x(32x128x384) + 32x32x384) MXU flops).
_COST = pl.CostEstimate(flops=36_200_000, transcendentals=61_500, bytes_accessed=456_000)


@jax.jit
def gae_recurrent_forward(inputs, adj, x_idx, y_idx, packed):
    idx = jnp.concatenate([x_idx, y_idx]).astype(jnp.int32).reshape(2 * N_EDGES, 1)
    args = (idx, inputs, adj, packed["w_in"], packed["b_in"],
            packed["gcn_w"], packed["fc_w"], packed["small"], packed["dec_w"])
    probs, z = pl.pallas_call(
        gae_fused_kernel,
        out_shape=(jax.ShapeDtypeStruct((N_EDGES, 1), jnp.float32),
                   jax.ShapeDtypeStruct((N_NODES, NHID), jnp.float32)),
        in_specs=[_VMEM] * len(args),
        out_specs=(_VMEM, _VMEM),
        cost_estimate=_COST,
    )(*args)
    return probs, z


# -----------------------------------------------------------------------------
# Deterministic synthetic parameters (uniform(-stdv, stdv) like the module).
# -----------------------------------------------------------------------------
def init_params(key):
    params = {}

    def nxt():
        nonlocal key
        key, sub = jax.random.split(key)
        return sub

    def uni(shape, stdv):
        return jax.random.uniform(nxt(), shape, jnp.float32, -stdv, stdv)

    # input_{r,i,n}: Linear(nfeat, nhid) with bias.  Stored as (in, out).
    stdv_lin_in = 1.0 / (NFEAT ** 0.5)
    for name in ("ir", "ii", "in"):
        params[f"w_{name}"] = uni((NFEAT, NHID), stdv_lin_in)
        params[f"b_{name}"] = uni((1, NHID), stdv_lin_in)

    # GCN layers: weight_self / weight_neighbor, (nhid, nhid), no bias.
    stdv_gcn = 1.0 / (NHID ** 0.5)
    for name in ("r", "i", "h"):
        params[f"ws_{name}"] = uni((NHID, NHID), stdv_gcn)
        params[f"wn_{name}"] = uni((NHID, NHID), stdv_gcn)

    # fc1/fc2/fc3: Linear(nhid, nhid).
    stdv_fc = 1.0 / (NHID ** 0.5)
    for name in ("fc1", "fc2", "fc3"):
        params[f"{name}_w"] = uni((NHID, NHID), stdv_fc)
        params[f"{name}_b"] = uni((1, NHID), stdv_fc)

    # LayerNorm.
    params["gamma"] = jnp.ones((1, NHID), jnp.float32)
    params["beta"] = jnp.zeros((1, NHID), jnp.float32)

    # MLPDecoder: fc1 (2*nhid -> nhid), fc2 (nhid -> 1).
    stdv_d1 = 1.0 / ((2 * NHID) ** 0.5)
    params["dec_w1"] = uni((2 * NHID, NHID), stdv_d1)
    params["dec_b1"] = uni((1, NHID), stdv_d1)
    stdv_d2 = 1.0 / (NHID ** 0.5)
    params["dec_w2"] = uni((NHID, 1), stdv_d2)
    params["dec_b2"] = uni((1, 1), stdv_d2)
    return params


# -----------------------------------------------------------------------------
# Pure-JAX reference of the PyTorch forward (sanity check only).
# -----------------------------------------------------------------------------
def _reference_forward(inputs, adj, x_idx, y_idx, params):
    def gcn(h, ws, wn):
        return h @ ws + adj @ (h @ wn)

    proj_r = inputs @ params["w_ir"] + params["b_ir"]
    proj_i = inputs @ params["w_ii"] + params["b_ii"]
    proj_n = inputs @ params["w_in"] + params["b_in"]
    hidden = jnp.zeros((N_NODES, NHID), jnp.float32)
    for _ in range(STEPS):
        r = jax.nn.sigmoid(proj_r + gcn(hidden, params["ws_r"], params["wn_r"]))
        i = jax.nn.sigmoid(proj_i + gcn(hidden, params["ws_i"], params["wn_i"]))
        n = jnp.tanh(proj_n + r * gcn(hidden, params["ws_h"], params["wn_h"]))
        hidden = (1.0 - i) * n + i * hidden
    h = jax.nn.relu(hidden @ params["fc1_w"] + params["fc1_b"])
    h = jax.nn.relu(h @ params["fc2_w"] + params["fc2_b"])
    h = jax.nn.relu(h @ params["fc3_w"] + params["fc3_b"])
    mean = h.mean(-1, keepdims=True)
    std = jnp.std(h, axis=-1, ddof=1, keepdims=True)
    z = params["gamma"] * (h - mean) / (std + LN_EPS) + params["beta"]
    cat = jnp.concatenate([z[x_idx], z[y_idx]], axis=1)
    h1 = jax.nn.relu(cat @ params["dec_w1"] + params["dec_b1"])
    logits = h1 @ params["dec_w2"] + params["dec_b2"]
    return jax.nn.sigmoid(logits), z


if __name__ == "__main__":
    key = jax.random.PRNGKey(0)
    k_in, k_adj, k_xi, k_yi, k_par = jax.random.split(key, 5)

    inputs = jax.random.normal(k_in, (N_NODES, NFEAT), jnp.float32)
    # Symmetric, row-normalized dense adjacency (stands in for the sparse adj).
    a = (jax.random.uniform(k_adj, (N_NODES, N_NODES)) > 0.8).astype(jnp.float32)
    adj = (a + a.T) * 0.5 + jnp.eye(N_NODES, dtype=jnp.float32)
    adj = adj / jnp.sum(adj, axis=1, keepdims=True)

    x_idx = jax.random.randint(k_xi, (N_EDGES,), 0, N_NODES)
    y_idx = jax.random.randint(k_yi, (N_EDGES,), 0, N_NODES)

    params = init_params(k_par)
    packed = pack_params(params)

    probs, z = gae_recurrent_forward(inputs, adj, x_idx, y_idx, packed)
    jax.block_until_ready((probs, z))

    assert probs.shape == (N_EDGES, 1)
    assert z.shape == (N_NODES, NHID)
    assert bool(jnp.all(jnp.isfinite(probs))) and bool(jnp.all(jnp.isfinite(z)))

    # Sanity check vs a pure-JAX reference (loose tolerance: LN uses the EUP
    # approximate reciprocal).
    ref_probs, ref_z = _reference_forward(inputs, adj, x_idx, y_idx, params)
    assert float(jnp.max(jnp.abs(z - ref_z))) < 0.1
    assert float(jnp.max(jnp.abs(probs - ref_probs))) < 0.05

    print("KERNEL_OK")
</pallas_src>

<mosaic_0001>
module attributes {stable_mosaic.version = 11 : i64} {
  func.func @gae_fused_kernel(%arg0: memref<16x1xi32, #tpu.memory_space<vmem>>, %arg1: memref<32x16xf32, #tpu.memory_space<vmem>>, %arg2: memref<32x32xf32, #tpu.memory_space<vmem>>, %arg3: memref<16x384xf32, #tpu.memory_space<vmem>>, %arg4: memref<1x384xf32, #tpu.memory_space<vmem>>, %arg5: memref<2x128x384xf32, #tpu.memory_space<vmem>>, %arg6: memref<3x32x32xf32, #tpu.memory_space<vmem>>, %arg7: memref<8x32xf32, #tpu.memory_space<vmem>>, %arg8: memref<96x32xf32, #tpu.memory_space<vmem>>, %arg9: memref<8x1xf32, #tpu.memory_space<vmem>>, %arg10: memref<32x32xf32, #tpu.memory_space<vmem>>) attributes {dimension_semantics = [], scalar_prefetch = 0 : i64, scratch_operands = 0 : i64, tpu.core_type = #tpu.core_type<tc>} {
    %c0 = arith.constant 0 : index
    %c0_0 = arith.constant 0 : index
    %0 = vector.load %arg1[%c0, %c0_0] : memref<32x16xf32, #tpu.memory_space<vmem>>, vector<32x16xf32>
    %c0_1 = arith.constant 0 : index
    %c0_2 = arith.constant 0 : index
    %1 = vector.load %arg2[%c0_1, %c0_2] : memref<32x32xf32, #tpu.memory_space<vmem>>, vector<32x32xf32>
    %c0_3 = arith.constant 0 : index
    %c0_4 = arith.constant 0 : index
    %2 = vector.load %arg3[%c0_3, %c0_4] : memref<16x384xf32, #tpu.memory_space<vmem>>, vector<16x384xf32>
    %cst = arith.constant dense<0.000000e+00> : vector<32x384xf32>
    %3 = tpu.matmul %0, %2, %cst {dimension_numbers = #tpu.dot_dimension_numbers<[1], [0], [0], [1], [0, 0, 1, 1], [], []>} : vector<32x16xf32>, vector<16x384xf32>, vector<32x384xf32> -> vector<32x384xf32>
    %c0_5 = arith.constant 0 : index
    %c0_6 = arith.constant 0 : index
    %4 = vector.load %arg4[%c0_5, %c0_6] : memref<1x384xf32, #tpu.memory_space<vmem>>, vector<1x384xf32>
    %5 = vector.broadcast %4 : vector<1x384xf32> to vector<32x384xf32>
    %6 = arith.addf %3, %5 : vector<32x384xf32>
    %7 = vector.extract_strided_slice %6 {offsets = [0, 0], sizes = [32, 128], strides = [1, 1]} : vector<32x384xf32> to vector<32x128xf32>
    %8 = vector.extract_strided_slice %6 {offsets = [0, 128], sizes = [32, 128], strides = [1, 1]} : vector<32x384xf32> to vector<32x128xf32>
    %9 = vector.extract_strided_slice %6 {offsets = [0, 256], sizes = [32, 128], strides = [1, 1]} : vector<32x384xf32> to vector<32x128xf32>
    %c0_7 = arith.constant 0 : index
    %c0_8 = arith.constant 0 : index
    %c0_9 = arith.constant 0 : index
    %10 = vector.load %arg5[%c0_7, %c0_8, %c0_9] : memref<2x128x384xf32, #tpu.memory_space<vmem>>, vector<1x128x384xf32>
    %11 = vector.shape_cast %10 : vector<1x128x384xf32> to vector<128x384xf32>
    %c1 = arith.constant 1 : index
    %c0_10 = arith.constant 0 : index
    %c0_11 = arith.constant 0 : index
    %12 = vector.load %arg5[%c1, %c0_10, %c0_11] : memref<2x128x384xf32, #tpu.memory_space<vmem>>, vector<1x128x384xf32>
    %13 = vector.shape_cast %12 : vector<1x128x384xf32> to vector<128x384xf32>
    %cst_12 = arith.constant 0.000000e+00 : f32
    %14 = vector.broadcast %cst_12 : f32 to vector<32x128xf32>
    %cst_13 = arith.constant dense<0.000000e+00> : vector<32x384xf32>
    %15 = tpu.matmul %14, %11, %cst_13 {dimension_numbers = #tpu.dot_dimension_numbers<[1], [0], [0], [1], [0, 0, 1, 1], [], []>} : vector<32x128xf32>, vector<128x384xf32>, vector<32x384xf32> -> vector<32x384xf32>
    %cst_14 = arith.constant dense<0.000000e+00> : vector<32x384xf32>
    %16 = tpu.matmul %14, %13, %cst_14 {dimension_numbers = #tpu.dot_dimension_numbers<[1], [0], [0], [1], [0, 0, 1, 1], [], []>} : vector<32x128xf32>, vector<128x384xf32>, vector<32x384xf32> -> vector<32x384xf32>
    %cst_15 = arith.constant dense<0.000000e+00> : vector<32x384xf32>
    %17 = tpu.matmul %1, %16, %cst_15 {dimension_numbers = #tpu.dot_dimension_numbers<[1], [0], [0], [1], [0, 0, 1, 1], [], []>} : vector<32x32xf32>, vector<32x384xf32>, vector<32x384xf32> -> vector<32x384xf32>
    %18 = arith.addf %15, %17 : vector<32x384xf32>
    %19 = vector.extract_strided_slice %18 {offsets = [0, 0], sizes = [32, 128], strides = [1, 1]} : vector<32x384xf32> to vector<32x128xf32>
    %20 = arith.addf %7, %19 : vector<32x128xf32>
    %21 = arith.negf %20 : vector<32x128xf32>
    %22 = math.exp %21 : vector<32x128xf32>
    %cst_16 = arith.constant 1.000000e+00 : f32
    %23 = vector.broadcast %cst_16 : f32 to vector<32x128xf32>
    %24 = arith.addf %23, %22 : vector<32x128xf32>
    %25 = arith.divf %23, %24 : vector<32x128xf32>
    %26 = vector.extract_strided_slice %18 {offsets = [0, 128], sizes = [32, 128], strides = [1, 1]} : vector<32x384xf32> to vector<32x128xf32>
    %27 = arith.addf %8, %26 : vector<32x128xf32>
    %28 = arith.negf %27 : vector<32x128xf32>
    %29 = math.exp %28 : vector<32x128xf32>
    %cst_17 = arith.constant 1.000000e+00 : f32
    %30 = vector.broadcast %cst_17 : f32 to vector<32x128xf32>
    %31 = arith.addf %30, %29 : vector<32x128xf32>
    %32 = arith.divf %30, %31 : vector<32x128xf32>
    %33 = vector.extract_strided_slice %18 {offsets = [0, 256], sizes = [32, 128], strides = [1, 1]} : vector<32x384xf32> to vector<32x128xf32>
    %34 = arith.mulf %25, %33 : vector<32x128xf32>
    %35 = arith.addf %9, %34 : vector<32x128xf32>
    %36 = math.tanh %35 : vector<32x128xf32>
    %cst_18 = arith.constant 1.000000e+00 : f32
    %37 = vector.broadcast %cst_18 : f32 to vector<32x128xf32>
    %38 = arith.subf %37, %32 : vector<32x128xf32>
    %39 = arith.mulf %38, %36 : vector<32x128xf32>
    %40 = arith.mulf %32, %14 : vector<32x128xf32>
    %41 = arith.addf %39, %40 : vector<32x128xf32>
    %cst_19 = arith.constant dense<0.000000e+00> : vector<32x384xf32>
    %42 = tpu.matmul %41, %11, %cst_19 {dimension_numbers = #tpu.dot_dimension_numbers<[1], [0], [0], [1], [0, 0, 1, 1], [], []>} : vector<32x128xf32>, vector<128x384xf32>, vector<32x384xf32> -> vector<32x384xf32>
    %cst_20 = arith.constant dense<0.000000e+00> : vector<32x384xf32>
    %43 = tpu.matmul %41, %13, %cst_20 {dimension_numbers = #tpu.dot_dimension_numbers<[1], [0], [0], [1], [0, 0, 1, 1], [], []>} : vector<32x128xf32>, vector<128x384xf32>, vector<32x384xf32> -> vector<32x384xf32>
    %cst_21 = arith.constant dense<0.000000e+00> : vector<32x384xf32>
    %44 = tpu.matmul %1, %43, %cst_21 {dimension_numbers = #tpu.dot_dimension_numbers<[1], [0], [0], [1], [0, 0, 1, 1], [], []>} : vector<32x32xf32>, vector<32x384xf32>, vector<32x384xf32> -> vector<32x384xf32>
    %45 = arith.addf %42, %44 : vector<32x384xf32>
    %46 = vector.extract_strided_slice %45 {offsets = [0, 0], sizes = [32, 128], strides = [1, 1]} : vector<32x384xf32> to vector<32x128xf32>
    %47 = arith.addf %7, %46 : vector<32x128xf32>
    %48 = arith.negf %47 : vector<32x128xf32>
    %49 = math.exp %48 : vector<32x128xf32>
    %cst_22 = arith.constant 1.000000e+00 : f32
    %50 = vector.broadcast %cst_22 : f32 to vector<32x128xf32>
    %51 = arith.addf %50, %49 : vector<32x128xf32>
    %52 = arith.divf %50, %51 : vector<32x128xf32>
    %53 = vector.extract_strided_slice %45 {offsets = [0, 128], sizes = [32, 128], strides = [1, 1]} : vector<32x384xf32> to vector<32x128xf32>
    %54 = arith.addf %8, %53 : vector<32x128xf32>
    %55 = arith.negf %54 : vector<32x128xf32>
    %56 = math.exp %55 : vector<32x128xf32>
    %cst_23 = arith.constant 1.000000e+00 : f32
    %57 = vector.broadcast %cst_23 : f32 to vector<32x128xf32>
    %58 = arith.addf %57, %56 : vector<32x128xf32>
    %59 = arith.divf %57, %58 : vector<32x128xf32>
    %60 = vector.extract_strided_slice %45 {offsets = [0, 256], sizes = [32, 128], strides = [1, 1]} : vector<32x384xf32> to vector<32x128xf32>
    %61 = arith.mulf %52, %60 : vector<32x128xf32>
    %62 = arith.addf %9, %61 : vector<32x128xf32>
    %63 = math.tanh %62 : vector<32x128xf32>
    %cst_24 = arith.constant 1.000000e+00 : f32
    %64 = vector.broadcast %cst_24 : f32 to vector<32x128xf32>
    %65 = arith.subf %64, %59 : vector<32x128xf32>
    %66 = arith.mulf %65, %63 : vector<32x128xf32>
    %67 = arith.mulf %59, %41 : vector<32x128xf32>
    %68 = arith.addf %66, %67 : vector<32x128xf32>
    %cst_25 = arith.constant dense<0.000000e+00> : vector<32x384xf32>
    %69 = tpu.matmul %68, %11, %cst_25 {dimension_numbers = #tpu.dot_dimension_numbers<[1], [0], [0], [1], [0, 0, 1, 1], [], []>} : vector<32x128xf32>, vector<128x384xf32>, vector<32x384xf32> -> vector<32x384xf32>
    %cst_26 = arith.constant dense<0.000000e+00> : vector<32x384xf32>
    %70 = tpu.matmul %68, %13, %cst_26 {dimension_numbers = #tpu.dot_dimension_numbers<[1], [0], [0], [1], [0, 0, 1, 1], [], []>} : vector<32x128xf32>, vector<128x384xf32>, vector<32x384xf32> -> vector<32x384xf32>
    %cst_27 = arith.constant dense<0.000000e+00> : vector<32x384xf32>
    %71 = tpu.matmul %1, %70, %cst_27 {dimension_numbers = #tpu.dot_dimension_numbers<[1], [0], [0], [1], [0, 0, 1, 1], [], []>} : vector<32x32xf32>, vector<32x384xf32>, vector<32x384xf32> -> vector<32x384xf32>
    %72 = arith.addf %69, %71 : vector<32x384xf32>
    %73 = vector.extract_strided_slice %72 {offsets = [0, 0], sizes = [32, 128], strides = [1, 1]} : vector<32x384xf32> to vector<32x128xf32>
    %74 = arith.addf %7, %73 : vector<32x128xf32>
    %75 = arith.negf %74 : vector<32x128xf32>
    %76 = math.exp %75 : vector<32x128xf32>
    %cst_28 = arith.constant 1.000000e+00 : f32
    %77 = vector.broadcast %cst_28 : f32 to vector<32x128xf32>
    %78 = arith.addf %77, %76 : vector<32x128xf32>
    %79 = arith.divf %77, %78 : vector<32x128xf32>
    %80 = vector.extract_strided_slice %72 {offsets = [0, 128], sizes = [32, 128], strides = [1, 1]} : vector<32x384xf32> to vector<32x128xf32>
    %81 = arith.addf %8, %80 : vector<32x128xf32>
    %82 = arith.negf %81 : vector<32x128xf32>
    %83 = math.exp %82 : vector<32x128xf32>
    %cst_29 = arith.constant 1.000000e+00 : f32
    %84 = vector.broadcast %cst_29 : f32 to vector<32x128xf32>
    %85 = arith.addf %84, %83 : vector<32x128xf32>
    %86 = arith.divf %84, %85 : vector<32x128xf32>
    %87 = vector.extract_strided_slice %72 {offsets = [0, 256], sizes = [32, 128], strides = [1, 1]} : vector<32x384xf32> to vector<32x128xf32>
    %88 = arith.mulf %79, %87 : vector<32x128xf32>
    %89 = arith.addf %9, %88 : vector<32x128xf32>
    %90 = math.tanh %89 : vector<32x128xf32>
    %cst_30 = arith.constant 1.000000e+00 : f32
    %91 = vector.broadcast %cst_30 : f32 to vector<32x128xf32>
    %92 = arith.subf %91, %86 : vector<32x128xf32>
    %93 = arith.mulf %92, %90 : vector<32x128xf32>
    %94 = arith.mulf %86, %68 : vector<32x128xf32>
    %95 = arith.addf %93, %94 : vector<32x128xf32>
    %cst_31 = arith.constant dense<0.000000e+00> : vector<32x384xf32>
    %96 = tpu.matmul %95, %11, %cst_31 {dimension_numbers = #tpu.dot_dimension_numbers<[1], [0], [0], [1], [0, 0, 1, 1], [], []>} : vector<32x128xf32>, vector<128x384xf32>, vector<32x384xf32> -> vector<32x384xf32>
    %cst_32 = arith.constant dense<0.000000e+00> : vector<32x384xf32>
    %97 = tpu.matmul %95, %13, %cst_32 {dimension_numbers = #tpu.dot_dimension_numbers<[1], [0], [0], [1], [0, 0, 1, 1], [], []>} : vector<32x128xf32>, vector<128x384xf32>, vector<32x384xf32> -> vector<32x384xf32>
    %cst_33 = arith.constant dense<0.000000e+00> : vector<32x384xf32>
    %98 = tpu.matmul %1, %97, %cst_33 {dimension_numbers = #tpu.dot_dimension_numbers<[1], [0], [0], [1], [0, 0, 1, 1], [], []>} : vector<32x32xf32>, vector<32x384xf32>, vector<32x384xf32> -> vector<32x384xf32>
    %99 = arith.addf %96, %98 : vector<32x384xf32>
    %100 = vector.extract_strided_slice %99 {offsets = [0, 0], sizes = [32, 128], strides = [1, 1]} : vector<32x384xf32> to vector<32x128xf32>
    %101 = arith.addf %7, %100 : vector<32x128xf32>
    %102 = arith.negf %101 : vector<32x128xf32>
    %103 = math.exp %102 : vector<32x128xf32>
    %cst_34 = arith.constant 1.000000e+00 : f32
    %104 = vector.broadcast %cst_34 : f32 to vector<32x128xf32>
    %105 = arith.addf %104, %103 : vector<32x128xf32>
    %106 = arith.divf %104, %105 : vector<32x128xf32>
    %107 = vector.extract_strided_slice %99 {offsets = [0, 128], sizes = [32, 128], strides = [1, 1]} : vector<32x384xf32> to vector<32x128xf32>
    %108 = arith.addf %8, %107 : vector<32x128xf32>
    %109 = arith.negf %108 : vector<32x128xf32>
    %110 = math.exp %109 : vector<32x128xf32>
    %cst_35 = arith.constant 1.000000e+00 : f32
    %111 = vector.broadcast %cst_35 : f32 to vector<32x128xf32>
    %112 = arith.addf %111, %110 : vector<32x128xf32>
    %113 = arith.divf %111, %112 : vector<32x128xf32>
    %114 = vector.extract_strided_slice %99 {offsets = [0, 256], sizes = [32, 128], strides = [1, 1]} : vector<32x384xf32> to vector<32x128xf32>
    %115 = arith.mulf %106, %114 : vector<32x128xf32>
    %116 = arith.addf %9, %115 : vector<32x128xf32>
    %117 = math.tanh %116 : vector<32x128xf32>
    %cst_36 = arith.constant 1.000000e+00 : f32
    %118 = vector.broadcast %cst_36 : f32 to vector<32x128xf32>
    %119 = arith.subf %118, %113 : vector<32x128xf32>
    %120 = arith.mulf %119, %117 : vector<32x128xf32>
    %121 = arith.mulf %113, %95 : vector<32x128xf32>
    %122 = arith.addf %120, %121 : vector<32x128xf32>
    %cst_37 = arith.constant dense<0.000000e+00> : vector<32x384xf32>
    %123 = tpu.matmul %122, %11, %cst_37 {dimension_numbers = #tpu.dot_dimension_numbers<[1], [0], [0], [1], [0, 0, 1, 1], [], []>} : vector<32x128xf32>, vector<128x384xf32>, vector<32x384xf32> -> vector<32x384xf32>
    %cst_38 = arith.constant dense<0.000000e+00> : vector<32x384xf32>
    %124 = tpu.matmul %122, %13, %cst_38 {dimension_numbers = #tpu.dot_dimension_numbers<[1], [0], [0], [1], [0, 0, 1, 1], [], []>} : vector<32x128xf32>, vector<128x384xf32>, vector<32x384xf32> -> vector<32x384xf32>
    %cst_39 = arith.constant dense<0.000000e+00> : vector<32x384xf32>
    %125 = tpu.matmul %1, %124, %cst_39 {dimension_numbers = #tpu.dot_dimension_numbers<[1], [0], [0], [1], [0, 0, 1, 1], [], []>} : vector<32x32xf32>, vector<32x384xf32>, vector<32x384xf32> -> vector<32x384xf32>
    %126 = arith.addf %123, %125 : vector<32x384xf32>
    %127 = vector.extract_strided_slice %126 {offsets = [0, 0], sizes = [32, 128], strides = [1, 1]} : vector<32x384xf32> to vector<32x128xf32>
    %128 = arith.addf %7, %127 : vector<32x128xf32>
    %129 = arith.negf %128 : vector<32x128xf32>
    %130 = math.exp %129 : vector<32x128xf32>
    %cst_40 = arith.constant 1.000000e+00 : f32
    %131 = vector.broadcast %cst_40 : f32 to vector<32x128xf32>
    %132 = arith.addf %131, %130 : vector<32x128xf32>
    %133 = arith.divf %131, %132 : vector<32x128xf32>
    %134 = vector.extract_strided_slice %126 {offsets = [0, 128], sizes = [32, 128], strides = [1, 1]} : vector<32x384xf32> to vector<32x128xf32>
    %135 = arith.addf %8, %134 : vector<32x128xf32>
    %136 = arith.negf %135 : vector<32x128xf32>
    %137 = math.exp %136 : vector<32x128xf32>
    %cst_41 = arith.constant 1.000000e+00 : f32
    %138 = vector.broadcast %cst_41 : f32 to vector<32x128xf32>
    %139 = arith.addf %138, %137 : vector<32x128xf32>
    %140 = arith.divf %138, %139 : vector<32x128xf32>
    %141 = vector.extract_strided_slice %126 {offsets = [0, 256], sizes = [32, 128], strides = [1, 1]} : vector<32x384xf32> to vector<32x128xf32>
    %142 = arith.mulf %133, %141 : vector<32x128xf32>
    %143 = arith.addf %9, %142 : vector<32x128xf32>
    %144 = math.tanh %143 : vector<32x128xf32>
    %cst_42 = arith.constant 1.000000e+00 : f32
    %145 = vector.broadcast %cst_42 : f32 to vector<32x128xf32>
    %146 = arith.subf %145, %140 : vector<32x128xf32>
    %147 = arith.mulf %146, %144 : vector<32x128xf32>
    %148 = arith.mulf %140, %122 : vector<32x128xf32>
    %149 = arith.addf %147, %148 : vector<32x128xf32>
    %150 = vector.extract_strided_slice %149 {offsets = [0, 0], sizes = [32, 32], strides = [1, 1]} : vector<32x128xf32> to vector<32x32xf32>
    %c0_43 = arith.constant 0 : index
    %c0_44 = arith.constant 0 : index
    %151 = vector.load %arg7[%c0_43, %c0_44] : memref<8x32xf32, #tpu.memory_space<vmem>>, vector<8x32xf32>
    %152 = vector.extract_strided_slice %151 {offsets = [0, 0], sizes = [1, 32], strides = [1, 1]} : vector<8x32xf32> to vector<1x32xf32>
    %153 = vector.extract_strided_slice %151 {offsets = [1, 0], sizes = [1, 32], strides = [1, 1]} : vector<8x32xf32> to vector<1x32xf32>
    %154 = vector.extract_strided_slice %151 {offsets = [2, 0], sizes = [1, 32], strides = [1, 1]} : vector<8x32xf32> to vector<1x32xf32>
    %155 = vector.extract_strided_slice %151 {offsets = [3, 0], sizes = [1, 32], strides = [1, 1]} : vector<8x32xf32> to vector<1x32xf32>
    %156 = vector.extract_strided_slice %151 {offsets = [4, 0], sizes = [1, 32], strides = [1, 1]} : vector<8x32xf32> to vector<1x32xf32>
    %157 = vector.extract_strided_slice %151 {offsets = [5, 0], sizes = [1, 32], strides = [1, 1]} : vector<8x32xf32> to vector<1x32xf32>
    %158 = vector.extract_strided_slice %151 {offsets = [6, 0], sizes = [1, 1], strides = [1, 1]} : vector<8x32xf32> to vector<1x1xf32>
    %c0_45 = arith.constant 0 : index
    %c0_46 = arith.constant 0 : index
    %c0_47 = arith.constant 0 : index
    %159 = vector.load %arg6[%c0_45, %c0_46, %c0_47] : memref<3x32x32xf32, #tpu.memory_space<vmem>>, vector<1x32x32xf32>
    %160 = vector.shape_cast %159 : vector<1x32x32xf32> to vector<32x32xf32>
    %cst_48 = arith.constant dense<0.000000e+00> : vector<32x32xf32>
    %161 = tpu.matmul %150, %160, %cst_48 {dimension_numbers = #tpu.dot_dimension_numbers<[1], [0], [0], [1], [0, 0, 1, 1], [], []>} : vector<32x32xf32>, vector<32x32xf32>, vector<32x32xf32> -> vector<32x32xf32>
    %162 = vector.broadcast %152 : vector<1x32xf32> to vector<32x32xf32>
    %163 = arith.addf %161, %162 : vector<32x32xf32>
    %cst_49 = arith.constant 0.000000e+00 : f32
    %164 = vector.broadcast %cst_49 : f32 to vector<32x32xf32>
    %165 = arith.maximumf %163, %164 : vector<32x32xf32>
    %c1_50 = arith.constant 1 : index
    %c0_51 = arith.constant 0 : index
    %c0_52 = arith.constant 0 : index
    %166 = vector.load %arg6[%c1_50, %c0_51, %c0_52] : memref<3x32x32xf32, #tpu.memory_space<vmem>>, vector<1x32x32xf32>
    %167 = vector.shape_cast %166 : vector<1x32x32xf32> to vector<32x32xf32>
    %cst_53 = arith.constant dense<0.000000e+00> : vector<32x32xf32>
    %168 = tpu.matmul %165, %167, %cst_53 {dimension_numbers = #tpu.dot_dimension_numbers<[1], [0], [0], [1], [0, 0, 1, 1], [], []>} : vector<32x32xf32>, vector<32x32xf32>, vector<32x32xf32> -> vector<32x32xf32>
    %169 = vector.broadcast %153 : vector<1x32xf32> to vector<32x32xf32>
    %170 = arith.addf %168, %169 : vector<32x32xf32>
    %cst_54 = arith.constant 0.000000e+00 : f32
    %171 = vector.broadcast %cst_54 : f32 to vector<32x32xf32>
    %172 = arith.maximumf %170, %171 : vector<32x32xf32>
    %c2 = arith.constant 2 : index
    %c0_55 = arith.constant 0 : index
    %c0_56 = arith.constant 0 : index
    %173 = vector.load %arg6[%c2, %c0_55, %c0_56] : memref<3x32x32xf32, #tpu.memory_space<vmem>>, vector<1x32x32xf32>
    %174 = vector.shape_cast %173 : vector<1x32x32xf32> to vector<32x32xf32>
    %cst_57 = arith.constant dense<0.000000e+00> : vector<32x32xf32>
    %175 = tpu.matmul %172, %174, %cst_57 {dimension_numbers = #tpu.dot_dimension_numbers<[1], [0], [0], [1], [0, 0, 1, 1], [], []>} : vector<32x32xf32>, vector<32x32xf32>, vector<32x32xf32> -> vector<32x32xf32>
    %176 = vector.broadcast %154 : vector<1x32xf32> to vector<32x32xf32>
    %177 = arith.addf %175, %176 : vector<32x32xf32>
    %cst_58 = arith.constant 0.000000e+00 : f32
    %178 = vector.broadcast %cst_58 : f32 to vector<32x32xf32>
    %179 = arith.maximumf %177, %178 : vector<32x32xf32>
    %cst_59 = arith.constant dense<0.000000e+00> : vector<32xf32>
    %180 = vector.multi_reduction <add>, %179, %cst_59 [1] : vector<32x32xf32> to vector<32xf32>
    %181 = vector.shape_cast %180 : vector<32xf32> to vector<32x1xf32>
    %cst_60 = arith.constant 3.200000e+01 : f32
    %182 = vector.broadcast %cst_60 : f32 to vector<32x1xf32>
    %183 = arith.divf %181, %182 : vector<32x1xf32>
    %184 = vector.broadcast %183 : vector<32x1xf32> to vector<32x32xf32>
    %185 = arith.subf %179, %184 : vector<32x32xf32>
    %186 = arith.mulf %185, %185 : vector<32x32xf32>
    %cst_61 = arith.constant dense<0.000000e+00> : vector<32xf32>
    %187 = vector.multi_reduction <add>, %186, %cst_61 [1] : vector<32x32xf32> to vector<32xf32>
    %188 = vector.shape_cast %187 : vector<32xf32> to vector<32x1xf32>
    %cst_62 = arith.constant 0.0322580636 : f32
    %189 = vector.broadcast %cst_62 : f32 to vector<32x1xf32>
    %190 = arith.mulf %188, %189 : vector<32x1xf32>
    %191 = math.sqrt %190 : vector<32x1xf32>
    %cst_63 = arith.constant 9.99999997E-7 : f32
    %192 = vector.broadcast %cst_63 : f32 to vector<32x1xf32>
    %193 = arith.addf %191, %192 : vector<32x1xf32>
    %194 = tpu.reciprocal %193 {approx = true} : vector<32x1xf32> -> vector<32x1xf32>
    %195 = vector.broadcast %155 : vector<1x32xf32> to vector<32x32xf32>
    %196 = arith.mulf %195, %185 : vector<32x32xf32>
    %197 = vector.broadcast %194 : vector<32x1xf32> to vector<32x32xf32>
    %198 = arith.mulf %196, %197 : vector<32x32xf32>
    %199 = vector.broadcast %156 : vector<1x32xf32> to vector<32x32xf32>
    %200 = arith.addf %198, %199 : vector<32x32xf32>
    %c0_64 = arith.constant 0 : index
    %c0_65 = arith.constant 0 : index
    %201 = vector.load %arg10[%c0_64, %c0_65] : memref<32x32xf32, #tpu.memory_space<vmem>>, vector<32x32xf32>
    tpu.vector_store %arg10[%c0_64, %c0_65], %200 {strides = array<i32>} : memref<32x32xf32, #tpu.memory_space<vmem>>, vector<32x32xf32>,
    %c0_66 = arith.constant 0 : index
    %c0_67 = arith.constant 0 : index
    %202 = vector.load %arg0[%c0_66, %c0_67] : memref<16x1xi32, #tpu.memory_space<vmem>>, vector<16x1xi32>
    %203 = tpu.iota {dimensions = array<i32: 1>} : vector<16x32xi32>
    %204 = vector.broadcast %202 : vector<16x1xi32> to vector<16x32xi32>
    %205 = arith.cmpi eq, %203, %204 : vector<16x32xi32>
    %206 = arith.extui %205 : vector<16x32xi1> to vector<16x32xi32>
    %207 = arith.sitofp %206 : vector<16x32xi32> to vector<16x32xf32>
    %cst_68 = arith.constant dense<0.000000e+00> : vector<16x32xf32>
    %208 = tpu.matmul %207, %200, %cst_68 {dimension_numbers = #tpu.dot_dimension_numbers<[1], [0], [0], [1], [0, 0, 1, 1], [], []>} : vector<16x32xf32>, vector<32x32xf32>, vector<16x32xf32> -> vector<16x32xf32>
    %209 = vector.extract_strided_slice %208 {offsets = [0, 0], sizes = [8, 32], strides = [1, 1]} : vector<16x32xf32> to vector<8x32xf32>
    %210 = vector.extract_strided_slice %208 {offsets = [8, 0], sizes = [8, 32], strides = [1, 1]} : vector<16x32xf32> to vector<8x32xf32>
    %c0_69 = arith.constant 0 : index
    %c0_70 = arith.constant 0 : index
    %211 = vector.load %arg8[%c0_69, %c0_70] : memref<96x32xf32, #tpu.memory_space<vmem>>, vector<96x32xf32>
    %212 = vector.extract_strided_slice %211 {offsets = [0, 0], sizes = [32, 32], strides = [1, 1]} : vector<96x32xf32> to vector<32x32xf32>
    %213 = vector.extract_strided_slice %211 {offsets = [32, 0], sizes = [32, 32], strides = [1, 1]} : vector<96x32xf32> to vector<32x32xf32>
    %214 = vector.extract_strided_slice %211 {offsets = [64, 0], sizes = [32, 32], strides = [1, 1]} : vector<96x32xf32> to vector<32x32xf32>
    %cst_71 = arith.constant dense<0.000000e+00> : vector<8x32xf32>
    %215 = tpu.matmul %209, %212, %cst_71 {dimension_numbers = #tpu.dot_dimension_numbers<[1], [0], [0], [1], [0, 0, 1, 1], [], []>} : vector<8x32xf32>, vector<32x32xf32>, vector<8x32xf32> -> vector<8x32xf32>
    %cst_72 = arith.constant dense<0.000000e+00> : vector<8x32xf32>
    %216 = tpu.matmul %210, %213, %cst_72 {dimension_numbers = #tpu.dot_dimension_numbers<[1], [0], [0], [1], [0, 0, 1, 1], [], []>} : vector<8x32xf32>, vector<32x32xf32>, vector<8x32xf32> -> vector<8x32xf32>
    %217 = arith.addf %215, %216 : vector<8x32xf32>
    %218 = vector.broadcast %157 : vector<1x32xf32> to vector<8x32xf32>
    %219 = arith.addf %217, %218 : vector<8x32xf32>
    %cst_73 = arith.constant 0.000000e+00 : f32
    %220 = vector.broadcast %cst_73 : f32 to vector<8x32xf32>
    %221 = arith.maximumf %219, %220 : vector<8x32xf32>
    %cst_74 = arith.constant dense<0.000000e+00> : vector<8x32xf32>
    %222 = tpu.matmul %221, %214, %cst_74 {dimension_numbers = #tpu.dot_dimension_numbers<[1], [0], [0], [1], [0, 0, 1, 1], [], []>} : vector<8x32xf32>, vector<32x32xf32>, vector<8x32xf32> -> vector<8x32xf32>
    %223 = vector.extract_strided_slice %222 {offsets = [0, 0], sizes = [8, 1], strides = [1, 1]} : vector<8x32xf32> to vector<8x1xf32>
    %224 = vector.broadcast %158 : vector<1x1xf32> to vector<8x1xf32>
    %225 = arith.addf %223, %224 : vector<8x1xf32>
    %226 = arith.negf %225 : vector<8x1xf32>
    %227 = math.exp %226 : vector<8x1xf32>
    %cst_75 = arith.constant 1.000000e+00 : f32
    %228 = vector.broadcast %cst_75 : f32 to vector<8x1xf32>
    %229 = arith.addf %228, %227 : vector<8x1xf32>
    %230 = arith.divf %228, %229 : vector<8x1xf32>
    %c0_76 = arith.constant 0 : index
    %c0_77 = arith.constant 0 : index
    %231 = vector.load %arg9[%c0_76, %c0_77] : memref<8x1xf32, #tpu.memory_space<vmem>>, vector<8x1xf32>
    tpu.vector_store %arg9[%c0_76, %c0_77], %230 {strides = array<i32>} : memref<8x1xf32, #tpu.memory_space<vmem>>, vector<8x1xf32>,
    return
  }
}

</mosaic_0001>

<llo_original>
// kernel: gae_recurrent_forward.1
$region0: #{gae_recurrent_forward.1}
  #allocation0 [shape = 'u32[]', space=smem, size = 0x4, offset = 0x4, fixed_abs, tag = 'smem constant byte address 0x4 - core index']
  #allocation1 [shape = 'u32[144,128]{1,0:T(1,128)}', space=vmem, size = 0x12000, scoped, tag = 'internal scratch']
  %s0 = inlined_call_operand.vmem [shape: s32[16,1], index: 0, kind: input, shape index: {}]
  %s1 = inlined_call_operand.vmem [shape: f32[32,16], index: 1, kind: input, shape index: {}]
  %s2 = inlined_call_operand.hbm [shape: f32[32,32], index: 2, kind: input, shape index: {}]
  %s3 = inlined_call_operand.vmem [shape: f32[16,384], index: 3, kind: input, shape index: {}]
  %s4 = inlined_call_operand.vmem [shape: f32[1,384], index: 4, kind: input, shape index: {}]
  %s5 = inlined_call_operand.hbm [shape: f32[2,128,384], index: 5, kind: input, shape index: {}]
  %s6 = inlined_call_operand.vmem [shape: f32[3,32,32], index: 6, kind: input, shape index: {}]
  %s7 = inlined_call_operand.vmem [shape: f32[8,32], index: 7, kind: input, shape index: {}]
  %s8 = inlined_call_operand.vmem [shape: f32[96,32], index: 8, kind: input, shape index: {}]
  %s9 = inlined_call_operand.vmem [shape: f32[8,1], index: 9, kind: output, shape index: {0}]
  %s10 = inlined_call_operand.hbm [shape: f32[32,32], index: 10, kind: output, shape index: {1}]
  %11 = xla_tuple %s9, %s10
  %s12 = sld [smem:[#allocation0]]
  $region62: #{gae_recurrent_forward.1} parent=0
    _
  %s14 = ssub.s32 1, %s12
  %s15 = scalar_select 0, %s14, %s12
  $region1: #{gae_recurrent_forward.1} parent=0
    #allocation2 [shape = 'u8[16384]{0}', space=vmem, size = 0x4000, scoped, tag = 'input window, operand 2, single buffered']
    #allocation3 [shape = 's32[1]{0}', space=sflag, size = 0x4, scoped, tag = 'scoped memory for gae_recurrent_forward.1']
    #allocation4 [shape = 's32[1]{0}', space=sflag, size = 0x4, scoped, tag = 'scoped memory for gae_recurrent_forward.1']
    #allocation5 [shape = 'u8[393216]{0}', space=vmem, size = 0x60000, scoped, tag = 'input window, operand 5, single buffered']
    #allocation6 [shape = 's32[1]{0}', space=sflag, size = 0x4, scoped, tag = 'scoped memory for gae_recurrent_forward.1']
    #allocation7 [shape = 'u8[16384]{0}', space=vmem, size = 0x4000, scoped, tag = 'output window, operand 1, single buffered']
    %16 = vsyncpa [#allocation3], 0
    %17 = vsyncpa [#allocation6], 0
    %18 = vsyncpa [#allocation4], 0
    // Predicated region
    $region2: #{gae_recurrent_forward.1} parent=1 // pred_check
      _
    $region3: #{gae_recurrent_forward.1} parent=1 // pred_check_branch
      %20 = sbr.rel (0) target = $region5
    $region4: #{gae_recurrent_forward.1} parent=1 // pred_region
      _
    $region5: #{gae_recurrent_forward.1} parent=1 // pred_fallthru
      _
    // Predicated region
    $region6: #{gae_recurrent_forward.1} parent=1 // pred_check
      _
    $region7: #{gae_recurrent_forward.1} parent=1 // pred_check_branch
      %22 = sbr.rel (0) target = $region9
    $region8: #{gae_recurrent_forward.1} parent=1 // pred_region
      _
    $region9: #{gae_recurrent_forward.1} parent=1 // pred_fallthru
      _
    // Predicated region
    $region10: #{gae_recurrent_forward.1} parent=1 // pred_check
      _
    $region11: #{gae_recurrent_forward.1} parent=1 // pred_check_branch
      %24 = sbr.rel (0) target = $region13
    $region12: #{gae_recurrent_forward.1} parent=1 // pred_region
      %s26 = ssub.s32 512, 512
      %27 = vsyncadd [#allocation3], %s26
      %s28 = sshll.u32 [#allocation2], 4
      %s29 = int_to_ptr.vmem [resolvable:$true] %s28
      %34 = dma.hbm_to_vmem [thread:$0]  %s2, 512, %s29, [#allocation3], 128, 128, 8
    $region13: #{gae_recurrent_forward.1} parent=1 // pred_fallthru
      _
    // Predicated region
    $region14: #{gae_recurrent_forward.1} parent=1 // pred_check
      _
    $region15: #{gae_recurrent_forward.1} parent=1 // pred_check_branch
      %36 = sbr.rel (0) target = $region17
    $region16: #{gae_recurrent_forward.1} parent=1 // pred_region
      _
    $region17: #{gae_recurrent_forward.1} parent=1 // pred_fallthru
      _
    // Predicated region
    $region18: #{gae_recurrent_forward.1} parent=1 // pred_check
      _
    $region19: #{gae_recurrent_forward.1} parent=1 // pred_check_branch
      %38 = sbr.rel (0) target = $region21
    $region20: #{gae_recurrent_forward.1} parent=1 // pred_region
      _
    $region21: #{gae_recurrent_forward.1} parent=1 // pred_fallthru
      _
    // Predicated region
    $region22: #{gae_recurrent_forward.1} parent=1 // pred_check
      _
    $region23: #{gae_recurrent_forward.1} parent=1 // pred_check_branch
      %40 = sbr.rel (0) target = $region25
    $region24: #{gae_recurrent_forward.1} parent=1 // pred_region
      %s42 = ssub.s32 12288, 12288
      %43 = vsyncadd [#allocation6], %s42
      %s44 = sshll.u32 [#allocation5], 4
      %s45 = int_to_ptr.vmem [resolvable:$true] %s44
      %50 = dma.hbm_to_vmem [thread:$0]  %s5, 12288, %s45, [#allocation6], 384, 384, 24
    $region25: #{gae_recurrent_forward.1} parent=1 // pred_fallthru
      _
    // Predicated region
    $region26: #{gae_recurrent_forward.1} parent=1 // pred_check
      _
    $region27: #{gae_recurrent_forward.1} parent=1 // pred_check_branch
      %52 = sbr.rel (0) target = $region29
    $region28: #{gae_recurrent_forward.1} parent=1 // pred_region
      _
    $region29: #{gae_recurrent_forward.1} parent=1 // pred_fallthru
      _
    // Predicated region
    $region30: #{gae_recurrent_forward.1} parent=1 // pred_check
      _
    $region31: #{gae_recurrent_forward.1} parent=1 // pred_check_branch
      %54 = sbr.rel (0) target = $region33
    $region32: #{gae_recurrent_forward.1} parent=1 // pred_region
      _
    $region33: #{gae_recurrent_forward.1} parent=1 // pred_fallthru
      _
    // Predicated region
    $region34: #{gae_recurrent_forward.1} parent=1 // pred_check
      _
    $region35: #{gae_recurrent_forward.1} parent=1 // pred_check_branch
      %56 = sbr.rel (0) target = $region37
    $region36: #{gae_recurrent_forward.1} parent=1 // pred_region
      _
    $region37: #{gae_recurrent_forward.1} parent=1 // pred_fallthru
      _
    // Predicated region
    $region38: #{gae_recurrent_forward.1} parent=1 // pred_check
      _
    $region39: #{gae_recurrent_forward.1} parent=1 // pred_check_branch
      %58 = sbr.rel (0) target = $region41
    $region40: #{gae_recurrent_forward.1} parent=1 // pred_region
      %59 = dma.done [#allocation3], 512
    $region41: #{gae_recurrent_forward.1} parent=1 // pred_fallthru
      _
    // Predicated region
    $region42: #{gae_recurrent_forward.1} parent=1 // pred_check
      _
    $region43: #{gae_recurrent_forward.1} parent=1 // pred_check_branch
      %61 = sbr.rel (0) target = $region45
    $region44: #{gae_recurrent_forward.1} parent=1 // pred_region
      %62 = dma.done [#allocation6], 12288
    $region45: #{gae_recurrent_forward.1} parent=1 // pred_fallthru
      _
    %v63 = vld [vmem:[%s1] sm:$0xff]
    %v64 = vld [vmem:[%s1 + $0x8] sm:$0xff]
    %v65 = vld [vmem:[%s1 + $0x10] sm:$0xff]
    %v66 = vld [vmem:[%s1 + $0x18] sm:$0xff]
    %v67 = vld [vmem:[#allocation2] sm:$0xff]
    %v68 = vld [vmem:[#allocation2 + $0x8] sm:$0xff]
    %v69 = vld [vmem:[#allocation2 + $0x10] sm:$0xff]
    %v70 = vld [vmem:[#allocation2 + $0x18] sm:$0xff]
    %v71 = vld [vmem:[%s3] sm:$0xff]
    %v72 = vld [vmem:[%s3 + $0x8] sm:$0xff]
    %v73 = vld [vmem:[%s3 + $0x10] sm:$0xff]
    %v74 = vld [vmem:[%s3 + $0x18] sm:$0xff]
    %v75 = vld [vmem:[%s3 + $0x20] sm:$0xff]
    %v76 = vld [vmem:[%s3 + $0x28] sm:$0xff]
    %v77 = vld [vmem:[%s4] sm:$0x7]
    %v79 = vlaneseq
    %v80 = vshrl.u32 %v79, 7
    %v81 = vsub.s32 0, %v80
    %v82 = vrot.slane %v77, %v81
    %v83 = vlaneseq
    %v84 = vshrl.u32 %v83, 7
    %v85 = vsub.s32 1, %v84
    %v86 = vrot.slane %v77, %v85
    %v87 = vlaneseq
    %v88 = vshrl.u32 %v87, 7
    %v89 = vsub.s32 2, %v88
    %v90 = vrot.slane %v77, %v89
    %vm94 = vcmask 130048
    %v96 = vsel %vm94, %v63, 0
    %v99 = vsel %vm94, %v64, 0
    %v102 = vsel %vm94, %v65, 0
    %v105 = vsel %vm94, %v66, 0
    %107 = vmatprep.subr.mxu0 0.0
    %108 = vmatpush1.msra.mxu0 0.0
    %109 = vmatprep.subr.mxu0 0.0
    %110 = vmatpush1.msra.mxu0 0.0
    %111 = vmatprep.subr.mxu0 0.0
    %112 = vmatpush1.msra.mxu0 0.0
    %113 = vmatprep.subr.mxu0 0.0
    %114 = vmatpush1.msra.mxu0 0.0
    %115 = vmatprep.subr.mxu0 0.0
    %116 = vmatpush1.msra.mxu0 0.0
    %117 = vmatprep.subr.mxu0 0.0
    %118 = vmatpush1.msra.mxu0 0.0
    %119 = vmatprep.subr.mxu0 0.0
    %120 = vmatpush1.msra.mxu0 0.0
    %121 = vmatprep.subr.mxu0 0.0
    %122 = vmatpush1.msra.mxu0 0.0
    %123 = vmatprep.subr.mxu0 0.0
    %124 = vmatpush1.msra.mxu0 0.0
    %125 = vmatprep.subr.mxu0 0.0
    %126 = vmatpush1.msra.mxu0 0.0
    %127 = vmatprep.subr.mxu0 0.0
    %128 = vmatpush1.msra.mxu0 0.0
    %129 = vmatprep.subr.mxu0 0.0
    %130 = vmatpush1.msra.mxu0 0.0
    %131 = vmatprep.subr.mxu0 0.0
    %132 = vmatpush1.msra.mxu0 0.0
    %133 = vmatprep.subr.mxu0 0.0
    %134 = vmatpush1.msra.mxu0 0.0
    %135 = vmatprep.subr.mxu0 %v75
    %136 = vmatpush1.msra.mxu0 %v74
    %137 = vmatprep.subr.mxu0 %v72
    %138 = vmatpush1.msra.mxu0 %v71
    %139 = vmatprep.subr.mxu0 0.0
    %140 = vmatpush2.msra.mxu0 0.0
    %141 = vmatprep.subr.mxu0 0.0
    %142 = vmatpush2.msra.mxu0 0.0
    %143 = vmatprep.subr.mxu0 0.0
    %144 = vmatpush2.msra.mxu0 0.0
    %145 = vmatprep.subr.mxu0 0.0
    %146 = vmatpush2.msra.mxu0 0.0
    %147 = vmatprep.subr.mxu0 0.0
    %148 = vmatpush2.msra.mxu0 0.0
    %149 = vmatprep.subr.mxu0 0.0
    %150 = vmatpush2.msra.mxu0 0.0
    %151 = vmatprep.subr.mxu0 0.0
    %152 = vmatpush2.msra.mxu0 0.0
    %153 = vmatprep.subr.mxu0 0.0
    %154 = vmatpush2.msra.mxu0 0.0
    %155 = vmatprep.subr.mxu0 0.0
    %156 = vmatpush2.msra.mxu0 0.0
    %157 = vmatprep.subr.mxu0 0.0
    %158 = vmatpush2.msra.mxu0 0.0
    %159 = vmatprep.subr.mxu0 0.0
    %160 = vmatpush2.msra.mxu0 0.0
    %161 = vmatprep.subr.mxu0 0.0
    %162 = vmatpush2.msra.mxu0 0.0
    %163 = vmatprep.subr.mxu0 0.0
    %164 = vmatpush2.msra.mxu0 0.0
    %165 = vmatprep.subr.mxu0 0.0
    %166 = vmatpush2.msra.mxu0 0.0
    %167 = vmatprep.subr.mxu0 0.0
    %168 = vmatpush2.msra.mxu0 0.0
    %169 = vmatprep.subr.mxu0 0.0
    %170 = vmatpush2.msra.mxu0 0.0
    %171 = vmatprep.mubr.f32.mxu0 0.0
    %172 = vmatmul.mubr.f32.gmra.mxu0 %v96
    %v173 = vpop.f32.mrf.mxu0
    %v174 = vadd.f32 %v82, %v173
    %v175 = vpop.f32.mrf.mxu0
    %v176 = vadd.f32 %v86, %v175
    %177 = vmatprep.mubr.f32.mxu0 0.0
    %178 = vmatmul.mubr.f32.gmra.mxu0 %v99
    %v179 = vpop.f32.mrf.mxu0
    %v180 = vadd.f32 %v82, %v179
    %v181 = vpop.f32.mrf.mxu0
    %v182 = vadd.f32 %v86, %v181
    %183 = vmatprep.mubr.f32.mxu0 0.0
    %184 = vmatmul.mubr.f32.gmra.mxu0 %v102
    %v185 = vpop.f32.mrf.mxu0
    %v186 = vadd.f32 %v82, %v185
    %v187 = vpop.f32.mrf.mxu0
    %v188 = vadd.f32 %v86, %v187
    %189 = vmatprep.mubr.f32.mxu0 0.0
    %190 = vmatmul.mubr.f32.gmra.mxu0 %v105
    %v191 = vpop.f32.mrf.mxu0
    %v192 = vadd.f32 %v82, %v191
    %v193 = vpop.f32.mrf.mxu0
    %v194 = vadd.f32 %v86, %v193
    %195 = vdwg.mxu0
    %196 = vmatprep.subr.mxu0 0.0
    %197 = vmatpush1.msra.mxu0 0.0
    %198 = vmatprep.subr.mxu0 0.0
    %199 = vmatpush1.msra.mxu0 0.0
    %200 = vmatprep.subr.mxu0 0.0
    %201 = vmatpush1.msra.mxu0 0.0
    %202 = vmatprep.subr.mxu0 0.0
    %203 = vmatpush1.msra.mxu0 0.0
    %204 = vmatprep.subr.mxu0 0.0
    %205 = vmatpush1.msra.mxu0 0.0
    %206 = vmatprep.subr.mxu0 0.0
    %207 = vmatpush1.msra.mxu0 0.0
    %208 = vmatprep.subr.mxu0 0.0
    %209 = vmatpush1.msra.mxu0 0.0
    %210 = vmatprep.subr.mxu0 0.0
    %211 = vmatpush1.msra.mxu0 0.0
    %212 = vmatprep.subr.mxu0 0.0
    %213 = vmatpush1.msra.mxu0 0.0
    %214 = vmatprep.subr.mxu0 0.0
    %215 = vmatpush1.msra.mxu0 0.0
    %216 = vmatprep.subr.mxu0 0.0
    %217 = vmatpush1.msra.mxu0 0.0
    %218 = vmatprep.subr.mxu0 0.0
    %219 = vmatpush1.msra.mxu0 0.0
    %220 = vmatprep.subr.mxu0 0.0
    %221 = vmatpush1.msra.mxu0 0.0
    %222 = vmatprep.subr.mxu0 0.0
    %223 = vmatpush1.msra.mxu0 0.0
    %224 = vmatprep.subr.mxu0 0.0
    %225 = vmatpush1.msra.mxu0 %v76
    %226 = vmatprep.subr.mxu0 0.0
    %227 = vmatpush1.msra.mxu0 %v73
    %228 = vmatprep.subr.mxu0 0.0
    %229 = vmatpush2.msra.mxu0 0.0
    %230 = vmatprep.subr.mxu0 0.0
    %231 = vmatpush2.msra.mxu0 0.0
    %232 = vmatprep.subr.mxu0 0.0
    %233 = vmatpush2.msra.mxu0 0.0
    %234 = vmatprep.subr.mxu0 0.0
    %235 = vmatpush2.msra.mxu0 0.0
    %236 = vmatprep.subr.mxu0 0.0
    %237 = vmatpush2.msra.mxu0 0.0
    %238 = vmatprep.subr.mxu0 0.0
    %239 = vmatpush2.msra.mxu0 0.0
    %240 = vmatprep.subr.mxu0 0.0
    %241 = vmatpush2.msra.mxu0 0.0
    %242 = vmatprep.subr.mxu0 0.0
    %243 = vmatpush2.msra.mxu0 0.0
    %244 = vmatprep.subr.mxu0 0.0
    %245 = vmatpush2.msra.mxu0 0.0
    %246 = vmatprep.subr.mxu0 0.0
    %247 = vmatpush2.msra.mxu0 0.0
    %248 = vmatprep.subr.mxu0 0.0
    %249 = vmatpush2.msra.mxu0 0.0
    %250 = vmatprep.subr.mxu0 0.0
    %251 = vmatpush2.msra.mxu0 0.0
    %252 = vmatprep.subr.mxu0 0.0
    %253 = vmatpush2.msra.mxu0 0.0
    %254 = vmatprep.subr.mxu0 0.0
    %255 = vmatpush2.msra.mxu0 0.0
    %256 = vmatprep.subr.mxu0 0.0
    %257 = vmatpush2.msra.mxu0 0.0
    %258 = vmatprep.subr.mxu0 0.0
    %259 = vmatpush2.msra.mxu0 0.0
    %260 = vmatprep.mubr.f32.mxu0 0.0
    %261 = vmatmul.mubr.f32.gmra.mxu0 %v96
    %v262 = vpop.f32.mrf.mxu0
    %v263 = vadd.f32 %v90, %v262
    %v264 = vpop.f32.mrf.mxu0
    %265 = vmatprep.mubr.f32.mxu0 0.0
    %266 = vmatmul.mubr.f32.gmra.mxu0 %v99
    %v267 = vpop.f32.mrf.mxu0
    %v268 = vadd.f32 %v90, %v267
    %v269 = vpop.f32.mrf.mxu0
    %270 = vmatprep.mubr.f32.mxu0 0.0
    %271 = vmatmul.mubr.f32.gmra.mxu0 %v102
    %v272 = vpop.f32.mrf.mxu0
    %v273 = vadd.f32 %v90, %v272
    %v274 = vpop.f32.mrf.mxu0
    %275 = vmatprep.mubr.f32.mxu0 0.0
    %276 = vmatmul.mubr.f32.gmra.mxu0 %v105
    %v277 = vpop.f32.mrf.mxu0
    %v278 = vadd.f32 %v90, %v277
    %v279 = vpop.f32.mrf.mxu0
    %280 = vdwg.mxu0
    %v281 = vld [vmem:[#allocation5] sm:$0xff]
    %v282 = vld [vmem:[#allocation5 + $0x8] sm:$0xff]
    %v283 = vld [vmem:[#allocation5 + $0x10] sm:$0xff]
    %v284 = vld [vmem:[#allocation5 + $0x18] sm:$0xff]
    %v285 = vld [vmem:[#allocation5 + $0x20] sm:$0xff]
    %v286 = vld [vmem:[#allocation5 + $0x28] sm:$0xff]
    %v287 = vld [vmem:[#allocation5 + $0x30] sm:$0xff]
    %v288 = vld [vmem:[#allocation5 + $0x38] sm:$0xff]
    %v289 = vld [vmem:[#allocation5 + $0x40] sm:$0xff]
    %v290 = vld [vmem:[#allocation5 + $0x48] sm:$0xff]
    %v291 = vld [vmem:[#allocation5 + $0x50] sm:$0xff]
    %v292 = vld [vmem:[#allocation5 + $0x58] sm:$0xff]
    %v293 = vld [vmem:[#allocation5 + $0x60] sm:$0xff]
    %v294 = vld [vmem:[#allocation5 + $0x68] sm:$0xff]
    %v295 = vld [vmem:[#allocation5 + $0x70] sm:$0xff]
    %v296 = vld [vmem:[#allocation5 + $0x78] sm:$0xff]
    %v297 = vld [vmem:[#allocation5 + $0x80] sm:$0xff]
    %v298 = vld [vmem:[#allocation5 + $0x88] sm:$0xff]
    %v299 = vld [vmem:[#allocation5 + $0x90] sm:$0xff]
    %v300 = vld [vmem:[#allocation5 + $0x98] sm:$0xff]
    %v301 = vld [vmem:[#allocation5 + $0xa0] sm:$0xff]
    %v302 = vld [vmem:[#allocation5 + $0xa8] sm:$0xff]
    %v303 = vld [vmem:[#allocation5 + $0xb0] sm:$0xff]
    %v304 = vld [vmem:[#allocation5 + $0xb8] sm:$0xff]
    %v305 = vld [vmem:[#allocation5 + $0xc0] sm:$0xff]
    %v306 = vld [vmem:[#allocation5 + $0xc8] sm:$0xff]
    %v307 = vld [vmem:[#allocation5 + $0xd0] sm:$0xff]
    %v308 = vld [vmem:[#allocation5 + $0xd8] sm:$0xff]
    %v309 = vld [vmem:[#allocation5 + $0xe0] sm:$0xff]
    %v310 = vld [vmem:[#allocation5 + $0xe8] sm:$0xff]
    %v311 = vld [vmem:[#allocation5 + $0xf0] sm:$0xff]
    %v312 = vld [vmem:[#allocation5 + $0xf8] sm:$0xff]
    %v313 = vld [vmem:[#allocation5 + $0x100] sm:$0xff]
    %v314 = vld [vmem:[#allocation5 + $0x108] sm:$0xff]
    %v315 = vld [vmem:[#allocation5 + $0x110] sm:$0xff]
    %v316 = vld [vmem:[#allocation5 + $0x118] sm:$0xff]
    %v317 = vld [vmem:[#allocation5 + $0x120] sm:$0xff]
    %v318 = vld [vmem:[#allocation5 + $0x128] sm:$0xff]
    %v319 = vld [vmem:[#allocation5 + $0x130] sm:$0xff]
    %v320 = vld [vmem:[#allocation5 + $0x138] sm:$0xff]
    %v321 = vld [vmem:[#allocation5 + $0x140] sm:$0xff]
    %v322 = vld [vmem:[#allocation5 + $0x148] sm:$0xff]
    %v323 = vld [vmem:[#allocation5 + $0x150] sm:$0xff]
    %v324 = vld [vmem:[#allocation5 + $0x158] sm:$0xff]
    %v325 = vld [vmem:[#allocation5 + $0x160] sm:$0xff]
    %v326 = vld [vmem:[#allocation5 + $0x168] sm:$0xff]
    %v327 = vld [vmem:[#allocation5 + $0x170] sm:$0xff]
    %v328 = vld [vmem:[#allocation5 + $0x178] sm:$0xff]
    %s329 = scalar_lea.vmem [#allocation5], 384
    %v330 = vld [vmem:[%s329] sm:$0xff]
    %v331 = vld [vmem:[%s329 + $0x8] sm:$0xff]
    %v332 = vld [vmem:[%s329 + $0x10] sm:$0xff]
    %v333 = vld [vmem:[%s329 + $0x18] sm:$0xff]
    %v334 = vld [vmem:[%s329 + $0x20] sm:$0xff]
    %v335 = vld [vmem:[%s329 + $0x28] sm:$0xff]
    %v336 = vld [vmem:[%s329 + $0x30] sm:$0xff]
    %v337 = vld [vmem:[%s329 + $0x38] sm:$0xff]
    %v338 = vld [vmem:[%s329 + $0x40] sm:$0xff]
    %v339 = vld [vmem:[%s329 + $0x48] sm:$0xff]
    %v340 = vld [vmem:[%s329 + $0x50] sm:$0xff]
    %v341 = vld [vmem:[%s329 + $0x58] sm:$0xff]
    %v342 = vld [vmem:[%s329 + $0x60] sm:$0xff]
    %v343 = vld [vmem:[%s329 + $0x68] sm:$0xff]
    %v344 = vld [vmem:[%s329 + $0x70] sm:$0xff]
    %v345 = vld [vmem:[%s329 + $0x78] sm:$0xff]
    %v346 = vld [vmem:[%s329 + $0x80] sm:$0xff]
    %v347 = vld [vmem:[%s329 + $0x88] sm:$0xff]
    %v348 = vld [vmem:[%s329 + $0x90] sm:$0xff]
    %v349 = vld [vmem:[%s329 + $0x98] sm:$0xff]
    %v350 = vld [vmem:[%s329 + $0xa0] sm:$0xff]
    %v351 = vld [vmem:[%s329 + $0xa8] sm:$0xff]
    %v352 = vld [vmem:[%s329 + $0xb0] sm:$0xff]
    %v353 = vld [vmem:[%s329 + $0xb8] sm:$0xff]
    %v354 = vld [vmem:[%s329 + $0xc0] sm:$0xff]
    %v355 = vld [vmem:[%s329 + $0xc8] sm:$0xff]
    %v356 = vld [vmem:[%s329 + $0xd0] sm:$0xff]
    %v357 = vld [vmem:[%s329 + $0xd8] sm:$0xff]
    %v358 = vld [vmem:[%s329 + $0xe0] sm:$0xff]
    %v359 = vld [vmem:[%s329 + $0xe8] sm:$0xff]
    %v360 = vld [vmem:[%s329 + $0xf0] sm:$0xff]
    %v361 = vld [vmem:[%s329 + $0xf8] sm:$0xff]
    %v362 = vld [vmem:[%s329 + $0x100] sm:$0xff]
    %v363 = vld [vmem:[%s329 + $0x108] sm:$0xff]
    %v364 = vld [vmem:[%s329 + $0x110] sm:$0xff]
    %v365 = vld [vmem:[%s329 + $0x118] sm:$0xff]
    %v366 = vld [vmem:[%s329 + $0x120] sm:$0xff]
    %v367 = vld [vmem:[%s329 + $0x128] sm:$0xff]
    %v368 = vld [vmem:[%s329 + $0x130] sm:$0xff]
    %v369 = vld [vmem:[%s329 + $0x138] sm:$0xff]
    %v370 = vld [vmem:[%s329 + $0x140] sm:$0xff]
    %v371 = vld [vmem:[%s329 + $0x148] sm:$0xff]
    %v372 = vld [vmem:[%s329 + $0x150] sm:$0xff]
    %v373 = vld [vmem:[%s329 + $0x158] sm:$0xff]
    %v374 = vld [vmem:[%s329 + $0x160] sm:$0xff]
    %v375 = vld [vmem:[%s329 + $0x168] sm:$0xff]
    %v376 = vld [vmem:[%s329 + $0x170] sm:$0xff]
    %v377 = vld [vmem:[%s329 + $0x178] sm:$0xff]
    %378 = vmatprep.subr.mxu0 %v376
    %379 = vmatpush1.msra.mxu0 %v375
    %380 = vmatprep.subr.mxu0 %v373
    %381 = vmatpush1.msra.mxu0 %v372
    %382 = vmatprep.subr.mxu0 %v370
    %383 = vmatpush1.msra.mxu0 %v369
    %384 = vmatprep.subr.mxu0 %v367
    %385 = vmatpush1.msra.mxu0 %v366
    %386 = vmatprep.subr.mxu0 %v364
    %387 = vmatpush1.msra.mxu0 %v363
    %388 = vmatprep.subr.mxu0 %v361
    %389 = vmatpush1.msra.mxu0 %v360
    %390 = vmatprep.subr.mxu0 %v358
    %391 = vmatpush1.msra.mxu0 %v357
    %392 = vmatprep.subr.mxu0 %v355
    %393 = vmatpush1.msra.mxu0 %v354
    %394 = vmatprep.subr.mxu0 %v352
    %395 = vmatpush1.msra.mxu0 %v351
    %396 = vmatprep.subr.mxu0 %v349
    %397 = vmatpush1.msra.mxu0 %v348
    %398 = vmatprep.subr.mxu0 %v346
    %399 = vmatpush1.msra.mxu0 %v345
    %400 = vmatprep.subr.mxu0 %v343
    %401 = vmatpush1.msra.mxu0 %v342
    %402 = vmatprep.subr.mxu0 %v340
    %403 = vmatpush1.msra.mxu0 %v339
    %404 = vmatprep.subr.mxu0 %v337
    %405 = vmatpush1.msra.mxu0 %v336
    %406 = vmatprep.subr.mxu0 %v334
    %407 = vmatpush1.msra.mxu0 %v333
    %408 = vmatprep.subr.mxu0 %v331
    %409 = vmatpush1.msra.mxu0 %v330
    %410 = vmatprep.subr.mxu0 0.0
    %411 = vmatpush2.msra.mxu0 0.0
    %412 = vmatprep.subr.mxu0 0.0
    %413 = vmatpush2.msra.mxu0 0.0
    %414 = vmatprep.subr.mxu0 0.0
    %415 = vmatpush2.msra.mxu0 0.0
    %416 = vmatprep.subr.mxu0 0.0
    %417 = vmatpush2.msra.mxu0 0.0
    %418 = vmatprep.subr.mxu0 0.0
    %419 = vmatpush2.msra.mxu0 0.0
    %420 = vmatprep.subr.mxu0 0.0
    %421 = vmatpush2.msra.mxu0 0.0
    %422 = vmatprep.subr.mxu0 0.0
    %423 = vmatpush2.msra.mxu0 0.0
    %424 = vmatprep.subr.mxu0 0.0
    %425 = vmatpush2.msra.mxu0 0.0
    %426 = vmatprep.subr.mxu0 0.0
    %427 = vmatpush2.msra.mxu0 0.0
    %428 = vmatprep.subr.mxu0 0.0
    %429 = vmatpush2.msra.mxu0 0.0
    %430 = vmatprep.subr.mxu0 0.0
    %431 = vmatpush2.msra.mxu0 0.0
    %432 = vmatprep.subr.mxu0 0.0
    %433 = vmatpush2.msra.mxu0 0.0
    %434 = vmatprep.subr.mxu0 0.0
    %435 = vmatpush2.msra.mxu0 0.0
    %436 = vmatprep.subr.mxu0 0.0
    %437 = vmatpush2.msra.mxu0 0.0
    %438 = vmatprep.subr.mxu0 0.0
    %439 = vmatpush2.msra.mxu0 0.0
    %440 = vmatprep.subr.mxu0 0.0
    %441 = vmatpush2.msra.mxu0 0.0
    %442 = vmatprep.mubr.f32.mxu0 0.0
    %443 = vmatmul.mubr.f32.gmra.mxu0 0.0
    %v444 = vpop.f32.mrf.mxu0
    %v445 = vadd.f32 0.0, %v444
    %v446 = vpop.f32.mrf.mxu0
    %v447 = vadd.f32 0.0, %v446
    %448 = vmatprep.mubr.f32.mxu0 0.0
    %449 = vmatmul.mubr.f32.gmra.mxu0 0.0
    %v450 = vpop.f32.mrf.mxu0
    %v451 = vadd.f32 0.0, %v450
    %v452 = vpop.f32.mrf.mxu0
    %v453 = vadd.f32 0.0, %v452
    %454 = vmatprep.mubr.f32.mxu0 0.0
    %455 = vmatmul.mubr.f32.gmra.mxu0 0.0
    %v456 = vpop.f32.mrf.mxu0
    %v457 = vadd.f32 0.0, %v456
    %v458 = vpop.f32.mrf.mxu0
    %v459 = vadd.f32 0.0, %v458
    %460 = vmatprep.mubr.f32.mxu0 0.0
    %461 = vmatmul.mubr.f32.gmra.mxu0 0.0
    %v462 = vpop.f32.mrf.mxu0
    %v463 = vadd.f32 0.0, %v462
    %v464 = vpop.f32.mrf.mxu0
    %v465 = vadd.f32 0.0, %v464
    %466 = vdwg.mxu0
    %467 = vmatprep.subr.mxu0 0.0
    %468 = vmatpush1.msra.mxu0 %v377
    %469 = vmatprep.subr.mxu0 0.0
    %470 = vmatpush1.msra.mxu0 %v374
    %471 = vmatprep.subr.mxu0 0.0
    %472 = vmatpush1.msra.mxu0 %v371
    %473 = vmatprep.subr.mxu0 0.0
    %474 = vmatpush1.msra.mxu0 %v368
    %475 = vmatprep.subr.mxu0 0.0
    %476 = vmatpush1.msra.mxu0 %v365
    %477 = vmatprep.subr.mxu0 0.0
    %478 = vmatpush1.msra.mxu0 %v362
    %479 = vmatprep.subr.mxu0 0.0
    %480 = vmatpush1.msra.mxu0 %v359
    %481 = vmatprep.subr.mxu0 0.0
    %482 = vmatpush1.msra.mxu0 %v356
    %483 = vmatprep.subr.mxu0 0.0
    %484 = vmatpush1.msra.mxu0 %v353
    %485 = vmatprep.subr.mxu0 0.0
    %486 = vmatpush1.msra.mxu0 %v350
    %487 = vmatprep.subr.mxu0 0.0
    %488 = vmatpush1.msra.mxu0 %v347
    %489 = vmatprep.subr.mxu0 0.0
    %490 = vmatpush1.msra.mxu0 %v344
    %491 = vmatprep.subr.mxu0 0.0
    %492 = vmatpush1.msra.mxu0 %v341
    %493 = vmatprep.subr.mxu0 0.0
    %494 = vmatpush1.msra.mxu0 %v338
    %495 = vmatprep.subr.mxu0 0.0
    %496 = vmatpush1.msra.mxu0 %v335
    %497 = vmatprep.subr.mxu0 0.0
    %498 = vmatpush1.msra.mxu0 %v332
    %499 = vmatprep.subr.mxu0 0.0
    %500 = vmatpush2.msra.mxu0 0.0
    %501 = vmatprep.subr.mxu0 0.0
    %502 = vmatpush2.msra.mxu0 0.0
    %503 = vmatprep.subr.mxu0 0.0
    %504 = vmatpush2.msra.mxu0 0.0
    %505 = vmatprep.subr.mxu0 0.0
    %506 = vmatpush2.msra.mxu0 0.0
    %507 = vmatprep.subr.mxu0 0.0
    %508 = vmatpush2.msra.mxu0 0.0
    %509 = vmatprep.subr.mxu0 0.0
    %510 = vmatpush2.msra.mxu0 0.0
    %511 = vmatprep.subr.mxu0 0.0
    %512 = vmatpush2.msra.mxu0 0.0
    %513 = vmatprep.subr.mxu0 0.0
    %514 = vmatpush2.msra.mxu0 0.0
    %515 = vmatprep.subr.mxu0 0.0
    %516 = vmatpush2.msra.mxu0 0.0
    %517 = vmatprep.subr.mxu0 0.0
    %518 = vmatpush2.msra.mxu0 0.0
    %519 = vmatprep.subr.mxu0 0.0
    %520 = vmatpush2.msra.mxu0 0.0
    %521 = vmatprep.subr.mxu0 0.0
    %522 = vmatpush2.msra.mxu0 0.0
    %523 = vmatprep.subr.mxu0 0.0
    %524 = vmatpush2.msra.mxu0 0.0
    %525 = vmatprep.subr.mxu0 0.0
    %526 = vmatpush2.msra.mxu0 0.0
    %527 = vmatprep.subr.mxu0 0.0
    %528 = vmatpush2.msra.mxu0 0.0
    %529 = vmatprep.subr.mxu0 0.0
    %530 = vmatpush2.msra.mxu0 0.0
    %531 = vmatprep.mubr.f32.mxu0 0.0
    %532 = vmatmul.mubr.f32.gmra.mxu0 0.0
    %v533 = vpop.f32.mrf.mxu0
    %v534 = vadd.f32 0.0, %v533
    %v535 = vpop.f32.mrf.mxu0
    %536 = vmatprep.mubr.f32.mxu0 0.0
    %537 = vmatmul.mubr.f32.gmra.mxu0 0.0
    %v538 = vpop.f32.mrf.mxu0
    %v539 = vadd.f32 0.0, %v538
    %v540 = vpop.f32.mrf.mxu0
    %541 = vmatprep.mubr.f32.mxu0 0.0
    %542 = vmatmul.mubr.f32.gmra.mxu0 0.0
    %v543 = vpop.f32.mrf.mxu0
    %v544 = vadd.f32 0.0, %v543
    %v545 = vpop.f32.mrf.mxu0
    %546 = vmatprep.mubr.f32.mxu0 0.0
    %547 = vmatmul.mubr.f32.gmra.mxu0 0.0
    %v548 = vpop.f32.mrf.mxu0
    %v549 = vadd.f32 0.0, %v548
    %v550 = vpop.f32.mrf.mxu0
    %551 = vdwg.mxu0
    %vm552 = vcmask 261120
    %v554 = vsel %vm552, %v67, 0
    %v557 = vsel %vm552, %v68, 0
    %v560 = vsel %vm552, %v69, 0
    %v563 = vsel %vm552, %v70, 0
    %565 = vmatprep.subr.mxu0 0.0
    %566 = vmatpush1.msra.mxu0 0.0
    %567 = vmatprep.subr.mxu0 0.0
    %568 = vmatpush1.msra.mxu0 0.0
    %569 = vmatprep.subr.mxu0 0.0
    %570 = vmatpush1.msra.mxu0 0.0
    %571 = vmatprep.subr.mxu0 0.0
    %572 = vmatpush1.msra.mxu0 0.0
    %573 = vmatprep.subr.mxu0 0.0
    %574 = vmatpush1.msra.mxu0 0.0
    %575 = vmatprep.subr.mxu0 0.0
    %576 = vmatpush1.msra.mxu0 0.0
    %577 = vmatprep.subr.mxu0 0.0
    %578 = vmatpush1.msra.mxu0 0.0
    %579 = vmatprep.subr.mxu0 0.0
    %580 = vmatpush1.msra.mxu0 0.0
    %581 = vmatprep.subr.mxu0 0.0
    %582 = vmatpush1.msra.mxu0 0.0
    %583 = vmatprep.subr.mxu0 0.0
    %584 = vmatpush1.msra.mxu0 0.0
    %585 = vmatprep.subr.mxu0 0.0
    %586 = vmatpush1.msra.mxu0 0.0
    %587 = vmatprep.subr.mxu0 0.0
    %588 = vmatpush1.msra.mxu0 0.0
    %589 = vmatprep.subr.mxu0 %v465
    %590 = vmatpush1.msra.mxu0 %v463
    %591 = vmatprep.subr.mxu0 %v459
    %592 = vmatpush1.msra.mxu0 %v457
    %593 = vmatprep.subr.mxu0 %v453
    %594 = vmatpush1.msra.mxu0 %v451
    %595 = vmatprep.subr.mxu0 %v447
    %596 = vmatpush1.msra.mxu0 %v445
    %597 = vmatprep.subr.mxu0 0.0
    %598 = vmatpush2.msra.mxu0 0.0
    %599 = vmatprep.subr.mxu0 0.0
    %600 = vmatpush2.msra.mxu0 0.0
    %601 = vmatprep.subr.mxu0 0.0
    %602 = vmatpush2.msra.mxu0 0.0
    %603 = vmatprep.subr.mxu0 0.0
    %604 = vmatpush2.msra.mxu0 0.0
    %605 = vmatprep.subr.mxu0 0.0
    %606 = vmatpush2.msra.mxu0 0.0
    %607 = vmatprep.subr.mxu0 0.0
    %608 = vmatpush2.msra.mxu0 0.0
    %609 = vmatprep.subr.mxu0 0.0
    %610 = vmatpush2.msra.mxu0 0.0
    %611 = vmatprep.subr.mxu0 0.0
    %612 = vmatpush2.msra.mxu0 0.0
    %613 = vmatprep.subr.mxu0 0.0
    %614 = vmatpush2.msra.mxu0 0.0
    %615 = vmatprep.subr.mxu0 0.0
    %616 = vmatpush2.msra.mxu0 0.0
    %617 = vmatprep.subr.mxu0 0.0
    %618 = vmatpush2.msra.mxu0 0.0
    %619 = vmatprep.subr.mxu0 0.0
    %620 = vmatpush2.msra.mxu0 0.0
    %621 = vmatprep.subr.mxu0 0.0
    %622 = vmatpush2.msra.mxu0 0.0
    %623 = vmatprep.subr.mxu0 0.0
    %624 = vmatpush2.msra.mxu0 0.0
    %625 = vmatprep.subr.mxu0 0.0
    %626 = vmatpush2.msra.mxu0 0.0
    %627 = vmatprep.subr.mxu0 0.0
    %628 = vmatpush2.msra.mxu0 0.0
    %629 = vmatprep.mubr.f32.mxu0 0.0
    %630 = vmatmul.mubr.f32.gmra.mxu0 %v554
    %v631 = vpop.f32.mrf.mxu0
    %v632 = vadd.f32 0.0, %v631
    %v633 = vpop.f32.mrf.mxu0
    %v634 = vadd.f32 0.0, %v633
    %635 = vmatprep.mubr.f32.mxu0 0.0
    %636 = vmatmul.mubr.f32.gmra.mxu0 %v557
    %v637 = vpop.f32.mrf.mxu0
    %v638 = vadd.f32 0.0, %v637
    %v639 = vpop.f32.mrf.mxu0
    %v640 = vadd.f32 0.0, %v639
    %641 = vmatprep.mubr.f32.mxu0 0.0
    %642 = vmatmul.mubr.f32.gmra.mxu0 %v560
    %v643 = vpop.f32.mrf.mxu0
    %v644 = vadd.f32 0.0, %v643
    %v645 = vpop.f32.mrf.mxu0
    %v646 = vadd.f32 0.0, %v645
    %647 = vmatprep.mubr.f32.mxu0 0.0
    %648 = vmatmul.mubr.f32.gmra.mxu0 %v563
    %v649 = vpop.f32.mrf.mxu0
    %v650 = vadd.f32 0.0, %v649
    %v651 = vpop.f32.mrf.mxu0
    %v652 = vadd.f32 0.0, %v651
    %653 = vdwg.mxu0
    %654 = vmatprep.subr.mxu0 0.0
    %655 = vmatpush1.msra.mxu0 0.0
    %656 = vmatprep.subr.mxu0 0.0
    %657 = vmatpush1.msra.mxu0 0.0
    %658 = vmatprep.subr.mxu0 0.0
    %659 = vmatpush1.msra.mxu0 0.0
    %660 = vmatprep.subr.mxu0 0.0
    %661 = vmatpush1.msra.mxu0 0.0
    %662 = vmatprep.subr.mxu0 0.0
    %663 = vmatpush1.msra.mxu0 0.0
    %664 = vmatprep.subr.mxu0 0.0
    %665 = vmatpush1.msra.mxu0 0.0
    %666 = vmatprep.subr.mxu0 0.0
    %667 = vmatpush1.msra.mxu0 0.0
    %668 = vmatprep.subr.mxu0 0.0
    %669 = vmatpush1.msra.mxu0 0.0
    %670 = vmatprep.subr.mxu0 0.0
    %671 = vmatpush1.msra.mxu0 0.0
    %672 = vmatprep.subr.mxu0 0.0
    %673 = vmatpush1.msra.mxu0 0.0
    %674 = vmatprep.subr.mxu0 0.0
    %675 = vmatpush1.msra.mxu0 0.0
    %676 = vmatprep.subr.mxu0 0.0
    %677 = vmatpush1.msra.mxu0 0.0
    %678 = vmatprep.subr.mxu0 0.0
    %679 = vmatpush1.msra.mxu0 %v549
    %680 = vmatprep.subr.mxu0 0.0
    %681 = vmatpush1.msra.mxu0 %v544
    %682 = vmatprep.subr.mxu0 0.0
    %683 = vmatpush1.msra.mxu0 %v539
    %684 = vmatprep.subr.mxu0 0.0
    %685 = vmatpush1.msra.mxu0 %v534
    %686 = vmatprep.subr.mxu0 0.0
    %687 = vmatpush2.msra.mxu0 0.0
    %688 = vmatprep.subr.mxu0 0.0
    %689 = vmatpush2.msra.mxu0 0.0
    %690 = vmatprep.subr.mxu0 0.0
    %691 = vmatpush2.msra.mxu0 0.0
    %692 = vmatprep.subr.mxu0 0.0
    %693 = vmatpush2.msra.mxu0 0.0
    %694 = vmatprep.subr.mxu0 0.0
    %695 = vmatpush2.msra.mxu0 0.0
    %696 = vmatprep.subr.mxu0 0.0
    %697 = vmatpush2.msra.mxu0 0.0
    %698 = vmatprep.subr.mxu0 0.0
    %699 = vmatpush2.msra.mxu0 0.0
    %700 = vmatprep.subr.mxu0 0.0
    %701 = vmatpush2.msra.mxu0 0.0
    %702 = vmatprep.subr.mxu0 0.0
    %703 = vmatpush2.msra.mxu0 0.0
    %704 = vmatprep.subr.mxu0 0.0
    %705 = vmatpush2.msra.mxu0 0.0
    %706 = vmatprep.subr.mxu0 0.0
    %707 = vmatpush2.msra.mxu0 0.0
    %708 = vmatprep.subr.mxu0 0.0
    %709 = vmatpush2.msra.mxu0 0.0
    %710 = vmatprep.subr.mxu0 0.0
    %711 = vmatpush2.msra.mxu0 0.0
    %712 = vmatprep.subr.mxu0 0.0
    %713 = vmatpush2.msra.mxu0 0.0
    %714 = vmatprep.subr.mxu0 0.0
    %715 = vmatpush2.msra.mxu0 0.0
    %716 = vmatprep.subr.mxu0 0.0
    %717 = vmatpush2.msra.mxu0 0.0
    %718 = vmatprep.mubr.f32.mxu0 0.0
    %719 = vmatmul.mubr.f32.gmra.mxu0 %v554
    %v720 = vpop.f32.mrf.mxu0
    %v721 = vadd.f32 0.0, %v720
    %v722 = vpop.f32.mrf.mxu0
    %723 = vmatprep.mubr.f32.mxu0 0.0
    %724 = vmatmul.mubr.f32.gmra.mxu0 %v557
    %v725 = vpop.f32.mrf.mxu0
    %v726 = vadd.f32 0.0, %v725
    %v727 = vpop.f32.mrf.mxu0
    %728 = vmatprep.mubr.f32.mxu0 0.0
    %729 = vmatmul.mubr.f32.gmra.mxu0 %v560
    %v730 = vpop.f32.mrf.mxu0
    %v731 = vadd.f32 0.0, %v730
    %v732 = vpop.f32.mrf.mxu0
    %733 = vmatprep.mubr.f32.mxu0 0.0
    %734 = vmatmul.mubr.f32.gmra.mxu0 %v563
    %v735 = vpop.f32.mrf.mxu0
    %v736 = vadd.f32 0.0, %v735
    %v737 = vpop.f32.mrf.mxu0
    %738 = vdwg.mxu0
    %739 = vmatprep.subr.mxu0 %v327
    %740 = vmatpush1.msra.mxu0 %v326
    %741 = vmatprep.subr.mxu0 %v324
    %742 = vmatpush1.msra.mxu0 %v323
    %743 = vmatprep.subr.mxu0 %v321
    %744 = vmatpush1.msra.mxu0 %v320
    %745 = vmatprep.subr.mxu0 %v318
    %746 = vmatpush1.msra.mxu0 %v317
    %747 = vmatprep.subr.mxu0 %v315
    %748 = vmatpush1.msra.mxu0 %v314
    %749 = vmatprep.subr.mxu0 %v312
    %750 = vmatpush1.msra.mxu0 %v311
    %751 = vmatprep.subr.mxu0 %v309
    %752 = vmatpush1.msra.mxu0 %v308
    %753 = vmatprep.subr.mxu0 %v306
    %754 = vmatpush1.msra.mxu0 %v305
    %755 = vmatprep.subr.mxu0 %v303
    %756 = vmatpush1.msra.mxu0 %v302
    %757 = vmatprep.subr.mxu0 %v300
    %758 = vmatpush1.msra.mxu0 %v299
    %759 = vmatprep.subr.mxu0 %v297
    %760 = vmatpush1.msra.mxu0 %v296
    %761 = vmatprep.subr.mxu0 %v294
    %762 = vmatpush1.msra.mxu0 %v293
    %763 = vmatprep.subr.mxu0 %v291
    %764 = vmatpush1.msra.mxu0 %v290
    %765 = vmatprep.subr.mxu0 %v288
    %766 = vmatpush1.msra.mxu0 %v287
    %767 = vmatprep.subr.mxu0 %v285
    %768 = vmatpush1.msra.mxu0 %v284
    %769 = vmatprep.subr.mxu0 %v282
    %770 = vmatpush1.msra.mxu0 %v281
    %771 = vmatprep.subr.mxu0 0.0
    %772 = vmatpush2.msra.mxu0 0.0
    %773 = vmatprep.subr.mxu0 0.0
    %774 = vmatpush2.msra.mxu0 0.0
    %775 = vmatprep.subr.mxu0 0.0
    %776 = vmatpush2.msra.mxu0 0.0
    %777 = vmatprep.subr.mxu0 0.0
    %778 = vmatpush2.msra.mxu0 0.0
    %779 = vmatprep.subr.mxu0 0.0
    %780 = vmatpush2.msra.mxu0 0.0
    %781 = vmatprep.subr.mxu0 0.0
    %782 = vmatpush2.msra.mxu0 0.0
    %783 = vmatprep.subr.mxu0 0.0
    %784 = vmatpush2.msra.mxu0 0.0
    %785 = vmatprep.subr.mxu0 0.0
    %786 = vmatpush2.msra.mxu0 0.0
    %787 = vmatprep.subr.mxu0 0.0
    %788 = vmatpush2.msra.mxu0 0.0
    %789 = vmatprep.subr.mxu0 0.0
    %790 = vmatpush2.msra.mxu0 0.0
    %791 = vmatprep.subr.mxu0 0.0
    %792 = vmatpush2.msra.mxu0 0.0
    %793 = vmatprep.subr.mxu0 0.0
    %794 = vmatpush2.msra.mxu0 0.0
    %795 = vmatprep.subr.mxu0 0.0
    %796 = vmatpush2.msra.mxu0 0.0
    %797 = vmatprep.subr.mxu0 0.0
    %798 = vmatpush2.msra.mxu0 0.0
    %799 = vmatprep.subr.mxu0 0.0
    %800 = vmatpush2.msra.mxu0 0.0
    %801 = vmatprep.subr.mxu0 0.0
    %802 = vmatpush2.msra.mxu0 0.0
    %803 = vmatprep.mubr.f32.mxu0 0.0
    %804 = vmatmul.mubr.f32.gmra.mxu0 0.0
    %v805 = vpop.f32.mrf.mxu0
    %v806 = vadd.f32 %v632, %v805
    %v807 = vpop.f32.mrf.mxu0
    %v808 = vadd.f32 %v634, %v807
    %809 = vmatprep.mubr.f32.mxu0 0.0
    %810 = vmatmul.mubr.f32.gmra.mxu0 0.0
    %v811 = vpop.f32.mrf.mxu0
    %v812 = vadd.f32 %v638, %v811
    %v813 = vpop.f32.mrf.mxu0
    %v814 = vadd.f32 %v640, %v813
    %815 = vmatprep.mubr.f32.mxu0 0.0
    %816 = vmatmul.mubr.f32.gmra.mxu0 0.0
    %v817 = vpop.f32.mrf.mxu0
    %v818 = vadd.f32 %v644, %v817
    %v819 = vpop.f32.mrf.mxu0
    %v820 = vadd.f32 %v646, %v819
    %821 = vmatprep.mubr.f32.mxu0 0.0
    %822 = vmatmul.mubr.f32.gmra.mxu0 0.0
    %v823 = vpop.f32.mrf.mxu0
    %v824 = vadd.f32 %v650, %v823
    %v825 = vpop.f32.mrf.mxu0
    %v826 = vadd.f32 %v652, %v825
    %827 = vdwg.mxu0
    %828 = vmatprep.subr.mxu0 0.0
    %829 = vmatpush1.msra.mxu0 %v328
    %830 = vmatprep.subr.mxu0 0.0
    %831 = vmatpush1.msra.mxu0 %v325
    %832 = vmatprep.subr.mxu0 0.0
    %833 = vmatpush1.msra.mxu0 %v322
    %834 = vmatprep.subr.mxu0 0.0
    %835 = vmatpush1.msra.mxu0 %v319
    %836 = vmatprep.subr.mxu0 0.0
    %837 = vmatpush1.msra.mxu0 %v316
    %838 = vmatprep.subr.mxu0 0.0
    %839 = vmatpush1.msra.mxu0 %v313
    %840 = vmatprep.subr.mxu0 0.0
    %841 = vmatpush1.msra.mxu0 %v310
    %842 = vmatprep.subr.mxu0 0.0
    %843 = vmatpush1.msra.mxu0 %v307
    %844 = vmatprep.subr.mxu0 0.0
    %845 = vmatpush1.msra.mxu0 %v304
    %846 = vmatprep.subr.mxu0 0.0
    %847 = vmatpush1.msra.mxu0 %v301
    %848 = vmatprep.subr.mxu0 0.0
    %849 = vmatpush1.msra.mxu0 %v298
    %850 = vmatprep.subr.mxu0 0.0
    %851 = vmatpush1.msra.mxu0 %v295
    %852 = vmatprep.subr.mxu0 0.0
    %853 = vmatpush1.msra.mxu0 %v292
    %854 = vmatprep.subr.mxu0 0.0
    %855 = vmatpush1.msra.mxu0 %v289
    %856 = vmatprep.subr.mxu0 0.0
    %857 = vmatpush1.msra.mxu0 %v286
    %858 = vmatprep.subr.mxu0 0.0
    %859 = vmatpush1.msra.mxu0 %v283
    %860 = vmatprep.subr.mxu0 0.0
    %861 = vmatpush2.msra.mxu0 0.0
    %862 = vmatprep.subr.mxu0 0.0
    %863 = vmatpush2.msra.mxu0 0.0
    %864 = vmatprep.subr.mxu0 0.0
    %865 = vmatpush2.msra.mxu0 0.0
    %866 = vmatprep.subr.mxu0 0.0
    %867 = vmatpush2.msra.mxu0 0.0
    %868 = vmatprep.subr.mxu0 0.0
    %869 = vmatpush2.msra.mxu0 0.0
    %870 = vmatprep.subr.mxu0 0.0
    %871 = vmatpush2.msra.mxu0 0.0
    %872 = vmatprep.subr.mxu0 0.0
    %873 = vmatpush2.msra.mxu0 0.0
    %874 = vmatprep.subr.mxu0 0.0
    %875 = vmatpush2.msra.mxu0 0.0
    %876 = vmatprep.subr.mxu0 0.0
    %877 = vmatpush2.msra.mxu0 0.0
    %878 = vmatprep.subr.mxu0 0.0
    %879 = vmatpush2.msra.mxu0 0.0
    %880 = vmatprep.subr.mxu0 0.0
    %881 = vmatpush2.msra.mxu0 0.0
    %882 = vmatprep.subr.mxu0 0.0
    %883 = vmatpush2.msra.mxu0 0.0
    %884 = vmatprep.subr.mxu0 0.0
    %885 = vmatpush2.msra.mxu0 0.0
    %886 = vmatprep.subr.mxu0 0.0
    %887 = vmatpush2.msra.mxu0 0.0
    %888 = vmatprep.subr.mxu0 0.0
    %889 = vmatpush2.msra.mxu0 0.0
    %890 = vmatprep.subr.mxu0 0.0
    %891 = vmatpush2.msra.mxu0 0.0
    %892 = vmatprep.mubr.f32.mxu0 0.0
    %893 = vmatmul.mubr.f32.gmra.mxu0 0.0
    %v894 = vpop.f32.mrf.mxu0
    %v895 = vadd.f32 %v721, %v894
    %v896 = vpop.f32.mrf.mxu0
    %897 = vmatprep.mubr.f32.mxu0 0.0
    %898 = vmatmul.mubr.f32.gmra.mxu0 0.0
    %v899 = vpop.f32.mrf.mxu0
    %v900 = vadd.f32 %v726, %v899
    %v901 = vpop.f32.mrf.mxu0
    %902 = vmatprep.mubr.f32.mxu0 0.0
    %903 = vmatmul.mubr.f32.gmra.mxu0 0.0
    %v904 = vpop.f32.mrf.mxu0
    %v905 = vadd.f32 %v731, %v904
    %v906 = vpop.f32.mrf.mxu0
    %907 = vmatprep.mubr.f32.mxu0 0.0
    %908 = vmatmul.mubr.f32.gmra.mxu0 0.0
    %v909 = vpop.f32.mrf.mxu0
    %v910 = vadd.f32 %v736, %v909
    %v911 = vpop.f32.mrf.mxu0
    %912 = vdwg.mxu0
    %v913 = vadd.f32 %v174, %v806
    %v914 = vadd.f32 %v180, %v812
    %v915 = vadd.f32 %v186, %v818
    %v916 = vadd.f32 %v192, %v824
    %v917 = vxor.u32 %v913, 2147483648
    %v918 = vxor.u32 %v914, 2147483648
    %v919 = vxor.u32 %v915, 2147483648
    %v920 = vxor.u32 %v916, 2147483648
    %v921 = vmul.f32 %v917, 1.442695
    %v922 = vpow.pop %v921
    %v923 = vmul.f32 %v918, 1.442695
    %v924 = vpow.pop %v923
    %v925 = vmul.f32 %v919, 1.442695
    %v926 = vpow.pop %v925
    %v927 = vmul.f32 %v920, 1.442695
    %v928 = vpow.pop %v927
    %v929 = vadd.f32 %v922, 1.0
    %v930 = vadd.f32 %v924, 1.0
    %v931 = vadd.f32 %v926, 1.0
    %v932 = vadd.f32 %v928, 1.0
    %v933 = vrcp.pop %v929
    %v934 = vmul.f32 1.0, %v933
    %v935 = vrcp.pop %v930
    %v936 = vmul.f32 1.0, %v935
    %v937 = vrcp.pop %v931
    %v938 = vmul.f32 1.0, %v937
    %v939 = vrcp.pop %v932
    %v940 = vmul.f32 1.0, %v939
    %v941 = vadd.f32 %v176, %v808
    %v942 = vadd.f32 %v182, %v814
    %v943 = vadd.f32 %v188, %v820
    %v944 = vadd.f32 %v194, %v826
    %v945 = vxor.u32 %v941, 2147483648
    %v946 = vxor.u32 %v942, 2147483648
    %v947 = vxor.u32 %v943, 2147483648
    %v948 = vxor.u32 %v944, 2147483648
    %v949 = vmul.f32 %v945, 1.442695
    %v950 = vpow.pop %v949
    %v951 = vmul.f32 %v946, 1.442695
    %v952 = vpow.pop %v951
    %v953 = vmul.f32 %v947, 1.442695
    %v954 = vpow.pop %v953
    %v955 = vmul.f32 %v948, 1.442695
    %v956 = vpow.pop %v955
    %v957 = vadd.f32 %v950, 1.0
    %v958 = vadd.f32 %v952, 1.0
    %v959 = vadd.f32 %v954, 1.0
    %v960 = vadd.f32 %v956, 1.0
    %v961 = vrcp.pop %v957
    %v962 = vmul.f32 1.0, %v961
    %v963 = vrcp.pop %v958
    %v964 = vmul.f32 1.0, %v963
    %v965 = vrcp.pop %v959
    %v966 = vmul.f32 1.0, %v965
    %v967 = vrcp.pop %v960
    %v968 = vmul.f32 1.0, %v967
    %v969 = vmul.f32 %v934, %v895
    %v970 = vmul.f32 %v936, %v900
    %v971 = vmul.f32 %v938, %v905
    %v972 = vmul.f32 %v940, %v910
    %v973 = vadd.f32 %v263, %v969
    %v974 = vadd.f32 %v268, %v970
    %v975 = vadd.f32 %v273, %v971
    %v976 = vadd.f32 %v278, %v972
    %v977 = vtanh.pop %v973
    %v978 = vtanh.pop %v974
    %v979 = vtanh.pop %v975
    %v980 = vtanh.pop %v976
    %v981 = vsub.f32 1.0, %v962
    %v982 = vsub.f32 1.0, %v964
    %v983 = vsub.f32 1.0, %v966
    %v984 = vsub.f32 1.0, %v968
    %v985 = vmul.f32 %v981, %v977
    %v986 = vmul.f32 %v982, %v978
    %v987 = vmul.f32 %v983, %v979
    %v988 = vmul.f32 %v984, %v980
    %v989 = vmul.f32 %v962, 0.0
    %v990 = vmul.f32 %v964, 0.0
    %v991 = vmul.f32 %v966, 0.0
    %v992 = vmul.f32 %v968, 0.0
    %v993 = vadd.f32 %v985, %v989
    %v994 = vadd.f32 %v986, %v990
    %v995 = vadd.f32 %v987, %v991
    %v996 = vadd.f32 %v988, %v992
    %997 = vmatprep.subr.mxu0 %v376
    %998 = vmatpush1.msra.mxu0 %v375
    %999 = vmatprep.subr.mxu0 %v373
    %1000 = vmatpush1.msra.mxu0 %v372
    %1001 = vmatprep.subr.mxu0 %v370
    %1002 = vmatpush1.msra.mxu0 %v369
    %1003 = vmatprep.subr.mxu0 %v367
    %1004 = vmatpush1.msra.mxu0 %v366
    %1005 = vmatprep.subr.mxu0 %v364
    %1006 = vmatpush1.msra.mxu0 %v363
    %1007 = vmatprep.subr.mxu0 %v361
    %1008 = vmatpush1.msra.mxu0 %v360
    %1009 = vmatprep.subr.mxu0 %v358
    %1010 = vmatpush1.msra.mxu0 %v357
    %1011 = vmatprep.subr.mxu0 %v355
    %1012 = vmatpush1.msra.mxu0 %v354
    %1013 = vmatprep.subr.mxu0 %v352
    %1014 = vmatpush1.msra.mxu0 %v351
    %1015 = vmatprep.subr.mxu0 %v349
    %1016 = vmatpush1.msra.mxu0 %v348
    %1017 = vmatprep.subr.mxu0 %v346
    %1018 = vmatpush1.msra.mxu0 %v345
    %1019 = vmatprep.subr.mxu0 %v343
    %1020 = vmatpush1.msra.mxu0 %v342
    %1021 = vmatprep.subr.mxu0 %v340
    %1022 = vmatpush1.msra.mxu0 %v339
    %1023 = vmatprep.subr.mxu0 %v337
    %1024 = vmatpush1.msra.mxu0 %v336
    %1025 = vmatprep.subr.mxu0 %v334
    %1026 = vmatpush1.msra.mxu0 %v333
    %1027 = vmatprep.subr.mxu0 %v331
    %1028 = vmatpush1.msra.mxu0 %v330
    %1029 = vmatprep.subr.mxu0 0.0
    %1030 = vmatpush2.msra.mxu0 0.0
    %1031 = vmatprep.subr.mxu0 0.0
    %1032 = vmatpush2.msra.mxu0 0.0
    %1033 = vmatprep.subr.mxu0 0.0
    %1034 = vmatpush2.msra.mxu0 0.0
    %1035 = vmatprep.subr.mxu0 0.0
    %1036 = vmatpush2.msra.mxu0 0.0
    %1037 = vmatprep.subr.mxu0 0.0
    %1038 = vmatpush2.msra.mxu0 0.0
    %1039 = vmatprep.subr.mxu0 0.0
    %1040 = vmatpush2.msra.mxu0 0.0
    %1041 = vmatprep.subr.mxu0 0.0
    %1042 = vmatpush2.msra.mxu0 0.0
    %1043 = vmatprep.subr.mxu0 0.0
    %1044 = vmatpush2.msra.mxu0 0.0
    %1045 = vmatprep.subr.mxu0 0.0
    %1046 = vmatpush2.msra.mxu0 0.0
    %1047 = vmatprep.subr.mxu0 0.0
    %1048 = vmatpush2.msra.mxu0 0.0
    %1049 = vmatprep.subr.mxu0 0.0
    %1050 = vmatpush2.msra.mxu0 0.0
    %1051 = vmatprep.subr.mxu0 0.0
    %1052 = vmatpush2.msra.mxu0 0.0
    %1053 = vmatprep.subr.mxu0 0.0
    %1054 = vmatpush2.msra.mxu0 0.0
    %1055 = vmatprep.subr.mxu0 0.0
    %1056 = vmatpush2.msra.mxu0 0.0
    %1057 = vmatprep.subr.mxu0 0.0
    %1058 = vmatpush2.msra.mxu0 0.0
    %1059 = vmatprep.subr.mxu0 0.0
    %1060 = vmatpush2.msra.mxu0 0.0
    %1061 = vmatprep.mubr.f32.mxu0 0.0
    %1062 = vmatmul.mubr.f32.gmra.mxu0 %v993
    %v1063 = vpop.f32.mrf.mxu0
    %v1064 = vadd.f32 0.0, %v1063
    %v1065 = vpop.f32.mrf.mxu0
    %v1066 = vadd.f32 0.0, %v1065
    %1067 = vmatprep.mubr.f32.mxu0 0.0
    %1068 = vmatmul.mubr.f32.gmra.mxu0 %v994
    %v1069 = vpop.f32.mrf.mxu0
    %v1070 = vadd.f32 0.0, %v1069
    %v1071 = vpop.f32.mrf.mxu0
    %v1072 = vadd.f32 0.0, %v1071
    %1073 = vmatprep.mubr.f32.mxu0 0.0
    %1074 = vmatmul.mubr.f32.gmra.mxu0 %v995
    %v1075 = vpop.f32.mrf.mxu0
    %v1076 = vadd.f32 0.0, %v1075
    %v1077 = vpop.f32.mrf.mxu0
    %v1078 = vadd.f32 0.0, %v1077
    %1079 = vmatprep.mubr.f32.mxu0 0.0
    %1080 = vmatmul.mubr.f32.gmra.mxu0 %v996
    %v1081 = vpop.f32.mrf.mxu0
    %v1082 = vadd.f32 0.0, %v1081
    %v1083 = vpop.f32.mrf.mxu0
    %v1084 = vadd.f32 0.0, %v1083
    %1085 = vdwg.mxu0
    %1086 = vmatprep.subr.mxu0 0.0
    %1087 = vmatpush1.msra.mxu0 %v377
    %1088 = vmatprep.subr.mxu0 0.0
    %1089 = vmatpush1.msra.mxu0 %v374
    %1090 = vmatprep.subr.mxu0 0.0
    %1091 = vmatpush1.msra.mxu0 %v371
    %1092 = vmatprep.subr.mxu0 0.0
    %1093 = vmatpush1.msra.mxu0 %v368
    %1094 = vmatprep.subr.mxu0 0.0
    %1095 = vmatpush1.msra.mxu0 %v365
    %1096 = vmatprep.subr.mxu0 0.0
    %1097 = vmatpush1.msra.mxu0 %v362
    %1098 = vmatprep.subr.mxu0 0.0
    %1099 = vmatpush1.msra.mxu0 %v359
    %1100 = vmatprep.subr.mxu0 0.0
    %1101 = vmatpush1.msra.mxu0 %v356
    %1102 = vmatprep.subr.mxu0 0.0
    %1103 = vmatpush1.msra.mxu0 %v353
    %1104 = vmatprep.subr.mxu0 0.0
    %1105 = vmatpush1.msra.mxu0 %v350
    %1106 = vmatprep.subr.mxu0 0.0
    %1107 = vmatpush1.msra.mxu0 %v347
    %1108 = vmatprep.subr.mxu0 0.0
    %1109 = vmatpush1.msra.mxu0 %v344
    %1110 = vmatprep.subr.mxu0 0.0
    %1111 = vmatpush1.msra.mxu0 %v341
    %1112 = vmatprep.subr.mxu0 0.0
    %1113 = vmatpush1.msra.mxu0 %v338
    %1114 = vmatprep.subr.mxu0 0.0
    %1115 = vmatpush1.msra.mxu0 %v335
    %1116 = vmatprep.subr.mxu0 0.0
    %1117 = vmatpush1.msra.mxu0 %v332
    %1118 = vmatprep.subr.mxu0 0.0
    %1119 = vmatpush2.msra.mxu0 0.0
    %1120 = vmatprep.subr.mxu0 0.0
    %1121 = vmatpush2.msra.mxu0 0.0
    %1122 = vmatprep.subr.mxu0 0.0
    %1123 = vmatpush2.msra.mxu0 0.0
    %1124 = vmatprep.subr.mxu0 0.0
    %1125 = vmatpush2.msra.mxu0 0.0
    %1126 = vmatprep.subr.mxu0 0.0
    %1127 = vmatpush2.msra.mxu0 0.0
    %1128 = vmatprep.subr.mxu0 0.0
    %1129 = vmatpush2.msra.mxu0 0.0
    %1130 = vmatprep.subr.mxu0 0.0
    %1131 = vmatpush2.msra.mxu0 0.0
    %1132 = vmatprep.subr.mxu0 0.0
    %1133 = vmatpush2.msra.mxu0 0.0
    %1134 = vmatprep.subr.mxu0 0.0
    %1135 = vmatpush2.msra.mxu0 0.0
    %1136 = vmatprep.subr.mxu0 0.0
    %1137 = vmatpush2.msra.mxu0 0.0
    %1138 = vmatprep.subr.mxu0 0.0
    %1139 = vmatpush2.msra.mxu0 0.0
    %1140 = vmatprep.subr.mxu0 0.0
    %1141 = vmatpush2.msra.mxu0 0.0
    %1142 = vmatprep.subr.mxu0 0.0
    %1143 = vmatpush2.msra.mxu0 0.0
    %1144 = vmatprep.subr.mxu0 0.0
    %1145 = vmatpush2.msra.mxu0 0.0
    %1146 = vmatprep.subr.mxu0 0.0
    %1147 = vmatpush2.msra.mxu0 0.0
    %1148 = vmatprep.subr.mxu0 0.0
    %1149 = vmatpush2.msra.mxu0 0.0
    %1150 = vmatprep.mubr.f32.mxu0 0.0
    %1151 = vmatmul.mubr.f32.gmra.mxu0 %v993
    %v1152 = vpop.f32.mrf.mxu0
    %v1153 = vadd.f32 0.0, %v1152
    %v1154 = vpop.f32.mrf.mxu0
    %1155 = vmatprep.mubr.f32.mxu0 0.0
    %1156 = vmatmul.mubr.f32.gmra.mxu0 %v994
    %v1157 = vpop.f32.mrf.mxu0
    %v1158 = vadd.f32 0.0, %v1157
    %v1159 = vpop.f32.mrf.mxu0
    %1160 = vmatprep.mubr.f32.mxu0 0.0
    %1161 = vmatmul.mubr.f32.gmra.mxu0 %v995
    %v1162 = vpop.f32.mrf.mxu0
    %v1163 = vadd.f32 0.0, %v1162
    %v1164 = vpop.f32.mrf.mxu0
    %1165 = vmatprep.mubr.f32.mxu0 0.0
    %1166 = vmatmul.mubr.f32.gmra.mxu0 %v996
    %v1167 = vpop.f32.mrf.mxu0
    %v1168 = vadd.f32 0.0, %v1167
    %v1169 = vpop.f32.mrf.mxu0
    %1170 = vdwg.mxu0
    %1171 = vmatprep.subr.mxu0 0.0
    %1172 = vmatpush1.msra.mxu0 0.0
    %1173 = vmatprep.subr.mxu0 0.0
    %1174 = vmatpush1.msra.mxu0 0.0
    %1175 = vmatprep.subr.mxu0 0.0
    %1176 = vmatpush1.msra.mxu0 0.0
    %1177 = vmatprep.subr.mxu0 0.0
    %1178 = vmatpush1.msra.mxu0 0.0
    %1179 = vmatprep.subr.mxu0 0.0
    %1180 = vmatpush1.msra.mxu0 0.0
    %1181 = vmatprep.subr.mxu0 0.0
    %1182 = vmatpush1.msra.mxu0 0.0
    %1183 = vmatprep.subr.mxu0 0.0
    %1184 = vmatpush1.msra.mxu0 0.0
    %1185 = vmatprep.subr.mxu0 0.0
    %1186 = vmatpush1.msra.mxu0 0.0
    %1187 = vmatprep.subr.mxu0 0.0
    %1188 = vmatpush1.msra.mxu0 0.0
    %1189 = vmatprep.subr.mxu0 0.0
    %1190 = vmatpush1.msra.mxu0 0.0
    %1191 = vmatprep.subr.mxu0 0.0
    %1192 = vmatpush1.msra.mxu0 0.0
    %1193 = vmatprep.subr.mxu0 0.0
    %1194 = vmatpush1.msra.mxu0 0.0
    %1195 = vmatprep.subr.mxu0 %v1084
    %1196 = vmatpush1.msra.mxu0 %v1082
    %1197 = vmatprep.subr.mxu0 %v1078
    %1198 = vmatpush1.msra.mxu0 %v1076
    %1199 = vmatprep.subr.mxu0 %v1072
    %1200 = vmatpush1.msra.mxu0 %v1070
    %1201 = vmatprep.subr.mxu0 %v1066
    %1202 = vmatpush1.msra.mxu0 %v1064
    %1203 = vmatprep.subr.mxu0 0.0
    %1204 = vmatpush2.msra.mxu0 0.0
    %1205 = vmatprep.subr.mxu0 0.0
    %1206 = vmatpush2.msra.mxu0 0.0
    %1207 = vmatprep.subr.mxu0 0.0
    %1208 = vmatpush2.msra.mxu0 0.0
    %1209 = vmatprep.subr.mxu0 0.0
    %1210 = vmatpush2.msra.mxu0 0.0
    %1211 = vmatprep.subr.mxu0 0.0
    %1212 = vmatpush2.msra.mxu0 0.0
    %1213 = vmatprep.subr.mxu0 0.0
    %1214 = vmatpush2.msra.mxu0 0.0
    %1215 = vmatprep.subr.mxu0 0.0
    %1216 = vmatpush2.msra.mxu0 0.0
    %1217 = vmatprep.subr.mxu0 0.0
    %1218 = vmatpush2.msra.mxu0 0.0
    %1219 = vmatprep.subr.mxu0 0.0
    %1220 = vmatpush2.msra.mxu0 0.0
    %1221 = vmatprep.subr.mxu0 0.0
    %1222 = vmatpush2.msra.mxu0 0.0
    %1223 = vmatprep.subr.mxu0 0.0
    %1224 = vmatpush2.msra.mxu0 0.0
    %1225 = vmatprep.subr.mxu0 0.0
    %1226 = vmatpush2.msra.mxu0 0.0
    %1227 = vmatprep.subr.mxu0 0.0
    %1228 = vmatpush2.msra.mxu0 0.0
    %1229 = vmatprep.subr.mxu0 0.0
    %1230 = vmatpush2.msra.mxu0 0.0
    %1231 = vmatprep.subr.mxu0 0.0
    %1232 = vmatpush2.msra.mxu0 0.0
    %1233 = vmatprep.subr.mxu0 0.0
    %1234 = vmatpush2.msra.mxu0 0.0
    %1235 = vmatprep.mubr.f32.mxu0 0.0
    %1236 = vmatmul.mubr.f32.gmra.mxu0 %v554
    %v1237 = vpop.f32.mrf.mxu0
    %v1238 = vadd.f32 0.0, %v1237
    %v1239 = vpop.f32.mrf.mxu0
    %v1240 = vadd.f32 0.0, %v1239
    %1241 = vmatprep.mubr.f32.mxu0 0.0
    %1242 = vmatmul.mubr.f32.gmra.mxu0 %v557
    %v1243 = vpop.f32.mrf.mxu0
    %v1244 = vadd.f32 0.0, %v1243
    %v1245 = vpop.f32.mrf.mxu0
    %v1246 = vadd.f32 0.0, %v1245
    %1247 = vmatprep.mubr.f32.mxu0 0.0
    %1248 = vmatmul.mubr.f32.gmra.mxu0 %v560
    %v1249 = vpop.f32.mrf.mxu0
    %v1250 = vadd.f32 0.0, %v1249
    %v1251 = vpop.f32.mrf.mxu0
    %v1252 = vadd.f32 0.0, %v1251
    %1253 = vmatprep.mubr.f32.mxu0 0.0
    %1254 = vmatmul.mubr.f32.gmra.mxu0 %v563
    %v1255 = vpop.f32.mrf.mxu0
    %v1256 = vadd.f32 0.0, %v1255
    %v1257 = vpop.f32.mrf.mxu0
    %v1258 = vadd.f32 0.0, %v1257
    %1259 = vdwg.mxu0
    %1260 = vmatprep.subr.mxu0 0.0
    %1261 = vmatpush1.msra.mxu0 0.0
    %1262 = vmatprep.subr.mxu0 0.0
    %1263 = vmatpush1.msra.mxu0 0.0
    %1264 = vmatprep.subr.mxu0 0.0
    %1265 = vmatpush1.msra.mxu0 0.0
    %1266 = vmatprep.subr.mxu0 0.0
    %1267 = vmatpush1.msra.mxu0 0.0
    %1268 = vmatprep.subr.mxu0 0.0
    %1269 = vmatpush1.msra.mxu0 0.0
    %1270 = vmatprep.subr.mxu0 0.0
    %1271 = vmatpush1.msra.mxu0 0.0
    %1272 = vmatprep.subr.mxu0 0.0
    %1273 = vmatpush1.msra.mxu0 0.0
    %1274 = vmatprep.subr.mxu0 0.0
    %1275 = vmatpush1.msra.mxu0 0.0
    %1276 = vmatprep.subr.mxu0 0.0
    %1277 = vmatpush1.msra.mxu0 0.0
    %1278 = vmatprep.subr.mxu0 0.0
    %1279 = vmatpush1.msra.mxu0 0.0
    %1280 = vmatprep.subr.mxu0 0.0
    %1281 = vmatpush1.msra.mxu0 0.0
    %1282 = vmatprep.subr.mxu0 0.0
    %1283 = vmatpush1.msra.mxu0 0.0
    %1284 = vmatprep.subr.mxu0 0.0
    %1285 = vmatpush1.msra.mxu0 %v1168
    %1286 = vmatprep.subr.mxu0 0.0
    %1287 = vmatpush1.msra.mxu0 %v1163
    %1288 = vmatprep.subr.mxu0 0.0
    %1289 = vmatpush1.msra.mxu0 %v1158
    %1290 = vmatprep.subr.mxu0 0.0
    %1291 = vmatpush1.msra.mxu0 %v1153
    %1292 = vmatprep.subr.mxu0 0.0
    %1293 = vmatpush2.msra.mxu0 0.0
    %1294 = vmatprep.subr.mxu0 0.0
    %1295 = vmatpush2.msra.mxu0 0.0
    %1296 = vmatprep.subr.mxu0 0.0
    %1297 = vmatpush2.msra.mxu0 0.0
    %1298 = vmatprep.subr.mxu0 0.0
    %1299 = vmatpush2.msra.mxu0 0.0
    %1300 = vmatprep.subr.mxu0 0.0
    %1301 = vmatpush2.msra.mxu0 0.0
    %1302 = vmatprep.subr.mxu0 0.0
    %1303 = vmatpush2.msra.mxu0 0.0
    %1304 = vmatprep.subr.mxu0 0.0
    %1305 = vmatpush2.msra.mxu0 0.0
    %1306 = vmatprep.subr.mxu0 0.0
    %1307 = vmatpush2.msra.mxu0 0.0
    %1308 = vmatprep.subr.mxu0 0.0
    %1309 = vmatpush2.msra.mxu0 0.0
    %1310 = vmatprep.subr.mxu0 0.0
    %1311 = vmatpush2.msra.mxu0 0.0
    %1312 = vmatprep.subr.mxu0 0.0
    %1313 = vmatpush2.msra.mxu0 0.0
    %1314 = vmatprep.subr.mxu0 0.0
    %1315 = vmatpush2.msra.mxu0 0.0
    %1316 = vmatprep.subr.mxu0 0.0
    %1317 = vmatpush2.msra.mxu0 0.0
    %1318 = vmatprep.subr.mxu0 0.0
    %1319 = vmatpush2.msra.mxu0 0.0
    %1320 = vmatprep.subr.mxu0 0.0
    %1321 = vmatpush2.msra.mxu0 0.0
    %1322 = vmatprep.subr.mxu0 0.0
    %1323 = vmatpush2.msra.mxu0 0.0
    %1324 = vmatprep.mubr.f32.mxu0 0.0
    %1325 = vmatmul.mubr.f32.gmra.mxu0 %v554
    %v1326 = vpop.f32.mrf.mxu0
    %v1327 = vadd.f32 0.0, %v1326
    %v1328 = vpop.f32.mrf.mxu0
    %1329 = vmatprep.mubr.f32.mxu0 0.0
    %1330 = vmatmul.mubr.f32.gmra.mxu0 %v557
    %v1331 = vpop.f32.mrf.mxu0
    %v1332 = vadd.f32 0.0, %v1331
    %v1333 = vpop.f32.mrf.mxu0
    %1334 = vmatprep.mubr.f32.mxu0 0.0
    %1335 = vmatmul.mubr.f32.gmra.mxu0 %v560
    %v1336 = vpop.f32.mrf.mxu0
    %v1337 = vadd.f32 0.0, %v1336
    %v1338 = vpop.f32.mrf.mxu0
    %1339 = vmatprep.mubr.f32.mxu0 0.0
    %1340 = vmatmul.mubr.f32.gmra.mxu0 %v563
    %v1341 = vpop.f32.mrf.mxu0
    %v1342 = vadd.f32 0.0, %v1341
    %v1343 = vpop.f32.mrf.mxu0
    %1344 = vdwg.mxu0
    %1345 = vmatprep.subr.mxu0 %v327
    %1346 = vmatpush1.msra.mxu0 %v326
    %1347 = vmatprep.subr.mxu0 %v324
    %1348 = vmatpush1.msra.mxu0 %v323
    %1349 = vmatprep.subr.mxu0 %v321
    %1350 = vmatpush1.msra.mxu0 %v320
    %1351 = vmatprep.subr.mxu0 %v318
    %1352 = vmatpush1.msra.mxu0 %v317
    %1353 = vmatprep.subr.mxu0 %v315
    %1354 = vmatpush1.msra.mxu0 %v314
    %1355 = vmatprep.subr.mxu0 %v312
    %1356 = vmatpush1.msra.mxu0 %v311
    %1357 = vmatprep.subr.mxu0 %v309
    %1358 = vmatpush1.msra.mxu0 %v308
    %1359 = vmatprep.subr.mxu0 %v306
    %1360 = vmatpush1.msra.mxu0 %v305
    %1361 = vmatprep.subr.mxu0 %v303
    %1362 = vmatpush1.msra.mxu0 %v302
    %1363 = vmatprep.subr.mxu0 %v300
    %1364 = vmatpush1.msra.mxu0 %v299
    %1365 = vmatprep.subr.mxu0 %v297
    %1366 = vmatpush1.msra.mxu0 %v296
    %1367 = vmatprep.subr.mxu0 %v294
    %1368 = vmatpush1.msra.mxu0 %v293
    %1369 = vmatprep.subr.mxu0 %v291
    %1370 = vmatpush1.msra.mxu0 %v290
    %1371 = vmatprep.subr.mxu0 %v288
    %1372 = vmatpush1.msra.mxu0 %v287
    %1373 = vmatprep.subr.mxu0 %v285
    %1374 = vmatpush1.msra.mxu0 %v284
    %1375 = vmatprep.subr.mxu0 %v282
    %1376 = vmatpush1.msra.mxu0 %v281
    %1377 = vmatprep.subr.mxu0 0.0
    %1378 = vmatpush2.msra.mxu0 0.0
    %1379 = vmatprep.subr.mxu0 0.0
    %1380 = vmatpush2.msra.mxu0 0.0
    %1381 = vmatprep.subr.mxu0 0.0
    %1382 = vmatpush2.msra.mxu0 0.0
    %1383 = vmatprep.subr.mxu0 0.0
    %1384 = vmatpush2.msra.mxu0 0.0
    %1385 = vmatprep.subr.mxu0 0.0
    %1386 = vmatpush2.msra.mxu0 0.0
    %1387 = vmatprep.subr.mxu0 0.0
    %1388 = vmatpush2.msra.mxu0 0.0
    %1389 = vmatprep.subr.mxu0 0.0
    %1390 = vmatpush2.msra.mxu0 0.0
    %1391 = vmatprep.subr.mxu0 0.0
    %1392 = vmatpush2.msra.mxu0 0.0
    %1393 = vmatprep.subr.mxu0 0.0
    %1394 = vmatpush2.msra.mxu0 0.0
    %1395 = vmatprep.subr.mxu0 0.0
    %1396 = vmatpush2.msra.mxu0 0.0
    %1397 = vmatprep.subr.mxu0 0.0
    %1398 = vmatpush2.msra.mxu0 0.0
    %1399 = vmatprep.subr.mxu0 0.0
    %1400 = vmatpush2.msra.mxu0 0.0
    %1401 = vmatprep.subr.mxu0 0.0
    %1402 = vmatpush2.msra.mxu0 0.0
    %1403 = vmatprep.subr.mxu0 0.0
    %1404 = vmatpush2.msra.mxu0 0.0
    %1405 = vmatprep.subr.mxu0 0.0
    %1406 = vmatpush2.msra.mxu0 0.0
    %1407 = vmatprep.subr.mxu0 0.0
    %1408 = vmatpush2.msra.mxu0 0.0
    %1409 = vmatprep.mubr.f32.mxu0 0.0
    %1410 = vmatmul.mubr.f32.gmra.mxu0 %v993
    %v1411 = vpop.f32.mrf.mxu0
    %v1412 = vadd.f32 %v1238, %v1411
    %v1413 = vpop.f32.mrf.mxu0
    %v1414 = vadd.f32 %v1240, %v1413
    %1415 = vmatprep.mubr.f32.mxu0 0.0
    %1416 = vmatmul.mubr.f32.gmra.mxu0 %v994
    %v1417 = vpop.f32.mrf.mxu0
    %v1418 = vadd.f32 %v1244, %v1417
    %v1419 = vpop.f32.mrf.mxu0
    %v1420 = vadd.f32 %v1246, %v1419
    %1421 = vmatprep.mubr.f32.mxu0 0.0
    %1422 = vmatmul.mubr.f32.gmra.mxu0 %v995
    %v1423 = vpop.f32.mrf.mxu0
    %v1424 = vadd.f32 %v1250, %v1423
    %v1425 = vpop.f32.mrf.mxu0
    %v1426 = vadd.f32 %v1252, %v1425
    %1427 = vmatprep.mubr.f32.mxu0 0.0
    %1428 = vmatmul.mubr.f32.gmra.mxu0 %v996
    %v1429 = vpop.f32.mrf.mxu0
    %v1430 = vadd.f32 %v1256, %v1429
    %v1431 = vpop.f32.mrf.mxu0
    %v1432 = vadd.f32 %v1258, %v1431
    %1433 = vdwg.mxu0
    %1434 = vmatprep.subr.mxu0 0.0
    %1435 = vmatpush1.msra.mxu0 %v328
    %1436 = vmatprep.subr.mxu0 0.0
    %1437 = vmatpush1.msra.mxu0 %v325
    %1438 = vmatprep.subr.mxu0 0.0
    %1439 = vmatpush1.msra.mxu0 %v322
    %1440 = vmatprep.subr.mxu0 0.0
    %1441 = vmatpush1.msra.mxu0 %v319
    %1442 = vmatprep.subr.mxu0 0.0
    %1443 = vmatpush1.msra.mxu0 %v316
    %1444 = vmatprep.subr.mxu0 0.0
    %1445 = vmatpush1.msra.mxu0 %v313
    %1446 = vmatprep.subr.mxu0 0.0
    %1447 = vmatpush1.msra.mxu0 %v310
    %1448 = vmatprep.subr.mxu0 0.0
    %1449 = vmatpush1.msra.mxu0 %v307
    %1450 = vmatprep.subr.mxu0 0.0
    %1451 = vmatpush1.msra.mxu0 %v304
    %1452 = vmatprep.subr.mxu0 0.0
    %1453 = vmatpush1.msra.mxu0 %v301
    %1454 = vmatprep.subr.mxu0 0.0
    %1455 = vmatpush1.msra.mxu0 %v298
    %1456 = vmatprep.subr.mxu0 0.0
    %1457 = vmatpush1.msra.mxu0 %v295
    %1458 = vmatprep.subr.mxu0 0.0
    %1459 = vmatpush1.msra.mxu0 %v292
    %1460 = vmatprep.subr.mxu0 0.0
    %1461 = vmatpush1.msra.mxu0 %v289
    %1462 = vmatprep.subr.mxu0 0.0
    %1463 = vmatpush1.msra.mxu0 %v286
    %1464 = vmatprep.subr.mxu0 0.0
    %1465 = vmatpush1.msra.mxu0 %v283
    %1466 = vmatprep.subr.mxu0 0.0
    %1467 = vmatpush2.msra.mxu0 0.0
    %1468 = vmatprep.subr.mxu0 0.0
    %1469 = vmatpush2.msra.mxu0 0.0
    %1470 = vmatprep.subr.mxu0 0.0
    %1471 = vmatpush2.msra.mxu0 0.0
    %1472 = vmatprep.subr.mxu0 0.0
    %1473 = vmatpush2.msra.mxu0 0.0
    %1474 = vmatprep.subr.mxu0 0.0
    %1475 = vmatpush2.msra.mxu0 0.0
    %1476 = vmatprep.subr.mxu0 0.0
    %1477 = vmatpush2.msra.mxu0 0.0
    %1478 = vmatprep.subr.mxu0 0.0
    %1479 = vmatpush2.msra.mxu0 0.0
    %1480 = vmatprep.subr.mxu0 0.0
    %1481 = vmatpush2.msra.mxu0 0.0
    %1482 = vmatprep.subr.mxu0 0.0
    %1483 = vmatpush2.msra.mxu0 0.0
    %1484 = vmatprep.subr.mxu0 0.0
    %1485 = vmatpush2.msra.mxu0 0.0
    %1486 = vmatprep.subr.mxu0 0.0
    %1487 = vmatpush2.msra.mxu0 0.0
    %1488 = vmatprep.subr.mxu0 0.0
    %1489 = vmatpush2.msra.mxu0 0.0
    %1490 = vmatprep.subr.mxu0 0.0
    %1491 = vmatpush2.msra.mxu0 0.0
    %1492 = vmatprep.subr.mxu0 0.0
    %1493 = vmatpush2.msra.mxu0 0.0
    %1494 = vmatprep.subr.mxu0 0.0
    %1495 = vmatpush2.msra.mxu0 0.0
    %1496 = vmatprep.subr.mxu0 0.0
    %1497 = vmatpush2.msra.mxu0 0.0
    %1498 = vmatprep.mubr.f32.mxu0 0.0
    %1499 = vmatmul.mubr.f32.gmra.mxu0 %v993
    %v1500 = vpop.f32.mrf.mxu0
    %v1501 = vadd.f32 %v1327, %v1500
    %v1502 = vpop.f32.mrf.mxu0
    %1503 = vmatprep.mubr.f32.mxu0 0.0
    %1504 = vmatmul.mubr.f32.gmra.mxu0 %v994
    %v1505 = vpop.f32.mrf.mxu0
    %v1506 = vadd.f32 %v1332, %v1505
    %v1507 = vpop.f32.mrf.mxu0
    %1508 = vmatprep.mubr.f32.mxu0 0.0
    %1509 = vmatmul.mubr.f32.gmra.mxu0 %v995
    %v1510 = vpop.f32.mrf.mxu0
    %v1511 = vadd.f32 %v1337, %v1510
    %v1512 = vpop.f32.mrf.mxu0
    %1513 = vmatprep.mubr.f32.mxu0 0.0
    %1514 = vmatmul.mubr.f32.gmra.mxu0 %v996
    %v1515 = vpop.f32.mrf.mxu0
    %v1516 = vadd.f32 %v1342, %v1515
    %v1517 = vpop.f32.mrf.mxu0
    %1518 = vdwg.mxu0
    %v1519 = vadd.f32 %v174, %v1412
    %v1520 = vadd.f32 %v180, %v1418
    %v1521 = vadd.f32 %v186, %v1424
    %v1522 = vadd.f32 %v192, %v1430
    %v1523 = vxor.u32 %v1519, 2147483648
    %v1524 = vxor.u32 %v1520, 2147483648
    %v1525 = vxor.u32 %v1521, 2147483648
    %v1526 = vxor.u32 %v1522, 2147483648
    %v1527 = vmul.f32 %v1523, 1.442695
    %v1528 = vpow.pop %v1527
    %v1529 = vmul.f32 %v1524, 1.442695
    %v1530 = vpow.pop %v1529
    %v1531 = vmul.f32 %v1525, 1.442695
    %v1532 = vpow.pop %v1531
    %v1533 = vmul.f32 %v1526, 1.442695
    %v1534 = vpow.pop %v1533
    %v1535 = vadd.f32 %v1528, 1.0
    %v1536 = vadd.f32 %v1530, 1.0
    %v1537 = vadd.f32 %v1532, 1.0
    %v1538 = vadd.f32 %v1534, 1.0
    %v1539 = vrcp.pop %v1535
    %v1540 = vmul.f32 1.0, %v1539
    %v1541 = vrcp.pop %v1536
    %v1542 = vmul.f32 1.0, %v1541
    %v1543 = vrcp.pop %v1537
    %v1544 = vmul.f32 1.0, %v1543
    %v1545 = vrcp.pop %v1538
    %v1546 = vmul.f32 1.0, %v1545
    %v1547 = vadd.f32 %v176, %v1414
    %v1548 = vadd.f32 %v182, %v1420
    %v1549 = vadd.f32 %v188, %v1426
    %v1550 = vadd.f32 %v194, %v1432
    %v1551 = vxor.u32 %v1547, 2147483648
    %v1552 = vxor.u32 %v1548, 2147483648
    %v1553 = vxor.u32 %v1549, 2147483648
    %v1554 = vxor.u32 %v1550, 2147483648
    %v1555 = vmul.f32 %v1551, 1.442695
    %v1556 = vpow.pop %v1555
    %v1557 = vmul.f32 %v1552, 1.442695
    %v1558 = vpow.pop %v1557
    %v1559 = vmul.f32 %v1553, 1.442695
    %v1560 = vpow.pop %v1559
    %v1561 = vmul.f32 %v1554, 1.442695
    %v1562 = vpow.pop %v1561
    %v1563 = vadd.f32 %v1556, 1.0
    %v1564 = vadd.f32 %v1558, 1.0
    %v1565 = vadd.f32 %v1560, 1.0
    %v1566 = vadd.f32 %v1562, 1.0
    %v1567 = vrcp.pop %v1563
    %v1568 = vmul.f32 1.0, %v1567
    %v1569 = vrcp.pop %v1564
    %v1570 = vmul.f32 1.0, %v1569
    %v1571 = vrcp.pop %v1565
    %v1572 = vmul.f32 1.0, %v1571
    %v1573 = vrcp.pop %v1566
    %v1574 = vmul.f32 1.0, %v1573
    %v1575 = vmul.f32 %v1540, %v1501
    %v1576 = vmul.f32 %v1542, %v1506
    %v1577 = vmul.f32 %v1544, %v1511
    %v1578 = vmul.f32 %v1546, %v1516
    %v1579 = vadd.f32 %v263, %v1575
    %v1580 = vadd.f32 %v268, %v1576
    %v1581 = vadd.f32 %v273, %v1577
    %v1582 = vadd.f32 %v278, %v1578
    %v1583 = vtanh.pop %v1579
    %v1584 = vtanh.pop %v1580
    %v1585 = vtanh.pop %v1581
    %v1586 = vtanh.pop %v1582
    %v1587 = vsub.f32 1.0, %v1568
    %v1588 = vsub.f32 1.0, %v1570
    %v1589 = vsub.f32 1.0, %v1572
    %v1590 = vsub.f32 1.0, %v1574
    %v1591 = vmul.f32 %v1587, %v1583
    %v1592 = vmul.f32 %v1588, %v1584
    %v1593 = vmul.f32 %v1589, %v1585
    %v1594 = vmul.f32 %v1590, %v1586
    %v1595 = vmul.f32 %v1568, %v993
    %v1596 = vmul.f32 %v1570, %v994
    %v1597 = vmul.f32 %v1572, %v995
    %v1598 = vmul.f32 %v1574, %v996
    %v1599 = vadd.f32 %v1591, %v1595
    %v1600 = vadd.f32 %v1592, %v1596
    %v1601 = vadd.f32 %v1593, %v1597
    %v1602 = vadd.f32 %v1594, %v1598
    %1603 = vmatprep.subr.mxu0 %v376
    %1604 = vmatpush1.msra.mxu0 %v375
    %1605 = vmatprep.subr.mxu0 %v373
    %1606 = vmatpush1.msra.mxu0 %v372
    %1607 = vmatprep.subr.mxu0 %v370
    %1608 = vmatpush1.msra.mxu0 %v369
    %1609 = vmatprep.subr.mxu0 %v367
    %1610 = vmatpush1.msra.mxu0 %v366
    %1611 = vmatprep.subr.mxu0 %v364
    %1612 = vmatpush1.msra.mxu0 %v363
    %1613 = vmatprep.subr.mxu0 %v361
    %1614 = vmatpush1.msra.mxu0 %v360
    %1615 = vmatprep.subr.mxu0 %v358
    %1616 = vmatpush1.msra.mxu0 %v357
    %1617 = vmatprep.subr.mxu0 %v355
    %1618 = vmatpush1.msra.mxu0 %v354
    %1619 = vmatprep.subr.mxu0 %v352
    %1620 = vmatpush1.msra.mxu0 %v351
    %1621 = vmatprep.subr.mxu0 %v349
    %1622 = vmatpush1.msra.mxu0 %v348
    %1623 = vmatprep.subr.mxu0 %v346
    %1624 = vmatpush1.msra.mxu0 %v345
    %1625 = vmatprep.subr.mxu0 %v343
    %1626 = vmatpush1.msra.mxu0 %v342
    %1627 = vmatprep.subr.mxu0 %v340
    %1628 = vmatpush1.msra.mxu0 %v339
    %1629 = vmatprep.subr.mxu0 %v337
    %1630 = vmatpush1.msra.mxu0 %v336
    %1631 = vmatprep.subr.mxu0 %v334
    %1632 = vmatpush1.msra.mxu0 %v333
    %1633 = vmatprep.subr.mxu0 %v331
    %1634 = vmatpush1.msra.mxu0 %v330
    %1635 = vmatprep.subr.mxu0 0.0
    %1636 = vmatpush2.msra.mxu0 0.0
    %1637 = vmatprep.subr.mxu0 0.0
    %1638 = vmatpush2.msra.mxu0 0.0
    %1639 = vmatprep.subr.mxu0 0.0
    %1640 = vmatpush2.msra.mxu0 0.0
    %1641 = vmatprep.subr.mxu0 0.0
    %1642 = vmatpush2.msra.mxu0 0.0
    %1643 = vmatprep.subr.mxu0 0.0
    %1644 = vmatpush2.msra.mxu0 0.0
    %1645 = vmatprep.subr.mxu0 0.0
    %1646 = vmatpush2.msra.mxu0 0.0
    %1647 = vmatprep.subr.mxu0 0.0
    %1648 = vmatpush2.msra.mxu0 0.0
    %1649 = vmatprep.subr.mxu0 0.0
    %1650 = vmatpush2.msra.mxu0 0.0
    %1651 = vmatprep.subr.mxu0 0.0
    %1652 = vmatpush2.msra.mxu0 0.0
    %1653 = vmatprep.subr.mxu0 0.0
    %1654 = vmatpush2.msra.mxu0 0.0
    %1655 = vmatprep.subr.mxu0 0.0
    %1656 = vmatpush2.msra.mxu0 0.0
    %1657 = vmatprep.subr.mxu0 0.0
    %1658 = vmatpush2.msra.mxu0 0.0
    %1659 = vmatprep.subr.mxu0 0.0
    %1660 = vmatpush2.msra.mxu0 0.0
    %1661 = vmatprep.subr.mxu0 0.0
    %1662 = vmatpush2.msra.mxu0 0.0
    %1663 = vmatprep.subr.mxu0 0.0
    %1664 = vmatpush2.msra.mxu0 0.0
    %1665 = vmatprep.subr.mxu0 0.0
    %1666 = vmatpush2.msra.mxu0 0.0
    %1667 = vmatprep.mubr.f32.mxu0 0.0
    %1668 = vmatmul.mubr.f32.gmra.mxu0 %v1599
    %v1669 = vpop.f32.mrf.mxu0
    %v1670 = vadd.f32 0.0, %v1669
    %v1671 = vpop.f32.mrf.mxu0
    %v1672 = vadd.f32 0.0, %v1671
    %1673 = vmatprep.mubr.f32.mxu0 0.0
    %1674 = vmatmul.mubr.f32.gmra.mxu0 %v1600
    %v1675 = vpop.f32.mrf.mxu0
    %v1676 = vadd.f32 0.0, %v1675
    %v1677 = vpop.f32.mrf.mxu0
    %v1678 = vadd.f32 0.0, %v1677
    %1679 = vmatprep.mubr.f32.mxu0 0.0
    %1680 = vmatmul.mubr.f32.gmra.mxu0 %v1601
    %v1681 = vpop.f32.mrf.mxu0
    %v1682 = vadd.f32 0.0, %v1681
    %v1683 = vpop.f32.mrf.mxu0
    %v1684 = vadd.f32 0.0, %v1683
    %1685 = vmatprep.mubr.f32.mxu0 0.0
    %1686 = vmatmul.mubr.f32.gmra.mxu0 %v1602
    %v1687 = vpop.f32.mrf.mxu0
    %v1688 = vadd.f32 0.0, %v1687
    %v1689 = vpop.f32.mrf.mxu0
    %v1690 = vadd.f32 0.0, %v1689
    %1691 = vdwg.mxu0
    %1692 = vmatprep.subr.mxu0 0.0
    %1693 = vmatpush1.msra.mxu0 %v377
    %1694 = vmatprep.subr.mxu0 0.0
    %1695 = vmatpush1.msra.mxu0 %v374
    %1696 = vmatprep.subr.mxu0 0.0
    %1697 = vmatpush1.msra.mxu0 %v371
    %1698 = vmatprep.subr.mxu0 0.0
    %1699 = vmatpush1.msra.mxu0 %v368
    %1700 = vmatprep.subr.mxu0 0.0
    %1701 = vmatpush1.msra.mxu0 %v365
    %1702 = vmatprep.subr.mxu0 0.0
    %1703 = vmatpush1.msra.mxu0 %v362
    %1704 = vmatprep.subr.mxu0 0.0
    %1705 = vmatpush1.msra.mxu0 %v359
    %1706 = vmatprep.subr.mxu0 0.0
    %1707 = vmatpush1.msra.mxu0 %v356
    %1708 = vmatprep.subr.mxu0 0.0
    %1709 = vmatpush1.msra.mxu0 %v353
    %1710 = vmatprep.subr.mxu0 0.0
    %1711 = vmatpush1.msra.mxu0 %v350
    %1712 = vmatprep.subr.mxu0 0.0
    %1713 = vmatpush1.msra.mxu0 %v347
    %1714 = vmatprep.subr.mxu0 0.0
    %1715 = vmatpush1.msra.mxu0 %v344
    %1716 = vmatprep.subr.mxu0 0.0
    %1717 = vmatpush1.msra.mxu0 %v341
    %1718 = vmatprep.subr.mxu0 0.0
    %1719 = vmatpush1.msra.mxu0 %v338
    %1720 = vmatprep.subr.mxu0 0.0
    %1721 = vmatpush1.msra.mxu0 %v335
    %1722 = vmatprep.subr.mxu0 0.0
    %1723 = vmatpush1.msra.mxu0 %v332
    %1724 = vmatprep.subr.mxu0 0.0
    %1725 = vmatpush2.msra.mxu0 0.0
    %1726 = vmatprep.subr.mxu0 0.0
    %1727 = vmatpush2.msra.mxu0 0.0
    %1728 = vmatprep.subr.mxu0 0.0
    %1729 = vmatpush2.msra.mxu0 0.0
    %1730 = vmatprep.subr.mxu0 0.0
    %1731 = vmatpush2.msra.mxu0 0.0
    %1732 = vmatprep.subr.mxu0 0.0
    %1733 = vmatpush2.msra.mxu0 0.0
    %1734 = vmatprep.subr.mxu0 0.0
    %1735 = vmatpush2.msra.mxu0 0.0
    %1736 = vmatprep.subr.mxu0 0.0
    %1737 = vmatpush2.msra.mxu0 0.0
    %1738 = vmatprep.subr.mxu0 0.0
    %1739 = vmatpush2.msra.mxu0 0.0
    %1740 = vmatprep.subr.mxu0 0.0
    %1741 = vmatpush2.msra.mxu0 0.0
    %1742 = vmatprep.subr.mxu0 0.0
    %1743 = vmatpush2.msra.mxu0 0.0
    %1744 = vmatprep.subr.mxu0 0.0
    %1745 = vmatpush2.msra.mxu0 0.0
    %1746 = vmatprep.subr.mxu0 0.0
    %1747 = vmatpush2.msra.mxu0 0.0
    %1748 = vmatprep.subr.mxu0 0.0
    %1749 = vmatpush2.msra.mxu0 0.0
    %1750 = vmatprep.subr.mxu0 0.0
    %1751 = vmatpush2.msra.mxu0 0.0
    %1752 = vmatprep.subr.mxu0 0.0
    %1753 = vmatpush2.msra.mxu0 0.0
    %1754 = vmatprep.subr.mxu0 0.0
    %1755 = vmatpush2.msra.mxu0 0.0
    %1756 = vmatprep.mubr.f32.mxu0 0.0
    %1757 = vmatmul.mubr.f32.gmra.mxu0 %v1599
    %v1758 = vpop.f32.mrf.mxu0
    %v1759 = vadd.f32 0.0, %v1758
    %v1760 = vpop.f32.mrf.mxu0
    %1761 = vmatprep.mubr.f32.mxu0 0.0
    %1762 = vmatmul.mubr.f32.gmra.mxu0 %v1600
    %v1763 = vpop.f32.mrf.mxu0
    %v1764 = vadd.f32 0.0, %v1763
    %v1765 = vpop.f32.mrf.mxu0
    %1766 = vmatprep.mubr.f32.mxu0 0.0
    %1767 = vmatmul.mubr.f32.gmra.mxu0 %v1601
    %v1768 = vpop.f32.mrf.mxu0
    %v1769 = vadd.f32 0.0, %v1768
    %v1770 = vpop.f32.mrf.mxu0
    %1771 = vmatprep.mubr.f32.mxu0 0.0
    %1772 = vmatmul.mubr.f32.gmra.mxu0 %v1602
    %v1773 = vpop.f32.mrf.mxu0
    %v1774 = vadd.f32 0.0, %v1773
    %v1775 = vpop.f32.mrf.mxu0
    %1776 = vdwg.mxu0
    %1777 = vmatprep.subr.mxu0 0.0
    %1778 = vmatpush1.msra.mxu0 0.0
    %1779 = vmatprep.subr.mxu0 0.0
    %1780 = vmatpush1.msra.mxu0 0.0
    %1781 = vmatprep.subr.mxu0 0.0
    %1782 = vmatpush1.msra.mxu0 0.0
    %1783 = vmatprep.subr.mxu0 0.0
    %1784 = vmatpush1.msra.mxu0 0.0
    %1785 = vmatprep.subr.mxu0 0.0
    %1786 = vmatpush1.msra.mxu0 0.0
    %1787 = vmatprep.subr.mxu0 0.0
    %1788 = vmatpush1.msra.mxu0 0.0
    %1789 = vmatprep.subr.mxu0 0.0
    %1790 = vmatpush1.msra.mxu0 0.0
    %1791 = vmatprep.subr.mxu0 0.0
    %1792 = vmatpush1.msra.mxu0 0.0
    %1793 = vmatprep.subr.mxu0 0.0
    %1794 = vmatpush1.msra.mxu0 0.0
    %1795 = vmatprep.subr.mxu0 0.0
    %1796 = vmatpush1.msra.mxu0 0.0
    %1797 = vmatprep.subr.mxu0 0.0
    %1798 = vmatpush1.msra.mxu0 0.0
    %1799 = vmatprep.subr.mxu0 0.0
    %1800 = vmatpush1.msra.mxu0 0.0
    %1801 = vmatprep.subr.mxu0 %v1690
    %1802 = vmatpush1.msra.mxu0 %v1688
    %1803 = vmatprep.subr.mxu0 %v1684
    %1804 = vmatpush1.msra.mxu0 %v1682
    %1805 = vmatprep.subr.mxu0 %v1678
    %1806 = vmatpush1.msra.mxu0 %v1676
    %1807 = vmatprep.subr.mxu0 %v1672
    %1808 = vmatpush1.msra.mxu0 %v1670
    %1809 = vmatprep.subr.mxu0 0.0
    %1810 = vmatpush2.msra.mxu0 0.0
    %1811 = vmatprep.subr.mxu0 0.0
    %1812 = vmatpush2.msra.mxu0 0.0
    %1813 = vmatprep.subr.mxu0 0.0
    %1814 = vmatpush2.msra.mxu0 0.0
    %1815 = vmatprep.subr.mxu0 0.0
    %1816 = vmatpush2.msra.mxu0 0.0
    %1817 = vmatprep.subr.mxu0 0.0
    %1818 = vmatpush2.msra.mxu0 0.0
    %1819 = vmatprep.subr.mxu0 0.0
    %1820 = vmatpush2.msra.mxu0 0.0
    %1821 = vmatprep.subr.mxu0 0.0
    %1822 = vmatpush2.msra.mxu0 0.0
    %1823 = vmatprep.subr.mxu0 0.0
    %1824 = vmatpush2.msra.mxu0 0.0
    %1825 = vmatprep.subr.mxu0 0.0
    %1826 = vmatpush2.msra.mxu0 0.0
    %1827 = vmatprep.subr.mxu0 0.0
    %1828 = vmatpush2.msra.mxu0 0.0
    %1829 = vmatprep.subr.mxu0 0.0
    %1830 = vmatpush2.msra.mxu0 0.0
    %1831 = vmatprep.subr.mxu0 0.0
    %1832 = vmatpush2.msra.mxu0 0.0
    %1833 = vmatprep.subr.mxu0 0.0
    %1834 = vmatpush2.msra.mxu0 0.0
    %1835 = vmatprep.subr.mxu0 0.0
    %1836 = vmatpush2.msra.mxu0 0.0
    %1837 = vmatprep.subr.mxu0 0.0
    %1838 = vmatpush2.msra.mxu0 0.0
    %1839 = vmatprep.subr.mxu0 0.0
    %1840 = vmatpush2.msra.mxu0 0.0
    %1841 = vmatprep.mubr.f32.mxu0 0.0
    %1842 = vmatmul.mubr.f32.gmra.mxu0 %v554
    %v1843 = vpop.f32.mrf.mxu0
    %v1844 = vadd.f32 0.0, %v1843
    %v1845 = vpop.f32.mrf.mxu0
    %v1846 = vadd.f32 0.0, %v1845
    %1847 = vmatprep.mubr.f32.mxu0 0.0
    %1848 = vmatmul.mubr.f32.gmra.mxu0 %v557
    %v1849 = vpop.f32.mrf.mxu0
    %v1850 = vadd.f32 0.0, %v1849
    %v1851 = vpop.f32.mrf.mxu0
    %v1852 = vadd.f32 0.0, %v1851
    %1853 = vmatprep.mubr.f32.mxu0 0.0
    %1854 = vmatmul.mubr.f32.gmra.mxu0 %v560
    %v1855 = vpop.f32.mrf.mxu0
    %v1856 = vadd.f32 0.0, %v1855
    %v1857 = vpop.f32.mrf.mxu0
    %v1858 = vadd.f32 0.0, %v1857
    %1859 = vmatprep.mubr.f32.mxu0 0.0
    %1860 = vmatmul.mubr.f32.gmra.mxu0 %v563
    %v1861 = vpop.f32.mrf.mxu0
    %v1862 = vadd.f32 0.0, %v1861
    %v1863 = vpop.f32.mrf.mxu0
    %v1864 = vadd.f32 0.0, %v1863
    %1865 = vdwg.mxu0
    %1866 = vmatprep.subr.mxu0 0.0
    %1867 = vmatpush1.msra.mxu0 0.0
    %1868 = vmatprep.subr.mxu0 0.0
    %1869 = vmatpush1.msra.mxu0 0.0
    %1870 = vmatprep.subr.mxu0 0.0
    %1871 = vmatpush1.msra.mxu0 0.0
    %1872 = vmatprep.subr.mxu0 0.0
    %1873 = vmatpush1.msra.mxu0 0.0
    %1874 = vmatprep.subr.mxu0 0.0
    %1875 = vmatpush1.msra.mxu0 0.0
    %1876 = vmatprep.subr.mxu0 0.0
    %1877 = vmatpush1.msra.mxu0 0.0
    %1878 = vmatprep.subr.mxu0 0.0
    %1879 = vmatpush1.msra.mxu0 0.0
    %1880 = vmatprep.subr.mxu0 0.0
    %1881 = vmatpush1.msra.mxu0 0.0
    %1882 = vmatprep.subr.mxu0 0.0
    %1883 = vmatpush1.msra.mxu0 0.0
    %1884 = vmatprep.subr.mxu0 0.0
    %1885 = vmatpush1.msra.mxu0 0.0
    %1886 = vmatprep.subr.mxu0 0.0
    %1887 = vmatpush1.msra.mxu0 0.0
    %1888 = vmatprep.subr.mxu0 0.0
    %1889 = vmatpush1.msra.mxu0 0.0
    %1890 = vmatprep.subr.mxu0 0.0
    %1891 = vmatpush1.msra.mxu0 %v1774
    %1892 = vmatprep.subr.mxu0 0.0
    %1893 = vmatpush1.msra.mxu0 %v1769
    %1894 = vmatprep.subr.mxu0 0.0
    %1895 = vmatpush1.msra.mxu0 %v1764
    %1896 = vmatprep.subr.mxu0 0.0
    %1897 = vmatpush1.msra.mxu0 %v1759
    %1898 = vmatprep.subr.mxu0 0.0
    %1899 = vmatpush2.msra.mxu0 0.0
    %1900 = vmatprep.subr.mxu0 0.0
    %1901 = vmatpush2.msra.mxu0 0.0
    %1902 = vmatprep.subr.mxu0 0.0
    %1903 = vmatpush2.msra.mxu0 0.0
    %1904 = vmatprep.subr.mxu0 0.0
    %1905 = vmatpush2.msra.mxu0 0.0
    %1906 = vmatprep.subr.mxu0 0.0
    %1907 = vmatpush2.msra.mxu0 0.0
    %1908 = vmatprep.subr.mxu0 0.0
    %1909 = vmatpush2.msra.mxu0 0.0
    %1910 = vmatprep.subr.mxu0 0.0
    %1911 = vmatpush2.msra.mxu0 0.0
    %1912 = vmatprep.subr.mxu0 0.0
    %1913 = vmatpush2.msra.mxu0 0.0
    %1914 = vmatprep.subr.mxu0 0.0
    %1915 = vmatpush2.msra.mxu0 0.0
    %1916 = vmatprep.subr.mxu0 0.0
    %1917 = vmatpush2.msra.mxu0 0.0
    %1918 = vmatprep.subr.mxu0 0.0
    %1919 = vmatpush2.msra.mxu0 0.0
    %1920 = vmatprep.subr.mxu0 0.0
    %1921 = vmatpush2.msra.mxu0 0.0
    %1922 = vmatprep.subr.mxu0 0.0
    %1923 = vmatpush2.msra.mxu0 0.0
    %1924 = vmatprep.subr.mxu0 0.0
    %1925 = vmatpush2.msra.mxu0 0.0
    %1926 = vmatprep.subr.mxu0 0.0
    %1927 = vmatpush2.msra.mxu0 0.0
    %1928 = vmatprep.subr.mxu0 0.0
    %1929 = vmatpush2.msra.mxu0 0.0
    %1930 = vmatprep.mubr.f32.mxu0 0.0
    %1931 = vmatmul.mubr.f32.gmra.mxu0 %v554
    %v1932 = vpop.f32.mrf.mxu0
    %v1933 = vadd.f32 0.0, %v1932
    %v1934 = vpop.f32.mrf.mxu0
    %1935 = vmatprep.mubr.f32.mxu0 0.0
    %1936 = vmatmul.mubr.f32.gmra.mxu0 %v557
    %v1937 = vpop.f32.mrf.mxu0
    %v1938 = vadd.f32 0.0, %v1937
    %v1939 = vpop.f32.mrf.mxu0
    %1940 = vmatprep.mubr.f32.mxu0 0.0
    %1941 = vmatmul.mubr.f32.gmra.mxu0 %v560
    %v1942 = vpop.f32.mrf.mxu0
    %v1943 = vadd.f32 0.0, %v1942
    %v1944 = vpop.f32.mrf.mxu0
    %1945 = vmatprep.mubr.f32.mxu0 0.0
    %1946 = vmatmul.mubr.f32.gmra.mxu0 %v563
    %v1947 = vpop.f32.mrf.mxu0
    %v1948 = vadd.f32 0.0, %v1947
    %v1949 = vpop.f32.mrf.mxu0
    %1950 = vdwg.mxu0
    %1951 = vmatprep.subr.mxu0 %v327
    %1952 = vmatpush1.msra.mxu0 %v326
    %1953 = vmatprep.subr.mxu0 %v324
    %1954 = vmatpush1.msra.mxu0 %v323
    %1955 = vmatprep.subr.mxu0 %v321
    %1956 = vmatpush1.msra.mxu0 %v320
    %1957 = vmatprep.subr.mxu0 %v318
    %1958 = vmatpush1.msra.mxu0 %v317
    %1959 = vmatprep.subr.mxu0 %v315
    %1960 = vmatpush1.msra.mxu0 %v314
    %1961 = vmatprep.subr.mxu0 %v312
    %1962 = vmatpush1.msra.mxu0 %v311
    %1963 = vmatprep.subr.mxu0 %v309
    %1964 = vmatpush1.msra.mxu0 %v308
    %1965 = vmatprep.subr.mxu0 %v306
    %1966 = vmatpush1.msra.mxu0 %v305
    %1967 = vmatprep.subr.mxu0 %v303
    %1968 = vmatpush1.msra.mxu0 %v302
    %1969 = vmatprep.subr.mxu0 %v300
    %1970 = vmatpush1.msra.mxu0 %v299
    %1971 = vmatprep.subr.mxu0 %v297
    %1972 = vmatpush1.msra.mxu0 %v296
    %1973 = vmatprep.subr.mxu0 %v294
    %1974 = vmatpush1.msra.mxu0 %v293
    %1975 = vmatprep.subr.mxu0 %v291
    %1976 = vmatpush1.msra.mxu0 %v290
    %1977 = vmatprep.subr.mxu0 %v288
    %1978 = vmatpush1.msra.mxu0 %v287
    %1979 = vmatprep.subr.mxu0 %v285
    %1980 = vmatpush1.msra.mxu0 %v284
    %1981 = vmatprep.subr.mxu0 %v282
    %1982 = vmatpush1.msra.mxu0 %v281
    %1983 = vmatprep.subr.mxu0 0.0
    %1984 = vmatpush2.msra.mxu0 0.0
    %1985 = vmatprep.subr.mxu0 0.0
    %1986 = vmatpush2.msra.mxu0 0.0
    %1987 = vmatprep.subr.mxu0 0.0
    %1988 = vmatpush2.msra.mxu0 0.0
    %1989 = vmatprep.subr.mxu0 0.0
    %1990 = vmatpush2.msra.mxu0 0.0
    %1991 = vmatprep.subr.mxu0 0.0
    %1992 = vmatpush2.msra.mxu0 0.0
    %1993 = vmatprep.subr.mxu0 0.0
    %1994 = vmatpush2.msra.mxu0 0.0
    %1995 = vmatprep.subr.mxu0 0.0
    %1996 = vmatpush2.msra.mxu0 0.0
    %1997 = vmatprep.subr.mxu0 0.0
    %1998 = vmatpush2.msra.mxu0 0.0
    %1999 = vmatprep.subr.mxu0 0.0
    %2000 = vmatpush2.msra.mxu0 0.0
    %2001 = vmatprep.subr.mxu0 0.0
    %2002 = vmatpush2.msra.mxu0 0.0
    %2003 = vmatprep.subr.mxu0 0.0
    %2004 = vmatpush2.msra.mxu0 0.0
    %2005 = vmatprep.subr.mxu0 0.0
    %2006 = vmatpush2.msra.mxu0 0.0
    %2007 = vmatprep.subr.mxu0 0.0
    %2008 = vmatpush2.msra.mxu0 0.0
    %2009 = vmatprep.subr.mxu0 0.0
    %2010 = vmatpush2.msra.mxu0 0.0
    %2011 = vmatprep.subr.mxu0 0.0
    %2012 = vmatpush2.msra.mxu0 0.0
    %2013 = vmatprep.subr.mxu0 0.0
    %2014 = vmatpush2.msra.mxu0 0.0
    %2015 = vmatprep.mubr.f32.mxu0 0.0
    %2016 = vmatmul.mubr.f32.gmra.mxu0 %v1599
    %v2017 = vpop.f32.mrf.mxu0
    %v2018 = vadd.f32 %v1844, %v2017
    %v2019 = vpop.f32.mrf.mxu0
    %v2020 = vadd.f32 %v1846, %v2019
    %2021 = vmatprep.mubr.f32.mxu0 0.0
    %2022 = vmatmul.mubr.f32.gmra.mxu0 %v1600
    %v2023 = vpop.f32.mrf.mxu0
    %v2024 = vadd.f32 %v1850, %v2023
    %v2025 = vpop.f32.mrf.mxu0
    %v2026 = vadd.f32 %v1852, %v2025
    %2027 = vmatprep.mubr.f32.mxu0 0.0
    %2028 = vmatmul.mubr.f32.gmra.mxu0 %v1601
    %v2029 = vpop.f32.mrf.mxu0
    %v2030 = vadd.f32 %v1856, %v2029
    %v2031 = vpop.f32.mrf.mxu0
    %v2032 = vadd.f32 %v1858, %v2031
    %2033 = vmatprep.mubr.f32.mxu0 0.0
    %2034 = vmatmul.mubr.f32.gmra.mxu0 %v1602
    %v2035 = vpop.f32.mrf.mxu0
    %v2036 = vadd.f32 %v1862, %v2035
    %v2037 = vpop.f32.mrf.mxu0
    %v2038 = vadd.f32 %v1864, %v2037
    %2039 = vdwg.mxu0
    %2040 = vmatprep.subr.mxu0 0.0
    %2041 = vmatpush1.msra.mxu0 %v328
    %2042 = vmatprep.subr.mxu0 0.0
    %2043 = vmatpush1.msra.mxu0 %v325
    %2044 = vmatprep.subr.mxu0 0.0
    %2045 = vmatpush1.msra.mxu0 %v322
    %2046 = vmatprep.subr.mxu0 0.0
    %2047 = vmatpush1.msra.mxu0 %v319
    %2048 = vmatprep.subr.mxu0 0.0
    %2049 = vmatpush1.msra.mxu0 %v316
    %2050 = vmatprep.subr.mxu0 0.0
    %2051 = vmatpush1.msra.mxu0 %v313
    %2052 = vmatprep.subr.mxu0 0.0
    %2053 = vmatpush1.msra.mxu0 %v310
    %2054 = vmatprep.subr.mxu0 0.0
    %2055 = vmatpush1.msra.mxu0 %v307
    %2056 = vmatprep.subr.mxu0 0.0
    %2057 = vmatpush1.msra.mxu0 %v304
    %2058 = vmatprep.subr.mxu0 0.0
    %2059 = vmatpush1.msra.mxu0 %v301
    %2060 = vmatprep.subr.mxu0 0.0
    %2061 = vmatpush1.msra.mxu0 %v298
    %2062 = vmatprep.subr.mxu0 0.0
    %2063 = vmatpush1.msra.mxu0 %v295
    %2064 = vmatprep.subr.mxu0 0.0
    %2065 = vmatpush1.msra.mxu0 %v292
    %2066 = vmatprep.subr.mxu0 0.0
    %2067 = vmatpush1.msra.mxu0 %v289
    %2068 = vmatprep.subr.mxu0 0.0
    %2069 = vmatpush1.msra.mxu0 %v286
    %2070 = vmatprep.subr.mxu0 0.0
    %2071 = vmatpush1.msra.mxu0 %v283
    %2072 = vmatprep.subr.mxu0 0.0
    %2073 = vmatpush2.msra.mxu0 0.0
    %2074 = vmatprep.subr.mxu0 0.0
    %2075 = vmatpush2.msra.mxu0 0.0
    %2076 = vmatprep.subr.mxu0 0.0
    %2077 = vmatpush2.msra.mxu0 0.0
    %2078 = vmatprep.subr.mxu0 0.0
    %2079 = vmatpush2.msra.mxu0 0.0
    %2080 = vmatprep.subr.mxu0 0.0
    %2081 = vmatpush2.msra.mxu0 0.0
    %2082 = vmatprep.subr.mxu0 0.0
    %2083 = vmatpush2.msra.mxu0 0.0
    %2084 = vmatprep.subr.mxu0 0.0
    %2085 = vmatpush2.msra.mxu0 0.0
    %2086 = vmatprep.subr.mxu0 0.0
    %2087 = vmatpush2.msra.mxu0 0.0
    %2088 = vmatprep.subr.mxu0 0.0
    %2089 = vmatpush2.msra.mxu0 0.0
    %2090 = vmatprep.subr.mxu0 0.0
    %2091 = vmatpush2.msra.mxu0 0.0
    %2092 = vmatprep.subr.mxu0 0.0
    %2093 = vmatpush2.msra.mxu0 0.0
    %2094 = vmatprep.subr.mxu0 0.0
    %2095 = vmatpush2.msra.mxu0 0.0
    %2096 = vmatprep.subr.mxu0 0.0
    %2097 = vmatpush2.msra.mxu0 0.0
    %2098 = vmatprep.subr.mxu0 0.0
    %2099 = vmatpush2.msra.mxu0 0.0
    %2100 = vmatprep.subr.mxu0 0.0
    %2101 = vmatpush2.msra.mxu0 0.0
    %2102 = vmatprep.subr.mxu0 0.0
    %2103 = vmatpush2.msra.mxu0 0.0
    %2104 = vmatprep.mubr.f32.mxu0 0.0
    %2105 = vmatmul.mubr.f32.gmra.mxu0 %v1599
    %v2106 = vpop.f32.mrf.mxu0
    %v2107 = vadd.f32 %v1933, %v2106
    %v2108 = vpop.f32.mrf.mxu0
    %2109 = vmatprep.mubr.f32.mxu0 0.0
    %2110 = vmatmul.mubr.f32.gmra.mxu0 %v1600
    %v2111 = vpop.f32.mrf.mxu0
    %v2112 = vadd.f32 %v1938, %v2111
    %v2113 = vpop.f32.mrf.mxu0
    %2114 = vmatprep.mubr.f32.mxu0 0.0
    %2115 = vmatmul.mubr.f32.gmra.mxu0 %v1601
    %v2116 = vpop.f32.mrf.mxu0
    %v2117 = vadd.f32 %v1943, %v2116
    %v2118 = vpop.f32.mrf.mxu0
    %2119 = vmatprep.mubr.f32.mxu0 0.0
    %2120 = vmatmul.mubr.f32.gmra.mxu0 %v1602
    %v2121 = vpop.f32.mrf.mxu0
    %v2122 = vadd.f32 %v1948, %v2121
    %v2123 = vpop.f32.mrf.mxu0
    %2124 = vdwg.mxu0
    %v2125 = vadd.f32 %v174, %v2018
    %v2126 = vadd.f32 %v180, %v2024
    %v2127 = vadd.f32 %v186, %v2030
    %v2128 = vadd.f32 %v192, %v2036
    %v2129 = vxor.u32 %v2125, 2147483648
    %v2130 = vxor.u32 %v2126, 2147483648
    %v2131 = vxor.u32 %v2127, 2147483648
    %v2132 = vxor.u32 %v2128, 2147483648
    %v2133 = vmul.f32 %v2129, 1.442695
    %v2134 = vpow.pop %v2133
    %v2135 = vmul.f32 %v2130, 1.442695
    %v2136 = vpow.pop %v2135
    %v2137 = vmul.f32 %v2131, 1.442695
    %v2138 = vpow.pop %v2137
    %v2139 = vmul.f32 %v2132, 1.442695
    %v2140 = vpow.pop %v2139
    %v2141 = vadd.f32 %v2134, 1.0
    %v2142 = vadd.f32 %v2136, 1.0
    %v2143 = vadd.f32 %v2138, 1.0
    %v2144 = vadd.f32 %v2140, 1.0
    %v2145 = vrcp.pop %v2141
    %v2146 = vmul.f32 1.0, %v2145
    %v2147 = vrcp.pop %v2142
    %v2148 = vmul.f32 1.0, %v2147
    %v2149 = vrcp.pop %v2143
    %v2150 = vmul.f32 1.0, %v2149
    %v2151 = vrcp.pop %v2144
    %v2152 = vmul.f32 1.0, %v2151
    %v2153 = vadd.f32 %v176, %v2020
    %v2154 = vadd.f32 %v182, %v2026
    %v2155 = vadd.f32 %v188, %v2032
    %v2156 = vadd.f32 %v194, %v2038
    %v2157 = vxor.u32 %v2153, 2147483648
    %v2158 = vxor.u32 %v2154, 2147483648
    %v2159 = vxor.u32 %v2155, 2147483648
    %v2160 = vxor.u32 %v2156, 2147483648
    %v2161 = vmul.f32 %v2157, 1.442695
    %v2162 = vpow.pop %v2161
    %v2163 = vmul.f32 %v2158, 1.442695
    %v2164 = vpow.pop %v2163
    %v2165 = vmul.f32 %v2159, 1.442695
    %v2166 = vpow.pop %v2165
    %v2167 = vmul.f32 %v2160, 1.442695
    %v2168 = vpow.pop %v2167
    %v2169 = vadd.f32 %v2162, 1.0
    %v2170 = vadd.f32 %v2164, 1.0
    %v2171 = vadd.f32 %v2166, 1.0
    %v2172 = vadd.f32 %v2168, 1.0
    %v2173 = vrcp.pop %v2169
    %v2174 = vmul.f32 1.0, %v2173
    %v2175 = vrcp.pop %v2170
    %v2176 = vmul.f32 1.0, %v2175
    %v2177 = vrcp.pop %v2171
    %v2178 = vmul.f32 1.0, %v2177
    %v2179 = vrcp.pop %v2172
    %v2180 = vmul.f32 1.0, %v2179
    %v2181 = vmul.f32 %v2146, %v2107
    %v2182 = vmul.f32 %v2148, %v2112
    %v2183 = vmul.f32 %v2150, %v2117
    %v2184 = vmul.f32 %v2152, %v2122
    %v2185 = vadd.f32 %v263, %v2181
    %v2186 = vadd.f32 %v268, %v2182
    %v2187 = vadd.f32 %v273, %v2183
    %v2188 = vadd.f32 %v278, %v2184
    %v2189 = vtanh.pop %v2185
    %v2190 = vtanh.pop %v2186
    %v2191 = vtanh.pop %v2187
    %v2192 = vtanh.pop %v2188
    %v2193 = vsub.f32 1.0, %v2174
    %v2194 = vsub.f32 1.0, %v2176
    %v2195 = vsub.f32 1.0, %v2178
    %v2196 = vsub.f32 1.0, %v2180
    %v2197 = vmul.f32 %v2193, %v2189
    %v2198 = vmul.f32 %v2194, %v2190
    %v2199 = vmul.f32 %v2195, %v2191
    %v2200 = vmul.f32 %v2196, %v2192
    %v2201 = vmul.f32 %v2174, %v1599
    %v2202 = vmul.f32 %v2176, %v1600
    %v2203 = vmul.f32 %v2178, %v1601
    %v2204 = vmul.f32 %v2180, %v1602
    %v2205 = vadd.f32 %v2197, %v2201
    %v2206 = vadd.f32 %v2198, %v2202
    %v2207 = vadd.f32 %v2199, %v2203
    %v2208 = vadd.f32 %v2200, %v2204
    %2209 = vmatprep.subr.mxu0 %v376
    %2210 = vmatpush1.msra.mxu0 %v375
    %2211 = vmatprep.subr.mxu0 %v373
    %2212 = vmatpush1.msra.mxu0 %v372
    %2213 = vmatprep.subr.mxu0 %v370
    %2214 = vmatpush1.msra.mxu0 %v369
    %2215 = vmatprep.subr.mxu0 %v367
    %2216 = vmatpush1.msra.mxu0 %v366
    %2217 = vmatprep.subr.mxu0 %v364
    %2218 = vmatpush1.msra.mxu0 %v363
    %2219 = vmatprep.subr.mxu0 %v361
    %2220 = vmatpush1.msra.mxu0 %v360
    %2221 = vmatprep.subr.mxu0 %v358
    %2222 = vmatpush1.msra.mxu0 %v357
    %2223 = vmatprep.subr.mxu0 %v355
    %2224 = vmatpush1.msra.mxu0 %v354
    %2225 = vmatprep.subr.mxu0 %v352
    %2226 = vmatpush1.msra.mxu0 %v351
    %2227 = vmatprep.subr.mxu0 %v349
    %2228 = vmatpush1.msra.mxu0 %v348
    %2229 = vmatprep.subr.mxu0 %v346
    %2230 = vmatpush1.msra.mxu0 %v345
    %2231 = vmatprep.subr.mxu0 %v343
    %2232 = vmatpush1.msra.mxu0 %v342
    %2233 = vmatprep.subr.mxu0 %v340
    %2234 = vmatpush1.msra.mxu0 %v339
    %2235 = vmatprep.subr.mxu0 %v337
    %2236 = vmatpush1.msra.mxu0 %v336
    %2237 = vmatprep.subr.mxu0 %v334
    %2238 = vmatpush1.msra.mxu0 %v333
    %2239 = vmatprep.subr.mxu0 %v331
    %2240 = vmatpush1.msra.mxu0 %v330
    %2241 = vmatprep.subr.mxu0 0.0
    %2242 = vmatpush2.msra.mxu0 0.0
    %2243 = vmatprep.subr.mxu0 0.0
    %2244 = vmatpush2.msra.mxu0 0.0
    %2245 = vmatprep.subr.mxu0 0.0
    %2246 = vmatpush2.msra.mxu0 0.0
    %2247 = vmatprep.subr.mxu0 0.0
    %2248 = vmatpush2.msra.mxu0 0.0
    %2249 = vmatprep.subr.mxu0 0.0
    %2250 = vmatpush2.msra.mxu0 0.0
    %2251 = vmatprep.subr.mxu0 0.0
    %2252 = vmatpush2.msra.mxu0 0.0
    %2253 = vmatprep.subr.mxu0 0.0
    %2254 = vmatpush2.msra.mxu0 0.0
    %2255 = vmatprep.subr.mxu0 0.0
    %2256 = vmatpush2.msra.mxu0 0.0
    %2257 = vmatprep.subr.mxu0 0.0
    %2258 = vmatpush2.msra.mxu0 0.0
    %2259 = vmatprep.subr.mxu0 0.0
    %2260 = vmatpush2.msra.mxu0 0.0
    %2261 = vmatprep.subr.mxu0 0.0
    %2262 = vmatpush2.msra.mxu0 0.0
    %2263 = vmatprep.subr.mxu0 0.0
    %2264 = vmatpush2.msra.mxu0 0.0
    %2265 = vmatprep.subr.mxu0 0.0
    %2266 = vmatpush2.msra.mxu0 0.0
    %2267 = vmatprep.subr.mxu0 0.0
    %2268 = vmatpush2.msra.mxu0 0.0
    %2269 = vmatprep.subr.mxu0 0.0
    %2270 = vmatpush2.msra.mxu0 0.0
    %2271 = vmatprep.subr.mxu0 0.0
    %2272 = vmatpush2.msra.mxu0 0.0
    %2273 = vmatprep.mubr.f32.mxu0 0.0
    %2274 = vmatmul.mubr.f32.gmra.mxu0 %v2205
    %v2275 = vpop.f32.mrf.mxu0
    %v2276 = vadd.f32 0.0, %v2275
    %v2277 = vpop.f32.mrf.mxu0
    %v2278 = vadd.f32 0.0, %v2277
    %2279 = vmatprep.mubr.f32.mxu0 0.0
    %2280 = vmatmul.mubr.f32.gmra.mxu0 %v2206
    %v2281 = vpop.f32.mrf.mxu0
    %v2282 = vadd.f32 0.0, %v2281
    %v2283 = vpop.f32.mrf.mxu0
    %v2284 = vadd.f32 0.0, %v2283
    %2285 = vmatprep.mubr.f32.mxu0 0.0
    %2286 = vmatmul.mubr.f32.gmra.mxu0 %v2207
    %v2287 = vpop.f32.mrf.mxu0
    %v2288 = vadd.f32 0.0, %v2287
    %v2289 = vpop.f32.mrf.mxu0
    %v2290 = vadd.f32 0.0, %v2289
    %2291 = vmatprep.mubr.f32.mxu0 0.0
    %2292 = vmatmul.mubr.f32.gmra.mxu0 %v2208
    %v2293 = vpop.f32.mrf.mxu0
    %v2294 = vadd.f32 0.0, %v2293
    %v2295 = vpop.f32.mrf.mxu0
    %v2296 = vadd.f32 0.0, %v2295
    %2297 = vdwg.mxu0
    %2298 = vmatprep.subr.mxu0 0.0
    %2299 = vmatpush1.msra.mxu0 %v377
    %2300 = vmatprep.subr.mxu0 0.0
    %2301 = vmatpush1.msra.mxu0 %v374
    %2302 = vmatprep.subr.mxu0 0.0
    %2303 = vmatpush1.msra.mxu0 %v371
    %2304 = vmatprep.subr.mxu0 0.0
    %2305 = vmatpush1.msra.mxu0 %v368
    %2306 = vmatprep.subr.mxu0 0.0
    %2307 = vmatpush1.msra.mxu0 %v365
    %2308 = vmatprep.subr.mxu0 0.0
    %2309 = vmatpush1.msra.mxu0 %v362
    %2310 = vmatprep.subr.mxu0 0.0
    %2311 = vmatpush1.msra.mxu0 %v359
    %2312 = vmatprep.subr.mxu0 0.0
    %2313 = vmatpush1.msra.mxu0 %v356
    %2314 = vmatprep.subr.mxu0 0.0
    %2315 = vmatpush1.msra.mxu0 %v353
    %2316 = vmatprep.subr.mxu0 0.0
    %2317 = vmatpush1.msra.mxu0 %v350
    %2318 = vmatprep.subr.mxu0 0.0
    %2319 = vmatpush1.msra.mxu0 %v347
    %2320 = vmatprep.subr.mxu0 0.0
    %2321 = vmatpush1.msra.mxu0 %v344
    %2322 = vmatprep.subr.mxu0 0.0
    %2323 = vmatpush1.msra.mxu0 %v341
    %2324 = vmatprep.subr.mxu0 0.0
    %2325 = vmatpush1.msra.mxu0 %v338
    %2326 = vmatprep.subr.mxu0 0.0
    %2327 = vmatpush1.msra.mxu0 %v335
    %2328 = vmatprep.subr.mxu0 0.0
    %2329 = vmatpush1.msra.mxu0 %v332
    %2330 = vmatprep.subr.mxu0 0.0
    %2331 = vmatpush2.msra.mxu0 0.0
    %2332 = vmatprep.subr.mxu0 0.0
    %2333 = vmatpush2.msra.mxu0 0.0
    %2334 = vmatprep.subr.mxu0 0.0
    %2335 = vmatpush2.msra.mxu0 0.0
    %2336 = vmatprep.subr.mxu0 0.0
    %2337 = vmatpush2.msra.mxu0 0.0
    %2338 = vmatprep.subr.mxu0 0.0
    %2339 = vmatpush2.msra.mxu0 0.0
    %2340 = vmatprep.subr.mxu0 0.0
    %2341 = vmatpush2.msra.mxu0 0.0
    %2342 = vmatprep.subr.mxu0 0.0
    %2343 = vmatpush2.msra.mxu0 0.0
    %2344 = vmatprep.subr.mxu0 0.0
    %2345 = vmatpush2.msra.mxu0 0.0
    %2346 = vmatprep.subr.mxu0 0.0
    %2347 = vmatpush2.msra.mxu0 0.0
    %2348 = vmatprep.subr.mxu0 0.0
    %2349 = vmatpush2.msra.mxu0 0.0
    %2350 = vmatprep.subr.mxu0 0.0
    %2351 = vmatpush2.msra.mxu0 0.0
    %2352 = vmatprep.subr.mxu0 0.0
    %2353 = vmatpush2.msra.mxu0 0.0
    %2354 = vmatprep.subr.mxu0 0.0
    %2355 = vmatpush2.msra.mxu0 0.0
    %2356 = vmatprep.subr.mxu0 0.0
    %2357 = vmatpush2.msra.mxu0 0.0
    %2358 = vmatprep.subr.mxu0 0.0
    %2359 = vmatpush2.msra.mxu0 0.0
    %2360 = vmatprep.subr.mxu0 0.0
    %2361 = vmatpush2.msra.mxu0 0.0
    %2362 = vmatprep.mubr.f32.mxu0 0.0
    %2363 = vmatmul.mubr.f32.gmra.mxu0 %v2205
    %v2364 = vpop.f32.mrf.mxu0
    %v2365 = vadd.f32 0.0, %v2364
    %v2366 = vpop.f32.mrf.mxu0
    %2367 = vmatprep.mubr.f32.mxu0 0.0
    %2368 = vmatmul.mubr.f32.gmra.mxu0 %v2206
    %v2369 = vpop.f32.mrf.mxu0
    %v2370 = vadd.f32 0.0, %v2369
    %v2371 = vpop.f32.mrf.mxu0
    %2372 = vmatprep.mubr.f32.mxu0 0.0
    %2373 = vmatmul.mubr.f32.gmra.mxu0 %v2207
    %v2374 = vpop.f32.mrf.mxu0
    %v2375 = vadd.f32 0.0, %v2374
    %v2376 = vpop.f32.mrf.mxu0
    %2377 = vmatprep.mubr.f32.mxu0 0.0
    %2378 = vmatmul.mubr.f32.gmra.mxu0 %v2208
    %v2379 = vpop.f32.mrf.mxu0
    %v2380 = vadd.f32 0.0, %v2379
    %v2381 = vpop.f32.mrf.mxu0
    %2382 = vdwg.mxu0
    %2383 = vmatprep.subr.mxu0 0.0
    %2384 = vmatpush1.msra.mxu0 0.0
    %2385 = vmatprep.subr.mxu0 0.0
    %2386 = vmatpush1.msra.mxu0 0.0
    %2387 = vmatprep.subr.mxu0 0.0
    %2388 = vmatpush1.msra.mxu0 0.0
    %2389 = vmatprep.subr.mxu0 0.0
    %2390 = vmatpush1.msra.mxu0 0.0
    %2391 = vmatprep.subr.mxu0 0.0
    %2392 = vmatpush1.msra.mxu0 0.0
    %2393 = vmatprep.subr.mxu0 0.0
    %2394 = vmatpush1.msra.mxu0 0.0
    %2395 = vmatprep.subr.mxu0 0.0
    %2396 = vmatpush1.msra.mxu0 0.0
    %2397 = vmatprep.subr.mxu0 0.0
    %2398 = vmatpush1.msra.mxu0 0.0
    %2399 = vmatprep.subr.mxu0 0.0
    %2400 = vmatpush1.msra.mxu0 0.0
    %2401 = vmatprep.subr.mxu0 0.0
    %2402 = vmatpush1.msra.mxu0 0.0
    %2403 = vmatprep.subr.mxu0 0.0
    %2404 = vmatpush1.msra.mxu0 0.0
    %2405 = vmatprep.subr.mxu0 0.0
    %2406 = vmatpush1.msra.mxu0 0.0
    %2407 = vmatprep.subr.mxu0 %v2296
    %2408 = vmatpush1.msra.mxu0 %v2294
    %2409 = vmatprep.subr.mxu0 %v2290
    %2410 = vmatpush1.msra.mxu0 %v2288
    %2411 = vmatprep.subr.mxu0 %v2284
    %2412 = vmatpush1.msra.mxu0 %v2282
    %2413 = vmatprep.subr.mxu0 %v2278
    %2414 = vmatpush1.msra.mxu0 %v2276
    %2415 = vmatprep.subr.mxu0 0.0
    %2416 = vmatpush2.msra.mxu0 0.0
    %2417 = vmatprep.subr.mxu0 0.0
    %2418 = vmatpush2.msra.mxu0 0.0
    %2419 = vmatprep.subr.mxu0 0.0
    %2420 = vmatpush2.msra.mxu0 0.0
    %2421 = vmatprep.subr.mxu0 0.0
    %2422 = vmatpush2.msra.mxu0 0.0
    %2423 = vmatprep.subr.mxu0 0.0
    %2424 = vmatpush2.msra.mxu0 0.0
    %2425 = vmatprep.subr.mxu0 0.0
    %2426 = vmatpush2.msra.mxu0 0.0
    %2427 = vmatprep.subr.mxu0 0.0
    %2428 = vmatpush2.msra.mxu0 0.0
    %2429 = vmatprep.subr.mxu0 0.0
    %2430 = vmatpush2.msra.mxu0 0.0
    %2431 = vmatprep.subr.mxu0 0.0
    %2432 = vmatpush2.msra.mxu0 0.0
    %2433 = vmatprep.subr.mxu0 0.0
    %2434 = vmatpush2.msra.mxu0 0.0
    %2435 = vmatprep.subr.mxu0 0.0
    %2436 = vmatpush2.msra.mxu0 0.0
    %2437 = vmatprep.subr.mxu0 0.0
    %2438 = vmatpush2.msra.mxu0 0.0
    %2439 = vmatprep.subr.mxu0 0.0
    %2440 = vmatpush2.msra.mxu0 0.0
    %2441 = vmatprep.subr.mxu0 0.0
    %2442 = vmatpush2.msra.mxu0 0.0
    %2443 = vmatprep.subr.mxu0 0.0
    %2444 = vmatpush2.msra.mxu0 0.0
    %2445 = vmatprep.subr.mxu0 0.0
    %2446 = vmatpush2.msra.mxu0 0.0
    %2447 = vmatprep.mubr.f32.mxu0 0.0
    %2448 = vmatmul.mubr.f32.gmra.mxu0 %v554
    %v2449 = vpop.f32.mrf.mxu0
    %v2450 = vadd.f32 0.0, %v2449
    %v2451 = vpop.f32.mrf.mxu0
    %v2452 = vadd.f32 0.0, %v2451
    %2453 = vmatprep.mubr.f32.mxu0 0.0
    %2454 = vmatmul.mubr.f32.gmra.mxu0 %v557
    %v2455 = vpop.f32.mrf.mxu0
    %v2456 = vadd.f32 0.0, %v2455
    %v2457 = vpop.f32.mrf.mxu0
    %v2458 = vadd.f32 0.0, %v2457
    %2459 = vmatprep.mubr.f32.mxu0 0.0
    %2460 = vmatmul.mubr.f32.gmra.mxu0 %v560
    %v2461 = vpop.f32.mrf.mxu0
    %v2462 = vadd.f32 0.0, %v2461
    %v2463 = vpop.f32.mrf.mxu0
    %v2464 = vadd.f32 0.0, %v2463
    %2465 = vmatprep.mubr.f32.mxu0 0.0
    %2466 = vmatmul.mubr.f32.gmra.mxu0 %v563
    %v2467 = vpop.f32.mrf.mxu0
    %v2468 = vadd.f32 0.0, %v2467
    %v2469 = vpop.f32.mrf.mxu0
    %v2470 = vadd.f32 0.0, %v2469
    %2471 = vdwg.mxu0
    %2472 = vmatprep.subr.mxu0 0.0
    %2473 = vmatpush1.msra.mxu0 0.0
    %2474 = vmatprep.subr.mxu0 0.0
    %2475 = vmatpush1.msra.mxu0 0.0
    %2476 = vmatprep.subr.mxu0 0.0
    %2477 = vmatpush1.msra.mxu0 0.0
    %2478 = vmatprep.subr.mxu0 0.0
    %2479 = vmatpush1.msra.mxu0 0.0
    %2480 = vmatprep.subr.mxu0 0.0
    %2481 = vmatpush1.msra.mxu0 0.0
    %2482 = vmatprep.subr.mxu0 0.0
    %2483 = vmatpush1.msra.mxu0 0.0
    %2484 = vmatprep.subr.mxu0 0.0
    %2485 = vmatpush1.msra.mxu0 0.0
    %2486 = vmatprep.subr.mxu0 0.0
    %2487 = vmatpush1.msra.mxu0 0.0
    %2488 = vmatprep.subr.mxu0 0.0
    %2489 = vmatpush1.msra.mxu0 0.0
    %2490 = vmatprep.subr.mxu0 0.0
    %2491 = vmatpush1.msra.mxu0 0.0
    %2492 = vmatprep.subr.mxu0 0.0
    %2493 = vmatpush1.msra.mxu0 0.0
    %2494 = vmatprep.subr.mxu0 0.0
    %2495 = vmatpush1.msra.mxu0 0.0
    %2496 = vmatprep.subr.mxu0 0.0
    %2497 = vmatpush1.msra.mxu0 %v2380
    %2498 = vmatprep.subr.mxu0 0.0
    %2499 = vmatpush1.msra.mxu0 %v2375
    %2500 = vmatprep.subr.mxu0 0.0
    %2501 = vmatpush1.msra.mxu0 %v2370
    %2502 = vmatprep.subr.mxu0 0.0
    %2503 = vmatpush1.msra.mxu0 %v2365
    %2504 = vmatprep.subr.mxu0 0.0
    %2505 = vmatpush2.msra.mxu0 0.0
    %2506 = vmatprep.subr.mxu0 0.0
    %2507 = vmatpush2.msra.mxu0 0.0
    %2508 = vmatprep.subr.mxu0 0.0
    %2509 = vmatpush2.msra.mxu0 0.0
    %2510 = vmatprep.subr.mxu0 0.0
    %2511 = vmatpush2.msra.mxu0 0.0
    %2512 = vmatprep.subr.mxu0 0.0
    %2513 = vmatpush2.msra.mxu0 0.0
    %2514 = vmatprep.subr.mxu0 0.0
    %2515 = vmatpush2.msra.mxu0 0.0
    %2516 = vmatprep.subr.mxu0 0.0
    %2517 = vmatpush2.msra.mxu0 0.0
    %2518 = vmatprep.subr.mxu0 0.0
    %2519 = vmatpush2.msra.mxu0 0.0
    %2520 = vmatprep.subr.mxu0 0.0
    %2521 = vmatpush2.msra.mxu0 0.0
    %2522 = vmatprep.subr.mxu0 0.0
    %2523 = vmatpush2.msra.mxu0 0.0
    %2524 = vmatprep.subr.mxu0 0.0
    %2525 = vmatpush2.msra.mxu0 0.0
    %2526 = vmatprep.subr.mxu0 0.0
    %2527 = vmatpush2.msra.mxu0 0.0
    %2528 = vmatprep.subr.mxu0 0.0
    %2529 = vmatpush2.msra.mxu0 0.0
    %2530 = vmatprep.subr.mxu0 0.0
    %2531 = vmatpush2.msra.mxu0 0.0
    %2532 = vmatprep.subr.mxu0 0.0
    %2533 = vmatpush2.msra.mxu0 0.0
    %2534 = vmatprep.subr.mxu0 0.0
    %2535 = vmatpush2.msra.mxu0 0.0
    %2536 = vmatprep.mubr.f32.mxu0 0.0
    %2537 = vmatmul.mubr.f32.gmra.mxu0 %v554
    %v2538 = vpop.f32.mrf.mxu0
    %v2539 = vadd.f32 0.0, %v2538
    %v2540 = vpop.f32.mrf.mxu0
    %2541 = vmatprep.mubr.f32.mxu0 0.0
    %2542 = vmatmul.mubr.f32.gmra.mxu0 %v557
    %v2543 = vpop.f32.mrf.mxu0
    %v2544 = vadd.f32 0.0, %v2543
    %v2545 = vpop.f32.mrf.mxu0
    %2546 = vmatprep.mubr.f32.mxu0 0.0
    %2547 = vmatmul.mubr.f32.gmra.mxu0 %v560
    %v2548 = vpop.f32.mrf.mxu0
    %v2549 = vadd.f32 0.0, %v2548
    %v2550 = vpop.f32.mrf.mxu0
    %2551 = vmatprep.mubr.f32.mxu0 0.0
    %2552 = vmatmul.mubr.f32.gmra.mxu0 %v563
    %v2553 = vpop.f32.mrf.mxu0
    %v2554 = vadd.f32 0.0, %v2553
    %v2555 = vpop.f32.mrf.mxu0
    %2556 = vdwg.mxu0
    %2557 = vmatprep.subr.mxu0 %v327
    %2558 = vmatpush1.msra.mxu0 %v326
    %2559 = vmatprep.subr.mxu0 %v324
    %2560 = vmatpush1.msra.mxu0 %v323
    %2561 = vmatprep.subr.mxu0 %v321
    %2562 = vmatpush1.msra.mxu0 %v320
    %2563 = vmatprep.subr.mxu0 %v318
    %2564 = vmatpush1.msra.mxu0 %v317
    %2565 = vmatprep.subr.mxu0 %v315
    %2566 = vmatpush1.msra.mxu0 %v314
    %2567 = vmatprep.subr.mxu0 %v312
    %2568 = vmatpush1.msra.mxu0 %v311
    %2569 = vmatprep.subr.mxu0 %v309
    %2570 = vmatpush1.msra.mxu0 %v308
    %2571 = vmatprep.subr.mxu0 %v306
    %2572 = vmatpush1.msra.mxu0 %v305
    %2573 = vmatprep.subr.mxu0 %v303
    %2574 = vmatpush1.msra.mxu0 %v302
    %2575 = vmatprep.subr.mxu0 %v300
    %2576 = vmatpush1.msra.mxu0 %v299
    %2577 = vmatprep.subr.mxu0 %v297
    %2578 = vmatpush1.msra.mxu0 %v296
    %2579 = vmatprep.subr.mxu0 %v294
    %2580 = vmatpush1.msra.mxu0 %v293
    %2581 = vmatprep.subr.mxu0 %v291
    %2582 = vmatpush1.msra.mxu0 %v290
    %2583 = vmatprep.subr.mxu0 %v288
    %2584 = vmatpush1.msra.mxu0 %v287
    %2585 = vmatprep.subr.mxu0 %v285
    %2586 = vmatpush1.msra.mxu0 %v284
    %2587 = vmatprep.subr.mxu0 %v282
    %2588 = vmatpush1.msra.mxu0 %v281
    %2589 = vmatprep.subr.mxu0 0.0
    %2590 = vmatpush2.msra.mxu0 0.0
    %2591 = vmatprep.subr.mxu0 0.0
    %2592 = vmatpush2.msra.mxu0 0.0
    %2593 = vmatprep.subr.mxu0 0.0
    %2594 = vmatpush2.msra.mxu0 0.0
    %2595 = vmatprep.subr.mxu0 0.0
    %2596 = vmatpush2.msra.mxu0 0.0
    %2597 = vmatprep.subr.mxu0 0.0
    %2598 = vmatpush2.msra.mxu0 0.0
    %2599 = vmatprep.subr.mxu0 0.0
    %2600 = vmatpush2.msra.mxu0 0.0
    %2601 = vmatprep.subr.mxu0 0.0
    %2602 = vmatpush2.msra.mxu0 0.0
    %2603 = vmatprep.subr.mxu0 0.0
    %2604 = vmatpush2.msra.mxu0 0.0
    %2605 = vmatprep.subr.mxu0 0.0
    %2606 = vmatpush2.msra.mxu0 0.0
    %2607 = vmatprep.subr.mxu0 0.0
    %2608 = vmatpush2.msra.mxu0 0.0
    %2609 = vmatprep.subr.mxu0 0.0
    %2610 = vmatpush2.msra.mxu0 0.0
    %2611 = vmatprep.subr.mxu0 0.0
    %2612 = vmatpush2.msra.mxu0 0.0
    %2613 = vmatprep.subr.mxu0 0.0
    %2614 = vmatpush2.msra.mxu0 0.0
    %2615 = vmatprep.subr.mxu0 0.0
    %2616 = vmatpush2.msra.mxu0 0.0
    %2617 = vmatprep.subr.mxu0 0.0
    %2618 = vmatpush2.msra.mxu0 0.0
    %2619 = vmatprep.subr.mxu0 0.0
    %2620 = vmatpush2.msra.mxu0 0.0
    %2621 = vmatprep.mubr.f32.mxu0 0.0
    %2622 = vmatmul.mubr.f32.gmra.mxu0 %v2205
    %v2623 = vpop.f32.mrf.mxu0
    %v2624 = vadd.f32 %v2450, %v2623
    %v2625 = vpop.f32.mrf.mxu0
    %v2626 = vadd.f32 %v2452, %v2625
    %2627 = vmatprep.mubr.f32.mxu0 0.0
    %2628 = vmatmul.mubr.f32.gmra.mxu0 %v2206
    %v2629 = vpop.f32.mrf.mxu0
    %v2630 = vadd.f32 %v2456, %v2629
    %v2631 = vpop.f32.mrf.mxu0
    %v2632 = vadd.f32 %v2458, %v2631
    %2633 = vmatprep.mubr.f32.mxu0 0.0
    %2634 = vmatmul.mubr.f32.gmra.mxu0 %v2207
    %v2635 = vpop.f32.mrf.mxu0
    %v2636 = vadd.f32 %v2462, %v2635
    %v2637 = vpop.f32.mrf.mxu0
    %v2638 = vadd.f32 %v2464, %v2637
    %2639 = vmatprep.mubr.f32.mxu0 0.0
    %2640 = vmatmul.mubr.f32.gmra.mxu0 %v2208
    %v2641 = vpop.f32.mrf.mxu0
    %v2642 = vadd.f32 %v2468, %v2641
    %v2643 = vpop.f32.mrf.mxu0
    %v2644 = vadd.f32 %v2470, %v2643
    %2645 = vdwg.mxu0
    %2646 = vmatprep.subr.mxu0 0.0
    %2647 = vmatpush1.msra.mxu0 %v328
    %2648 = vmatprep.subr.mxu0 0.0
    %2649 = vmatpush1.msra.mxu0 %v325
    %2650 = vmatprep.subr.mxu0 0.0
    %2651 = vmatpush1.msra.mxu0 %v322
    %2652 = vmatprep.subr.mxu0 0.0
    %2653 = vmatpush1.msra.mxu0 %v319
    %2654 = vmatprep.subr.mxu0 0.0
    %2655 = vmatpush1.msra.mxu0 %v316
    %2656 = vmatprep.subr.mxu0 0.0
    %2657 = vmatpush1.msra.mxu0 %v313
    %2658 = vmatprep.subr.mxu0 0.0
    %2659 = vmatpush1.msra.mxu0 %v310
    %2660 = vmatprep.subr.mxu0 0.0
    %2661 = vmatpush1.msra.mxu0 %v307
    %2662 = vmatprep.subr.mxu0 0.0
    %2663 = vmatpush1.msra.mxu0 %v304
    %2664 = vmatprep.subr.mxu0 0.0
    %2665 = vmatpush1.msra.mxu0 %v301
    %2666 = vmatprep.subr.mxu0 0.0
    %2667 = vmatpush1.msra.mxu0 %v298
    %2668 = vmatprep.subr.mxu0 0.0
    %2669 = vmatpush1.msra.mxu0 %v295
    %2670 = vmatprep.subr.mxu0 0.0
    %2671 = vmatpush1.msra.mxu0 %v292
    %2672 = vmatprep.subr.mxu0 0.0
    %2673 = vmatpush1.msra.mxu0 %v289
    %2674 = vmatprep.subr.mxu0 0.0
    %2675 = vmatpush1.msra.mxu0 %v286
    %2676 = vmatprep.subr.mxu0 0.0
    %2677 = vmatpush1.msra.mxu0 %v283
    %2678 = vmatprep.subr.mxu0 0.0
    %2679 = vmatpush2.msra.mxu0 0.0
    %2680 = vmatprep.subr.mxu0 0.0
    %2681 = vmatpush2.msra.mxu0 0.0
    %2682 = vmatprep.subr.mxu0 0.0
    %2683 = vmatpush2.msra.mxu0 0.0
    %2684 = vmatprep.subr.mxu0 0.0
    %2685 = vmatpush2.msra.mxu0 0.0
    %2686 = vmatprep.subr.mxu0 0.0
    %2687 = vmatpush2.msra.mxu0 0.0
    %2688 = vmatprep.subr.mxu0 0.0
    %2689 = vmatpush2.msra.mxu0 0.0
    %2690 = vmatprep.subr.mxu0 0.0
    %2691 = vmatpush2.msra.mxu0 0.0
    %2692 = vmatprep.subr.mxu0 0.0
    %2693 = vmatpush2.msra.mxu0 0.0
    %2694 = vmatprep.subr.mxu0 0.0
    %2695 = vmatpush2.msra.mxu0 0.0
    %2696 = vmatprep.subr.mxu0 0.0
    %2697 = vmatpush2.msra.mxu0 0.0
    %2698 = vmatprep.subr.mxu0 0.0
    %2699 = vmatpush2.msra.mxu0 0.0
    %2700 = vmatprep.subr.mxu0 0.0
    %2701 = vmatpush2.msra.mxu0 0.0
    %2702 = vmatprep.subr.mxu0 0.0
    %2703 = vmatpush2.msra.mxu0 0.0
    %2704 = vmatprep.subr.mxu0 0.0
    %2705 = vmatpush2.msra.mxu0 0.0
    %2706 = vmatprep.subr.mxu0 0.0
    %2707 = vmatpush2.msra.mxu0 0.0
    %2708 = vmatprep.subr.mxu0 0.0
    %2709 = vmatpush2.msra.mxu0 0.0
    %2710 = vmatprep.mubr.f32.mxu0 0.0
    %2711 = vmatmul.mubr.f32.gmra.mxu0 %v2205
    %v2712 = vpop.f32.mrf.mxu0
    %v2713 = vadd.f32 %v2539, %v2712
    %v2714 = vpop.f32.mrf.mxu0
    %2715 = vmatprep.mubr.f32.mxu0 0.0
    %2716 = vmatmul.mubr.f32.gmra.mxu0 %v2206
    %v2717 = vpop.f32.mrf.mxu0
    %v2718 = vadd.f32 %v2544, %v2717
    %v2719 = vpop.f32.mrf.mxu0
    %2720 = vmatprep.mubr.f32.mxu0 0.0
    %2721 = vmatmul.mubr.f32.gmra.mxu0 %v2207
    %v2722 = vpop.f32.mrf.mxu0
    %v2723 = vadd.f32 %v2549, %v2722
    %v2724 = vpop.f32.mrf.mxu0
    %2725 = vmatprep.mubr.f32.mxu0 0.0
    %2726 = vmatmul.mubr.f32.gmra.mxu0 %v2208
    %v2727 = vpop.f32.mrf.mxu0
    %v2728 = vadd.f32 %v2554, %v2727
    %v2729 = vpop.f32.mrf.mxu0
    %2730 = vdwg.mxu0
    %v2731 = vadd.f32 %v174, %v2624
    %v2732 = vadd.f32 %v180, %v2630
    %v2733 = vadd.f32 %v186, %v2636
    %v2734 = vadd.f32 %v192, %v2642
    %v2735 = vxor.u32 %v2731, 2147483648
    %v2736 = vxor.u32 %v2732, 2147483648
    %v2737 = vxor.u32 %v2733, 2147483648
    %v2738 = vxor.u32 %v2734, 2147483648
    %v2739 = vmul.f32 %v2735, 1.442695
    %v2740 = vpow.pop %v2739
    %v2741 = vmul.f32 %v2736, 1.442695
    %v2742 = vpow.pop %v2741
    %v2743 = vmul.f32 %v2737, 1.442695
    %v2744 = vpow.pop %v2743
    %v2745 = vmul.f32 %v2738, 1.442695
    %v2746 = vpow.pop %v2745
    %v2747 = vadd.f32 %v2740, 1.0
    %v2748 = vadd.f32 %v2742, 1.0
    %v2749 = vadd.f32 %v2744, 1.0
    %v2750 = vadd.f32 %v2746, 1.0
    %v2751 = vrcp.pop %v2747
    %v2752 = vmul.f32 1.0, %v2751
    %v2753 = vrcp.pop %v2748
    %v2754 = vmul.f32 1.0, %v2753
    %v2755 = vrcp.pop %v2749
    %v2756 = vmul.f32 1.0, %v2755
    %v2757 = vrcp.pop %v2750
    %v2758 = vmul.f32 1.0, %v2757
    %v2759 = vadd.f32 %v176, %v2626
    %v2760 = vadd.f32 %v182, %v2632
    %v2761 = vadd.f32 %v188, %v2638
    %v2762 = vadd.f32 %v194, %v2644
    %v2763 = vxor.u32 %v2759, 2147483648
    %v2764 = vxor.u32 %v2760, 2147483648
    %v2765 = vxor.u32 %v2761, 2147483648
    %v2766 = vxor.u32 %v2762, 2147483648
    %v2767 = vmul.f32 %v2763, 1.442695
    %v2768 = vpow.pop %v2767
    %v2769 = vmul.f32 %v2764, 1.442695
    %v2770 = vpow.pop %v2769
    %v2771 = vmul.f32 %v2765, 1.442695
    %v2772 = vpow.pop %v2771
    %v2773 = vmul.f32 %v2766, 1.442695
    %v2774 = vpow.pop %v2773
    %v2775 = vadd.f32 %v2768, 1.0
    %v2776 = vadd.f32 %v2770, 1.0
    %v2777 = vadd.f32 %v2772, 1.0
    %v2778 = vadd.f32 %v2774, 1.0
    %v2779 = vrcp.pop %v2775
    %v2780 = vmul.f32 1.0, %v2779
    %v2781 = vrcp.pop %v2776
    %v2782 = vmul.f32 1.0, %v2781
    %v2783 = vrcp.pop %v2777
    %v2784 = vmul.f32 1.0, %v2783
    %v2785 = vrcp.pop %v2778
    %v2786 = vmul.f32 1.0, %v2785
    %v2787 = vmul.f32 %v2752, %v2713
    %v2788 = vmul.f32 %v2754, %v2718
    %v2789 = vmul.f32 %v2756, %v2723
    %v2790 = vmul.f32 %v2758, %v2728
    %v2791 = vadd.f32 %v263, %v2787
    %v2792 = vadd.f32 %v268, %v2788
    %v2793 = vadd.f32 %v273, %v2789
    %v2794 = vadd.f32 %v278, %v2790
    %v2795 = vtanh.pop %v2791
    %v2796 = vtanh.pop %v2792
    %v2797 = vtanh.pop %v2793
    %v2798 = vtanh.pop %v2794
    %v2799 = vsub.f32 1.0, %v2780
    %v2800 = vsub.f32 1.0, %v2782
    %v2801 = vsub.f32 1.0, %v2784
    %v2802 = vsub.f32 1.0, %v2786
    %v2803 = vmul.f32 %v2799, %v2795
    %v2804 = vmul.f32 %v2800, %v2796
    %v2805 = vmul.f32 %v2801, %v2797
    %v2806 = vmul.f32 %v2802, %v2798
    %v2807 = vmul.f32 %v2780, %v2205
    %v2808 = vmul.f32 %v2782, %v2206
    %v2809 = vmul.f32 %v2784, %v2207
    %v2810 = vmul.f32 %v2786, %v2208
    %v2811 = vadd.f32 %v2803, %v2807
    %v2812 = vadd.f32 %v2804, %v2808
    %v2813 = vadd.f32 %v2805, %v2809
    %v2814 = vadd.f32 %v2806, %v2810
    %2815 = vmatprep.subr.mxu0 %v376
    %2816 = vmatpush1.msra.mxu0 %v375
    %2817 = vmatprep.subr.mxu0 %v373
    %2818 = vmatpush1.msra.mxu0 %v372
    %2819 = vmatprep.subr.mxu0 %v370
    %2820 = vmatpush1.msra.mxu0 %v369
    %2821 = vmatprep.subr.mxu0 %v367
    %2822 = vmatpush1.msra.mxu0 %v366
    %2823 = vmatprep.subr.mxu0 %v364
    %2824 = vmatpush1.msra.mxu0 %v363
    %2825 = vmatprep.subr.mxu0 %v361
    %2826 = vmatpush1.msra.mxu0 %v360
    %2827 = vmatprep.subr.mxu0 %v358
    %2828 = vmatpush1.msra.mxu0 %v357
    %2829 = vmatprep.subr.mxu0 %v355
    %2830 = vmatpush1.msra.mxu0 %v354
    %2831 = vmatprep.subr.mxu0 %v352
    %2832 = vmatpush1.msra.mxu0 %v351
    %2833 = vmatprep.subr.mxu0 %v349
    %2834 = vmatpush1.msra.mxu0 %v348
    %2835 = vmatprep.subr.mxu0 %v346
    %2836 = vmatpush1.msra.mxu0 %v345
    %2837 = vmatprep.subr.mxu0 %v343
    %2838 = vmatpush1.msra.mxu0 %v342
    %2839 = vmatprep.subr.mxu0 %v340
    %2840 = vmatpush1.msra.mxu0 %v339
    %2841 = vmatprep.subr.mxu0 %v337
    %2842 = vmatpush1.msra.mxu0 %v336
    %2843 = vmatprep.subr.mxu0 %v334
    %2844 = vmatpush1.msra.mxu0 %v333
    %2845 = vmatprep.subr.mxu0 %v331
    %2846 = vmatpush1.msra.mxu0 %v330
    %2847 = vmatprep.subr.mxu0 0.0
    %2848 = vmatpush2.msra.mxu0 0.0
    %2849 = vmatprep.subr.mxu0 0.0
    %2850 = vmatpush2.msra.mxu0 0.0
    %2851 = vmatprep.subr.mxu0 0.0
    %2852 = vmatpush2.msra.mxu0 0.0
    %2853 = vmatprep.subr.mxu0 0.0
    %2854 = vmatpush2.msra.mxu0 0.0
    %2855 = vmatprep.subr.mxu0 0.0
    %2856 = vmatpush2.msra.mxu0 0.0
    %2857 = vmatprep.subr.mxu0 0.0
    %2858 = vmatpush2.msra.mxu0 0.0
    %2859 = vmatprep.subr.mxu0 0.0
    %2860 = vmatpush2.msra.mxu0 0.0
    %2861 = vmatprep.subr.mxu0 0.0
    %2862 = vmatpush2.msra.mxu0 0.0
    %2863 = vmatprep.subr.mxu0 0.0
    %2864 = vmatpush2.msra.mxu0 0.0
    %2865 = vmatprep.subr.mxu0 0.0
    %2866 = vmatpush2.msra.mxu0 0.0
    %2867 = vmatprep.subr.mxu0 0.0
    %2868 = vmatpush2.msra.mxu0 0.0
    %2869 = vmatprep.subr.mxu0 0.0
    %2870 = vmatpush2.msra.mxu0 0.0
    %2871 = vmatprep.subr.mxu0 0.0
    %2872 = vmatpush2.msra.mxu0 0.0
    %2873 = vmatprep.subr.mxu0 0.0
    %2874 = vmatpush2.msra.mxu0 0.0
    %2875 = vmatprep.subr.mxu0 0.0
    %2876 = vmatpush2.msra.mxu0 0.0
    %2877 = vmatprep.subr.mxu0 0.0
    %2878 = vmatpush2.msra.mxu0 0.0
    %2879 = vmatprep.mubr.f32.mxu0 0.0
    %2880 = vmatmul.mubr.f32.gmra.mxu0 %v2811
    %v2881 = vpop.f32.mrf.mxu0
    %v2882 = vadd.f32 0.0, %v2881
    %v2883 = vpop.f32.mrf.mxu0
    %v2884 = vadd.f32 0.0, %v2883
    %2885 = vmatprep.mubr.f32.mxu0 0.0
    %2886 = vmatmul.mubr.f32.gmra.mxu0 %v2812
    %v2887 = vpop.f32.mrf.mxu0
    %v2888 = vadd.f32 0.0, %v2887
    %v2889 = vpop.f32.mrf.mxu0
    %v2890 = vadd.f32 0.0, %v2889
    %2891 = vmatprep.mubr.f32.mxu0 0.0
    %2892 = vmatmul.mubr.f32.gmra.mxu0 %v2813
    %v2893 = vpop.f32.mrf.mxu0
    %v2894 = vadd.f32 0.0, %v2893
    %v2895 = vpop.f32.mrf.mxu0
    %v2896 = vadd.f32 0.0, %v2895
    %2897 = vmatprep.mubr.f32.mxu0 0.0
    %2898 = vmatmul.mubr.f32.gmra.mxu0 %v2814
    %v2899 = vpop.f32.mrf.mxu0
    %v2900 = vadd.f32 0.0, %v2899
    %v2901 = vpop.f32.mrf.mxu0
    %v2902 = vadd.f32 0.0, %v2901
    %2903 = vdwg.mxu0
    %2904 = vmatprep.subr.mxu0 0.0
    %2905 = vmatpush1.msra.mxu0 %v377
    %2906 = vmatprep.subr.mxu0 0.0
    %2907 = vmatpush1.msra.mxu0 %v374
    %2908 = vmatprep.subr.mxu0 0.0
    %2909 = vmatpush1.msra.mxu0 %v371
    %2910 = vmatprep.subr.mxu0 0.0
    %2911 = vmatpush1.msra.mxu0 %v368
    %2912 = vmatprep.subr.mxu0 0.0
    %2913 = vmatpush1.msra.mxu0 %v365
    %2914 = vmatprep.subr.mxu0 0.0
    %2915 = vmatpush1.msra.mxu0 %v362
    %2916 = vmatprep.subr.mxu0 0.0
    %2917 = vmatpush1.msra.mxu0 %v359
    %2918 = vmatprep.subr.mxu0 0.0
    %2919 = vmatpush1.msra.mxu0 %v356
    %2920 = vmatprep.subr.mxu0 0.0
    %2921 = vmatpush1.msra.mxu0 %v353
    %2922 = vmatprep.subr.mxu0 0.0
    %2923 = vmatpush1.msra.mxu0 %v350
    %2924 = vmatprep.subr.mxu0 0.0
    %2925 = vmatpush1.msra.mxu0 %v347
    %2926 = vmatprep.subr.mxu0 0.0
    %2927 = vmatpush1.msra.mxu0 %v344
    %2928 = vmatprep.subr.mxu0 0.0
    %2929 = vmatpush1.msra.mxu0 %v341
    %2930 = vmatprep.subr.mxu0 0.0
    %2931 = vmatpush1.msra.mxu0 %v338
    %2932 = vmatprep.subr.mxu0 0.0
    %2933 = vmatpush1.msra.mxu0 %v335
    %2934 = vmatprep.subr.mxu0 0.0
    %2935 = vmatpush1.msra.mxu0 %v332
    %2936 = vmatprep.subr.mxu0 0.0
    %2937 = vmatpush2.msra.mxu0 0.0
    %2938 = vmatprep.subr.mxu0 0.0
    %2939 = vmatpush2.msra.mxu0 0.0
    %2940 = vmatprep.subr.mxu0 0.0
    %2941 = vmatpush2.msra.mxu0 0.0
    %2942 = vmatprep.subr.mxu0 0.0
    %2943 = vmatpush2.msra.mxu0 0.0
    %2944 = vmatprep.subr.mxu0 0.0
    %2945 = vmatpush2.msra.mxu0 0.0
    %2946 = vmatprep.subr.mxu0 0.0
    %2947 = vmatpush2.msra.mxu0 0.0
    %2948 = vmatprep.subr.mxu0 0.0
    %2949 = vmatpush2.msra.mxu0 0.0
    %2950 = vmatprep.subr.mxu0 0.0
    %2951 = vmatpush2.msra.mxu0 0.0
    %2952 = vmatprep.subr.mxu0 0.0
    %2953 = vmatpush2.msra.mxu0 0.0
    %2954 = vmatprep.subr.mxu0 0.0
    %2955 = vmatpush2.msra.mxu0 0.0
    %2956 = vmatprep.subr.mxu0 0.0
    %2957 = vmatpush2.msra.mxu0 0.0
    %2958 = vmatprep.subr.mxu0 0.0
    %2959 = vmatpush2.msra.mxu0 0.0
    %2960 = vmatprep.subr.mxu0 0.0
    %2961 = vmatpush2.msra.mxu0 0.0
    %2962 = vmatprep.subr.mxu0 0.0
    %2963 = vmatpush2.msra.mxu0 0.0
    %2964 = vmatprep.subr.mxu0 0.0
    %2965 = vmatpush2.msra.mxu0 0.0
    %2966 = vmatprep.subr.mxu0 0.0
    %2967 = vmatpush2.msra.mxu0 0.0
    %2968 = vmatprep.mubr.f32.mxu0 0.0
    %2969 = vmatmul.mubr.f32.gmra.mxu0 %v2811
    %v2970 = vpop.f32.mrf.mxu0
    %v2971 = vadd.f32 0.0, %v2970
    %v2972 = vpop.f32.mrf.mxu0
    %2973 = vmatprep.mubr.f32.mxu0 0.0
    %2974 = vmatmul.mubr.f32.gmra.mxu0 %v2812
    %v2975 = vpop.f32.mrf.mxu0
    %v2976 = vadd.f32 0.0, %v2975
    %v2977 = vpop.f32.mrf.mxu0
    %2978 = vmatprep.mubr.f32.mxu0 0.0
    %2979 = vmatmul.mubr.f32.gmra.mxu0 %v2813
    %v2980 = vpop.f32.mrf.mxu0
    %v2981 = vadd.f32 0.0, %v2980
    %v2982 = vpop.f32.mrf.mxu0
    %2983 = vmatprep.mubr.f32.mxu0 0.0
    %2984 = vmatmul.mubr.f32.gmra.mxu0 %v2814
    %v2985 = vpop.f32.mrf.mxu0
    %v2986 = vadd.f32 0.0, %v2985
    %v2987 = vpop.f32.mrf.mxu0
    %2988 = vdwg.mxu0
    %2989 = vmatprep.subr.mxu0 0.0
    %2990 = vmatpush1.msra.mxu0 0.0
    %2991 = vmatprep.subr.mxu0 0.0
    %2992 = vmatpush1.msra.mxu0 0.0
    %2993 = vmatprep.subr.mxu0 0.0
    %2994 = vmatpush1.msra.mxu0 0.0
    %2995 = vmatprep.subr.mxu0 0.0
    %2996 = vmatpush1.msra.mxu0 0.0
    %2997 = vmatprep.subr.mxu0 0.0
    %2998 = vmatpush1.msra.mxu0 0.0
    %2999 = vmatprep.subr.mxu0 0.0
    %3000 = vmatpush1.msra.mxu0 0.0
    %3001 = vmatprep.subr.mxu0 0.0
    %3002 = vmatpush1.msra.mxu0 0.0
    %3003 = vmatprep.subr.mxu0 0.0
    %3004 = vmatpush1.msra.mxu0 0.0
    %3005 = vmatprep.subr.mxu0 0.0
    %3006 = vmatpush1.msra.mxu0 0.0
    %3007 = vmatprep.subr.mxu0 0.0
    %3008 = vmatpush1.msra.mxu0 0.0
    %3009 = vmatprep.subr.mxu0 0.0
    %3010 = vmatpush1.msra.mxu0 0.0
    %3011 = vmatprep.subr.mxu0 0.0
    %3012 = vmatpush1.msra.mxu0 0.0
    %3013 = vmatprep.subr.mxu0 %v2902
    %3014 = vmatpush1.msra.mxu0 %v2900
    %3015 = vmatprep.subr.mxu0 %v2896
    %3016 = vmatpush1.msra.mxu0 %v2894
    %3017 = vmatprep.subr.mxu0 %v2890
    %3018 = vmatpush1.msra.mxu0 %v2888
    %3019 = vmatprep.subr.mxu0 %v2884
    %3020 = vmatpush1.msra.mxu0 %v2882
    %3021 = vmatprep.subr.mxu0 0.0
    %3022 = vmatpush2.msra.mxu0 0.0
    %3023 = vmatprep.subr.mxu0 0.0
    %3024 = vmatpush2.msra.mxu0 0.0
    %3025 = vmatprep.subr.mxu0 0.0
    %3026 = vmatpush2.msra.mxu0 0.0
    %3027 = vmatprep.subr.mxu0 0.0
    %3028 = vmatpush2.msra.mxu0 0.0
    %3029 = vmatprep.subr.mxu0 0.0
    %3030 = vmatpush2.msra.mxu0 0.0
    %3031 = vmatprep.subr.mxu0 0.0
    %3032 = vmatpush2.msra.mxu0 0.0
    %3033 = vmatprep.subr.mxu0 0.0
    %3034 = vmatpush2.msra.mxu0 0.0
    %3035 = vmatprep.subr.mxu0 0.0
    %3036 = vmatpush2.msra.mxu0 0.0
    %3037 = vmatprep.subr.mxu0 0.0
    %3038 = vmatpush2.msra.mxu0 0.0
    %3039 = vmatprep.subr.mxu0 0.0
    %3040 = vmatpush2.msra.mxu0 0.0
    %3041 = vmatprep.subr.mxu0 0.0
    %3042 = vmatpush2.msra.mxu0 0.0
    %3043 = vmatprep.subr.mxu0 0.0
    %3044 = vmatpush2.msra.mxu0 0.0
    %3045 = vmatprep.subr.mxu0 0.0
    %3046 = vmatpush2.msra.mxu0 0.0
    %3047 = vmatprep.subr.mxu0 0.0
    %3048 = vmatpush2.msra.mxu0 0.0
    %3049 = vmatprep.subr.mxu0 0.0
    %3050 = vmatpush2.msra.mxu0 0.0
    %3051 = vmatprep.subr.mxu0 0.0
    %3052 = vmatpush2.msra.mxu0 0.0
    %3053 = vmatprep.mubr.f32.mxu0 0.0
    %3054 = vmatmul.mubr.f32.gmra.mxu0 %v554
    %v3055 = vpop.f32.mrf.mxu0
    %v3056 = vadd.f32 0.0, %v3055
    %v3057 = vpop.f32.mrf.mxu0
    %v3058 = vadd.f32 0.0, %v3057
    %3059 = vmatprep.mubr.f32.mxu0 0.0
    %3060 = vmatmul.mubr.f32.gmra.mxu0 %v557
    %v3061 = vpop.f32.mrf.mxu0
    %v3062 = vadd.f32 0.0, %v3061
    %v3063 = vpop.f32.mrf.mxu0
    %v3064 = vadd.f32 0.0, %v3063
    %3065 = vmatprep.mubr.f32.mxu0 0.0
    %3066 = vmatmul.mubr.f32.gmra.mxu0 %v560
    %v3067 = vpop.f32.mrf.mxu0
    %v3068 = vadd.f32 0.0, %v3067
    %v3069 = vpop.f32.mrf.mxu0
    %v3070 = vadd.f32 0.0, %v3069
    %3071 = vmatprep.mubr.f32.mxu0 0.0
    %3072 = vmatmul.mubr.f32.gmra.mxu0 %v563
    %v3073 = vpop.f32.mrf.mxu0
    %v3074 = vadd.f32 0.0, %v3073
    %v3075 = vpop.f32.mrf.mxu0
    %v3076 = vadd.f32 0.0, %v3075
    %3077 = vdwg.mxu0
    %3078 = vmatprep.subr.mxu0 0.0
    %3079 = vmatpush1.msra.mxu0 0.0
    %3080 = vmatprep.subr.mxu0 0.0
    %3081 = vmatpush1.msra.mxu0 0.0
    %3082 = vmatprep.subr.mxu0 0.0
    %3083 = vmatpush1.msra.mxu0 0.0
    %3084 = vmatprep.subr.mxu0 0.0
    %3085 = vmatpush1.msra.mxu0 0.0
    %3086 = vmatprep.subr.mxu0 0.0
    %3087 = vmatpush1.msra.mxu0 0.0
    %3088 = vmatprep.subr.mxu0 0.0
    %3089 = vmatpush1.msra.mxu0 0.0
    %3090 = vmatprep.subr.mxu0 0.0
    %3091 = vmatpush1.msra.mxu0 0.0
    %3092 = vmatprep.subr.mxu0 0.0
    %3093 = vmatpush1.msra.mxu0 0.0
    %3094 = vmatprep.subr.mxu0 0.0
    %3095 = vmatpush1.msra.mxu0 0.0
    %3096 = vmatprep.subr.mxu0 0.0
    %3097 = vmatpush1.msra.mxu0 0.0
    %3098 = vmatprep.subr.mxu0 0.0
    %3099 = vmatpush1.msra.mxu0 0.0
    %3100 = vmatprep.subr.mxu0 0.0
    %3101 = vmatpush1.msra.mxu0 0.0
    %3102 = vmatprep.subr.mxu0 0.0
    %3103 = vmatpush1.msra.mxu0 %v2986
    %3104 = vmatprep.subr.mxu0 0.0
    %3105 = vmatpush1.msra.mxu0 %v2981
    %3106 = vmatprep.subr.mxu0 0.0
    %3107 = vmatpush1.msra.mxu0 %v2976
    %3108 = vmatprep.subr.mxu0 0.0
    %3109 = vmatpush1.msra.mxu0 %v2971
    %3110 = vmatprep.subr.mxu0 0.0
    %3111 = vmatpush2.msra.mxu0 0.0
    %3112 = vmatprep.subr.mxu0 0.0
    %3113 = vmatpush2.msra.mxu0 0.0
    %3114 = vmatprep.subr.mxu0 0.0
    %3115 = vmatpush2.msra.mxu0 0.0
    %3116 = vmatprep.subr.mxu0 0.0
    %3117 = vmatpush2.msra.mxu0 0.0
    %3118 = vmatprep.subr.mxu0 0.0
    %3119 = vmatpush2.msra.mxu0 0.0
    %3120 = vmatprep.subr.mxu0 0.0
    %3121 = vmatpush2.msra.mxu0 0.0
    %3122 = vmatprep.subr.mxu0 0.0
    %3123 = vmatpush2.msra.mxu0 0.0
    %3124 = vmatprep.subr.mxu0 0.0
    %3125 = vmatpush2.msra.mxu0 0.0
    %3126 = vmatprep.subr.mxu0 0.0
    %3127 = vmatpush2.msra.mxu0 0.0
    %3128 = vmatprep.subr.mxu0 0.0
    %3129 = vmatpush2.msra.mxu0 0.0
    %3130 = vmatprep.subr.mxu0 0.0
    %3131 = vmatpush2.msra.mxu0 0.0
    %3132 = vmatprep.subr.mxu0 0.0
    %3133 = vmatpush2.msra.mxu0 0.0
    %3134 = vmatprep.subr.mxu0 0.0
    %3135 = vmatpush2.msra.mxu0 0.0
    %3136 = vmatprep.subr.mxu0 0.0
    %3137 = vmatpush2.msra.mxu0 0.0
    %3138 = vmatprep.subr.mxu0 0.0
    %3139 = vmatpush2.msra.mxu0 0.0
    %3140 = vmatprep.subr.mxu0 0.0
    %3141 = vmatpush2.msra.mxu0 0.0
    %3142 = vmatprep.mubr.f32.mxu0 0.0
    %3143 = vmatmul.mubr.f32.gmra.mxu0 %v554
    %v3144 = vpop.f32.mrf.mxu0
    %v3145 = vadd.f32 0.0, %v3144
    %v3146 = vpop.f32.mrf.mxu0
    %3147 = vmatprep.mubr.f32.mxu0 0.0
    %3148 = vmatmul.mubr.f32.gmra.mxu0 %v557
    %v3149 = vpop.f32.mrf.mxu0
    %v3150 = vadd.f32 0.0, %v3149
    %v3151 = vpop.f32.mrf.mxu0
    %3152 = vmatprep.mubr.f32.mxu0 0.0
    %3153 = vmatmul.mubr.f32.gmra.mxu0 %v560
    %v3154 = vpop.f32.mrf.mxu0
    %v3155 = vadd.f32 0.0, %v3154
    %v3156 = vpop.f32.mrf.mxu0
    %3157 = vmatprep.mubr.f32.mxu0 0.0
    %3158 = vmatmul.mubr.f32.gmra.mxu0 %v563
    %v3159 = vpop.f32.mrf.mxu0
    %v3160 = vadd.f32 0.0, %v3159
    %v3161 = vpop.f32.mrf.mxu0
    %3162 = vdwg.mxu0
    %3163 = vmatprep.subr.mxu0 %v327
    %3164 = vmatpush1.msra.mxu0 %v326
    %3165 = vmatprep.subr.mxu0 %v324
    %3166 = vmatpush1.msra.mxu0 %v323
    %3167 = vmatprep.subr.mxu0 %v321
    %3168 = vmatpush1.msra.mxu0 %v320
    %3169 = vmatprep.subr.mxu0 %v318
    %3170 = vmatpush1.msra.mxu0 %v317
    %3171 = vmatprep.subr.mxu0 %v315
    %3172 = vmatpush1.msra.mxu0 %v314
    %3173 = vmatprep.subr.mxu0 %v312
    %3174 = vmatpush1.msra.mxu0 %v311
    %3175 = vmatprep.subr.mxu0 %v309
    %3176 = vmatpush1.msra.mxu0 %v308
    %3177 = vmatprep.subr.mxu0 %v306
    %3178 = vmatpush1.msra.mxu0 %v305
    %3179 = vmatprep.subr.mxu0 %v303
    %3180 = vmatpush1.msra.mxu0 %v302
    %3181 = vmatprep.subr.mxu0 %v300
    %3182 = vmatpush1.msra.mxu0 %v299
    %3183 = vmatprep.subr.mxu0 %v297
    %3184 = vmatpush1.msra.mxu0 %v296
    %3185 = vmatprep.subr.mxu0 %v294
    %3186 = vmatpush1.msra.mxu0 %v293
    %3187 = vmatprep.subr.mxu0 %v291
    %3188 = vmatpush1.msra.mxu0 %v290
    %3189 = vmatprep.subr.mxu0 %v288
    %3190 = vmatpush1.msra.mxu0 %v287
    %3191 = vmatprep.subr.mxu0 %v285
    %3192 = vmatpush1.msra.mxu0 %v284
    %3193 = vmatprep.subr.mxu0 %v282
    %3194 = vmatpush1.msra.mxu0 %v281
    %3195 = vmatprep.subr.mxu0 0.0
    %3196 = vmatpush2.msra.mxu0 0.0
    %3197 = vmatprep.subr.mxu0 0.0
    %3198 = vmatpush2.msra.mxu0 0.0
    %3199 = vmatprep.subr.mxu0 0.0
    %3200 = vmatpush2.msra.mxu0 0.0
    %3201 = vmatprep.subr.mxu0 0.0
    %3202 = vmatpush2.msra.mxu0 0.0
    %3203 = vmatprep.subr.mxu0 0.0
    %3204 = vmatpush2.msra.mxu0 0.0
    %3205 = vmatprep.subr.mxu0 0.0
    %3206 = vmatpush2.msra.mxu0 0.0
    %3207 = vmatprep.subr.mxu0 0.0
    %3208 = vmatpush2.msra.mxu0 0.0
    %3209 = vmatprep.subr.mxu0 0.0
    %3210 = vmatpush2.msra.mxu0 0.0
    %3211 = vmatprep.subr.mxu0 0.0
    %3212 = vmatpush2.msra.mxu0 0.0
    %3213 = vmatprep.subr.mxu0 0.0
    %3214 = vmatpush2.msra.mxu0 0.0
    %3215 = vmatprep.subr.mxu0 0.0
    %3216 = vmatpush2.msra.mxu0 0.0
    %3217 = vmatprep.subr.mxu0 0.0
    %3218 = vmatpush2.msra.mxu0 0.0
    %3219 = vmatprep.subr.mxu0 0.0
    %3220 = vmatpush2.msra.mxu0 0.0
    %3221 = vmatprep.subr.mxu0 0.0
    %3222 = vmatpush2.msra.mxu0 0.0
    %3223 = vmatprep.subr.mxu0 0.0
    %3224 = vmatpush2.msra.mxu0 0.0
    %3225 = vmatprep.subr.mxu0 0.0
    %3226 = vmatpush2.msra.mxu0 0.0
    %3227 = vmatprep.mubr.f32.mxu0 0.0
    %3228 = vmatmul.mubr.f32.gmra.mxu0 %v2811
    %v3229 = vpop.f32.mrf.mxu0
    %v3230 = vadd.f32 %v3056, %v3229
    %v3231 = vpop.f32.mrf.mxu0
    %v3232 = vadd.f32 %v3058, %v3231
    %3233 = vmatprep.mubr.f32.mxu0 0.0
    %3234 = vmatmul.mubr.f32.gmra.mxu0 %v2812
    %v3235 = vpop.f32.mrf.mxu0
    %v3236 = vadd.f32 %v3062, %v3235
    %v3237 = vpop.f32.mrf.mxu0
    %v3238 = vadd.f32 %v3064, %v3237
    %3239 = vmatprep.mubr.f32.mxu0 0.0
    %3240 = vmatmul.mubr.f32.gmra.mxu0 %v2813
    %v3241 = vpop.f32.mrf.mxu0
    %v3242 = vadd.f32 %v3068, %v3241
    %v3243 = vpop.f32.mrf.mxu0
    %v3244 = vadd.f32 %v3070, %v3243
    %3245 = vmatprep.mubr.f32.mxu0 0.0
    %3246 = vmatmul.mubr.f32.gmra.mxu0 %v2814
    %v3247 = vpop.f32.mrf.mxu0
    %v3248 = vadd.f32 %v3074, %v3247
    %v3249 = vpop.f32.mrf.mxu0
    %v3250 = vadd.f32 %v3076, %v3249
    %3251 = vdwg.mxu0
    %3252 = vmatprep.subr.mxu0 0.0
    %3253 = vmatpush1.msra.mxu0 %v328
    %3254 = vmatprep.subr.mxu0 0.0
    %3255 = vmatpush1.msra.mxu0 %v325
    %3256 = vmatprep.subr.mxu0 0.0
    %3257 = vmatpush1.msra.mxu0 %v322
    %3258 = vmatprep.subr.mxu0 0.0
    %3259 = vmatpush1.msra.mxu0 %v319
    %3260 = vmatprep.subr.mxu0 0.0
    %3261 = vmatpush1.msra.mxu0 %v316
    %3262 = vmatprep.subr.mxu0 0.0
    %3263 = vmatpush1.msra.mxu0 %v313
    %3264 = vmatprep.subr.mxu0 0.0
    %3265 = vmatpush1.msra.mxu0 %v310
    %3266 = vmatprep.subr.mxu0 0.0
    %3267 = vmatpush1.msra.mxu0 %v307
    %3268 = vmatprep.subr.mxu0 0.0
    %3269 = vmatpush1.msra.mxu0 %v304
    %3270 = vmatprep.subr.mxu0 0.0
    %3271 = vmatpush1.msra.mxu0 %v301
    %3272 = vmatprep.subr.mxu0 0.0
    %3273 = vmatpush1.msra.mxu0 %v298
    %3274 = vmatprep.subr.mxu0 0.0
    %3275 = vmatpush1.msra.mxu0 %v295
    %3276 = vmatprep.subr.mxu0 0.0
    %3277 = vmatpush1.msra.mxu0 %v292
    %3278 = vmatprep.subr.mxu0 0.0
    %3279 = vmatpush1.msra.mxu0 %v289
    %3280 = vmatprep.subr.mxu0 0.0
    %3281 = vmatpush1.msra.mxu0 %v286
    %3282 = vmatprep.subr.mxu0 0.0
    %3283 = vmatpush1.msra.mxu0 %v283
    %3284 = vmatprep.subr.mxu0 0.0
    %3285 = vmatpush2.msra.mxu0 0.0
    %3286 = vmatprep.subr.mxu0 0.0
    %3287 = vmatpush2.msra.mxu0 0.0
    %3288 = vmatprep.subr.mxu0 0.0
    %3289 = vmatpush2.msra.mxu0 0.0
    %3290 = vmatprep.subr.mxu0 0.0
    %3291 = vmatpush2.msra.mxu0 0.0
    %3292 = vmatprep.subr.mxu0 0.0
    %3293 = vmatpush2.msra.mxu0 0.0
    %3294 = vmatprep.subr.mxu0 0.0
    %3295 = vmatpush2.msra.mxu0 0.0
    %3296 = vmatprep.subr.mxu0 0.0
    %3297 = vmatpush2.msra.mxu0 0.0
    %3298 = vmatprep.subr.mxu0 0.0
    %3299 = vmatpush2.msra.mxu0 0.0
    %3300 = vmatprep.subr.mxu0 0.0
    %3301 = vmatpush2.msra.mxu0 0.0
    %3302 = vmatprep.subr.mxu0 0.0
    %3303 = vmatpush2.msra.mxu0 0.0
    %3304 = vmatprep.subr.mxu0 0.0
    %3305 = vmatpush2.msra.mxu0 0.0
    %3306 = vmatprep.subr.mxu0 0.0
    %3307 = vmatpush2.msra.mxu0 0.0
    %3308 = vmatprep.subr.mxu0 0.0
    %3309 = vmatpush2.msra.mxu0 0.0
    %3310 = vmatprep.subr.mxu0 0.0
    %3311 = vmatpush2.msra.mxu0 0.0
    %3312 = vmatprep.subr.mxu0 0.0
    %3313 = vmatpush2.msra.mxu0 0.0
    %3314 = vmatprep.subr.mxu0 0.0
    %3315 = vmatpush2.msra.mxu0 0.0
    %3316 = vmatprep.mubr.f32.mxu0 0.0
    %3317 = vmatmul.mubr.f32.gmra.mxu0 %v2811
    %v3318 = vpop.f32.mrf.mxu0
    %v3319 = vadd.f32 %v3145, %v3318
    %v3320 = vpop.f32.mrf.mxu0
    %3321 = vmatprep.mubr.f32.mxu0 0.0
    %3322 = vmatmul.mubr.f32.gmra.mxu0 %v2812
    %v3323 = vpop.f32.mrf.mxu0
    %v3324 = vadd.f32 %v3150, %v3323
    %v3325 = vpop.f32.mrf.mxu0
    %3326 = vmatprep.mubr.f32.mxu0 0.0
    %3327 = vmatmul.mubr.f32.gmra.mxu0 %v2813
    %v3328 = vpop.f32.mrf.mxu0
    %v3329 = vadd.f32 %v3155, %v3328
    %v3330 = vpop.f32.mrf.mxu0
    %3331 = vmatprep.mubr.f32.mxu0 0.0
    %3332 = vmatmul.mubr.f32.gmra.mxu0 %v2814
    %v3333 = vpop.f32.mrf.mxu0
    %v3334 = vadd.f32 %v3160, %v3333
    %v3335 = vpop.f32.mrf.mxu0
    %3336 = vdwg.mxu0
    %v3337 = vadd.f32 %v174, %v3230
    %v3338 = vadd.f32 %v180, %v3236
    %v3339 = vadd.f32 %v186, %v3242
    %v3340 = vadd.f32 %v192, %v3248
    %v3341 = vxor.u32 %v3337, 2147483648
    %v3342 = vxor.u32 %v3338, 2147483648
    %v3343 = vxor.u32 %v3339, 2147483648
    %v3344 = vxor.u32 %v3340, 2147483648
    %v3345 = vmul.f32 %v3341, 1.442695
    %v3346 = vpow.pop %v3345
    %v3347 = vmul.f32 %v3342, 1.442695
    %v3348 = vpow.pop %v3347
    %v3349 = vmul.f32 %v3343, 1.442695
    %v3350 = vpow.pop %v3349
    %v3351 = vmul.f32 %v3344, 1.442695
    %v3352 = vpow.pop %v3351
    %v3353 = vadd.f32 %v3346, 1.0
    %v3354 = vadd.f32 %v3348, 1.0
    %v3355 = vadd.f32 %v3350, 1.0
    %v3356 = vadd.f32 %v3352, 1.0
    %v3357 = vrcp.pop %v3353
    %v3358 = vmul.f32 1.0, %v3357
    %v3359 = vrcp.pop %v3354
    %v3360 = vmul.f32 1.0, %v3359
    %v3361 = vrcp.pop %v3355
    %v3362 = vmul.f32 1.0, %v3361
    %v3363 = vrcp.pop %v3356
    %v3364 = vmul.f32 1.0, %v3363
    %v3365 = vadd.f32 %v176, %v3232
    %v3366 = vadd.f32 %v182, %v3238
    %v3367 = vadd.f32 %v188, %v3244
    %v3368 = vadd.f32 %v194, %v3250
    %v3369 = vxor.u32 %v3365, 2147483648
    %v3370 = vxor.u32 %v3366, 2147483648
    %v3371 = vxor.u32 %v3367, 2147483648
    %v3372 = vxor.u32 %v3368, 2147483648
    %v3373 = vmul.f32 %v3369, 1.442695
    %v3374 = vpow.pop %v3373
    %v3375 = vmul.f32 %v3370, 1.442695
    %v3376 = vpow.pop %v3375
    %v3377 = vmul.f32 %v3371, 1.442695
    %v3378 = vpow.pop %v3377
    %v3379 = vmul.f32 %v3372, 1.442695
    %v3380 = vpow.pop %v3379
    %v3381 = vadd.f32 %v3374, 1.0
    %v3382 = vadd.f32 %v3376, 1.0
    %v3383 = vadd.f32 %v3378, 1.0
    %v3384 = vadd.f32 %v3380, 1.0
    %v3385 = vrcp.pop %v3381
    %v3386 = vmul.f32 1.0, %v3385
    %v3387 = vrcp.pop %v3382
    %v3388 = vmul.f32 1.0, %v3387
    %v3389 = vrcp.pop %v3383
    %v3390 = vmul.f32 1.0, %v3389
    %v3391 = vrcp.pop %v3384
    %v3392 = vmul.f32 1.0, %v3391
    %v3393 = vmul.f32 %v3358, %v3319
    %v3394 = vmul.f32 %v3360, %v3324
    %v3395 = vmul.f32 %v3362, %v3329
    %v3396 = vmul.f32 %v3364, %v3334
    %v3397 = vadd.f32 %v263, %v3393
    %v3398 = vadd.f32 %v268, %v3394
    %v3399 = vadd.f32 %v273, %v3395
    %v3400 = vadd.f32 %v278, %v3396
    %v3401 = vtanh.pop %v3397
    %v3402 = vtanh.pop %v3398
    %v3403 = vtanh.pop %v3399
    %v3404 = vtanh.pop %v3400
    %v3405 = vsub.f32 1.0, %v3386
    %v3406 = vsub.f32 1.0, %v3388
    %v3407 = vsub.f32 1.0, %v3390
    %v3408 = vsub.f32 1.0, %v3392
    %v3409 = vmul.f32 %v3405, %v3401
    %v3410 = vmul.f32 %v3406, %v3402
    %v3411 = vmul.f32 %v3407, %v3403
    %v3412 = vmul.f32 %v3408, %v3404
    %v3413 = vmul.f32 %v3386, %v2811
    %v3414 = vmul.f32 %v3388, %v2812
    %v3415 = vmul.f32 %v3390, %v2813
    %v3416 = vmul.f32 %v3392, %v2814
    %v3417 = vadd.f32 %v3409, %v3413
    %v3418 = vadd.f32 %v3410, %v3414
    %v3419 = vadd.f32 %v3411, %v3415
    %v3420 = vadd.f32 %v3412, %v3416
    %v3421 = vld [vmem:[%s7] sm:$0xff]
    %v3422 = vld [vmem:[%s6] sm:$0xff]
    %v3423 = vld [vmem:[%s6 + $0x8] sm:$0xff]
    %v3424 = vld [vmem:[%s6 + $0x10] sm:$0xff]
    %v3425 = vld [vmem:[%s6 + $0x18] sm:$0xff]
    %v3426 = vlaneseq
    %v3427 = vshrl.u32 %v3426, 7
    %v3428 = vsub.s32 0, %v3427
    %v3429 = vrot.slane %v3421, %v3428
    %v3431 = vsel %vm552, %v3417, 0
    %v3434 = vsel %vm552, %v3418, 0
    %v3437 = vsel %vm552, %v3419, 0
    %v3440 = vsel %vm552, %v3420, 0
    %3442 = vmatprep.subr.mxu0 0.0
    %3443 = vmatpush1.msra.mxu0 0.0
    %3444 = vmatprep.subr.mxu0 0.0
    %3445 = vmatpush1.msra.mxu0 0.0
    %3446 = vmatprep.subr.mxu0 0.0
    %3447 = vmatpush1.msra.mxu0 0.0
    %3448 = vmatprep.subr.mxu0 0.0
    %3449 = vmatpush1.msra.mxu0 0.0
    %3450 = vmatprep.subr.mxu0 0.0
    %3451 = vmatpush1.msra.mxu0 0.0
    %3452 = vmatprep.subr.mxu0 0.0
    %3453 = vmatpush1.msra.mxu0 0.0
    %3454 = vmatprep.subr.mxu0 0.0
    %3455 = vmatpush1.msra.mxu0 0.0
    %3456 = vmatprep.subr.mxu0 0.0
    %3457 = vmatpush1.msra.mxu0 0.0
    %3458 = vmatprep.subr.mxu0 0.0
    %3459 = vmatpush1.msra.mxu0 0.0
    %3460 = vmatprep.subr.mxu0 0.0
    %3461 = vmatpush1.msra.mxu0 0.0
    %3462 = vmatprep.subr.mxu0 0.0
    %3463 = vmatpush1.msra.mxu0 0.0
    %3464 = vmatprep.subr.mxu0 0.0
    %3465 = vmatpush1.msra.mxu0 0.0
    %3466 = vmatprep.subr.mxu0 0.0
    %3467 = vmatpush1.msra.mxu0 %v3425
    %3468 = vmatprep.subr.mxu0 0.0
    %3469 = vmatpush1.msra.mxu0 %v3424
    %3470 = vmatprep.subr.mxu0 0.0
    %3471 = vmatpush1.msra.mxu0 %v3423
    %3472 = vmatprep.subr.mxu0 0.0
    %3473 = vmatpush1.msra.mxu0 %v3422
    %3474 = vmatprep.subr.mxu0 0.0
    %3475 = vmatpush2.msra.mxu0 0.0
    %3476 = vmatprep.subr.mxu0 0.0
    %3477 = vmatpush2.msra.mxu0 0.0
    %3478 = vmatprep.subr.mxu0 0.0
    %3479 = vmatpush2.msra.mxu0 0.0
    %3480 = vmatprep.subr.mxu0 0.0
    %3481 = vmatpush2.msra.mxu0 0.0
    %3482 = vmatprep.subr.mxu0 0.0
    %3483 = vmatpush2.msra.mxu0 0.0
    %3484 = vmatprep.subr.mxu0 0.0
    %3485 = vmatpush2.msra.mxu0 0.0
    %3486 = vmatprep.subr.mxu0 0.0
    %3487 = vmatpush2.msra.mxu0 0.0
    %3488 = vmatprep.subr.mxu0 0.0
    %3489 = vmatpush2.msra.mxu0 0.0
    %3490 = vmatprep.subr.mxu0 0.0
    %3491 = vmatpush2.msra.mxu0 0.0
    %3492 = vmatprep.subr.mxu0 0.0
    %3493 = vmatpush2.msra.mxu0 0.0
    %3494 = vmatprep.subr.mxu0 0.0
    %3495 = vmatpush2.msra.mxu0 0.0
    %3496 = vmatprep.subr.mxu0 0.0
    %3497 = vmatpush2.msra.mxu0 0.0
    %3498 = vmatprep.subr.mxu0 0.0
    %3499 = vmatpush2.msra.mxu0 0.0
    %3500 = vmatprep.subr.mxu0 0.0
    %3501 = vmatpush2.msra.mxu0 0.0
    %3502 = vmatprep.subr.mxu0 0.0
    %3503 = vmatpush2.msra.mxu0 0.0
    %3504 = vmatprep.subr.mxu0 0.0
    %3505 = vmatpush2.msra.mxu0 0.0
    %3506 = vmatprep.mubr.f32.mxu0 0.0
    %3507 = vmatmul.mubr.f32.gmra.mxu0 %v3431
    %v3508 = vpop.f32.mrf.mxu0
    %v3509 = vadd.f32 %v3429, %v3508
    %v3510 = vpop.f32.mrf.mxu0
    %3511 = vmatprep.mubr.f32.mxu0 0.0
    %3512 = vmatmul.mubr.f32.gmra.mxu0 %v3434
    %v3513 = vpop.f32.mrf.mxu0
    %v3514 = vadd.f32 %v3429, %v3513
    %v3515 = vpop.f32.mrf.mxu0
    %3516 = vmatprep.mubr.f32.mxu0 0.0
    %3517 = vmatmul.mubr.f32.gmra.mxu0 %v3437
    %v3518 = vpop.f32.mrf.mxu0
    %v3519 = vadd.f32 %v3429, %v3518
    %v3520 = vpop.f32.mrf.mxu0
    %3521 = vmatprep.mubr.f32.mxu0 0.0
    %3522 = vmatmul.mubr.f32.gmra.mxu0 %v3440
    %v3523 = vpop.f32.mrf.mxu0
    %v3524 = vadd.f32 %v3429, %v3523
    %v3525 = vpop.f32.mrf.mxu0
    %3526 = vdwg.mxu0
    %v3527 = vmax.f32 %v3509, 0.0
    %v3528 = vmax.f32 %v3514, 0.0
    %v3529 = vmax.f32 %v3519, 0.0
    %v3530 = vmax.f32 %v3524, 0.0
    %s3531 = scalar_lea.vmem %s6, 32
    %v3532 = vld [vmem:[%s3531] sm:$0xff]
    %v3533 = vld [vmem:[%s3531 + $0x8] sm:$0xff]
    %v3534 = vld [vmem:[%s3531 + $0x10] sm:$0xff]
    %v3535 = vld [vmem:[%s3531 + $0x18] sm:$0xff]
    %v3536 = vlaneseq
    %v3537 = vshrl.u32 %v3536, 7
    %v3538 = vsub.s32 1, %v3537
    %v3539 = vrot.slane %v3421, %v3538
    %v3541 = vsel %vm552, %v3527, 0
    %v3544 = vsel %vm552, %v3528, 0
    %v3547 = vsel %vm552, %v3529, 0
    %v3550 = vsel %vm552, %v3530, 0
    %3552 = vmatprep.subr.mxu0 0.0
    %3553 = vmatpush1.msra.mxu0 0.0
    %3554 = vmatprep.subr.mxu0 0.0
    %3555 = vmatpush1.msra.mxu0 0.0
    %3556 = vmatprep.subr.mxu0 0.0
    %3557 = vmatpush1.msra.mxu0 0.0
    %3558 = vmatprep.subr.mxu0 0.0
    %3559 = vmatpush1.msra.mxu0 0.0
    %3560 = vmatprep.subr.mxu0 0.0
    %3561 = vmatpush1.msra.mxu0 0.0
    %3562 = vmatprep.subr.mxu0 0.0
    %3563 = vmatpush1.msra.mxu0 0.0
    %3564 = vmatprep.subr.mxu0 0.0
    %3565 = vmatpush1.msra.mxu0 0.0
    %3566 = vmatprep.subr.mxu0 0.0
    %3567 = vmatpush1.msra.mxu0 0.0
    %3568 = vmatprep.subr.mxu0 0.0
    %3569 = vmatpush1.msra.mxu0 0.0
    %3570 = vmatprep.subr.mxu0 0.0
    %3571 = vmatpush1.msra.mxu0 0.0
    %3572 = vmatprep.subr.mxu0 0.0
    %3573 = vmatpush1.msra.mxu0 0.0
    %3574 = vmatprep.subr.mxu0 0.0
    %3575 = vmatpush1.msra.mxu0 0.0
    %3576 = vmatprep.subr.mxu0 0.0
    %3577 = vmatpush1.msra.mxu0 %v3535
    %3578 = vmatprep.subr.mxu0 0.0
    %3579 = vmatpush1.msra.mxu0 %v3534
    %3580 = vmatprep.subr.mxu0 0.0
    %3581 = vmatpush1.msra.mxu0 %v3533
    %3582 = vmatprep.subr.mxu0 0.0
    %3583 = vmatpush1.msra.mxu0 %v3532
    %3584 = vmatprep.subr.mxu0 0.0
    %3585 = vmatpush2.msra.mxu0 0.0
    %3586 = vmatprep.subr.mxu0 0.0
    %3587 = vmatpush2.msra.mxu0 0.0
    %3588 = vmatprep.subr.mxu0 0.0
    %3589 = vmatpush2.msra.mxu0 0.0
    %3590 = vmatprep.subr.mxu0 0.0
    %3591 = vmatpush2.msra.mxu0 0.0
    %3592 = vmatprep.subr.mxu0 0.0
    %3593 = vmatpush2.msra.mxu0 0.0
    %3594 = vmatprep.subr.mxu0 0.0
    %3595 = vmatpush2.msra.mxu0 0.0
    %3596 = vmatprep.subr.mxu0 0.0
    %3597 = vmatpush2.msra.mxu0 0.0
    %3598 = vmatprep.subr.mxu0 0.0
    %3599 = vmatpush2.msra.mxu0 0.0
    %3600 = vmatprep.subr.mxu0 0.0
    %3601 = vmatpush2.msra.mxu0 0.0
    %3602 = vmatprep.subr.mxu0 0.0
    %3603 = vmatpush2.msra.mxu0 0.0
    %3604 = vmatprep.subr.mxu0 0.0
    %3605 = vmatpush2.msra.mxu0 0.0
    %3606 = vmatprep.subr.mxu0 0.0
    %3607 = vmatpush2.msra.mxu0 0.0
    %3608 = vmatprep.subr.mxu0 0.0
    %3609 = vmatpush2.msra.mxu0 0.0
    %3610 = vmatprep.subr.mxu0 0.0
    %3611 = vmatpush2.msra.mxu0 0.0
    %3612 = vmatprep.subr.mxu0 0.0
    %3613 = vmatpush2.msra.mxu0 0.0
    %3614 = vmatprep.subr.mxu0 0.0
    %3615 = vmatpush2.msra.mxu0 0.0
    %3616 = vmatprep.mubr.f32.mxu0 0.0
    %3617 = vmatmul.mubr.f32.gmra.mxu0 %v3541
    %v3618 = vpop.f32.mrf.mxu0
    %v3619 = vadd.f32 %v3539, %v3618
    %v3620 = vpop.f32.mrf.mxu0
    %3621 = vmatprep.mubr.f32.mxu0 0.0
    %3622 = vmatmul.mubr.f32.gmra.mxu0 %v3544
    %v3623 = vpop.f32.mrf.mxu0
    %v3624 = vadd.f32 %v3539, %v3623
    %v3625 = vpop.f32.mrf.mxu0
    %3626 = vmatprep.mubr.f32.mxu0 0.0
    %3627 = vmatmul.mubr.f32.gmra.mxu0 %v3547
    %v3628 = vpop.f32.mrf.mxu0
    %v3629 = vadd.f32 %v3539, %v3628
    %v3630 = vpop.f32.mrf.mxu0
    %3631 = vmatprep.mubr.f32.mxu0 0.0
    %3632 = vmatmul.mubr.f32.gmra.mxu0 %v3550
    %v3633 = vpop.f32.mrf.mxu0
    %v3634 = vadd.f32 %v3539, %v3633
    %v3635 = vpop.f32.mrf.mxu0
    %3636 = vdwg.mxu0
    %v3637 = vmax.f32 %v3619, 0.0
    %v3638 = vmax.f32 %v3624, 0.0
    %v3639 = vmax.f32 %v3629, 0.0
    %v3640 = vmax.f32 %v3634, 0.0
    %s3641 = scalar_lea.vmem %s6, 64
    %v3642 = vld [vmem:[%s3641] sm:$0xff]
    %v3643 = vld [vmem:[%s3641 + $0x8] sm:$0xff]
    %v3644 = vld [vmem:[%s3641 + $0x10] sm:$0xff]
    %v3645 = vld [vmem:[%s3641 + $0x18] sm:$0xff]
    %v3646 = vlaneseq
    %v3647 = vshrl.u32 %v3646, 7
    %v3648 = vsub.s32 2, %v3647
    %v3649 = vrot.slane %v3421, %v3648
    %v3651 = vsel %vm552, %v3637, 0
    %v3654 = vsel %vm552, %v3638, 0
    %v3657 = vsel %vm552, %v3639, 0
    %v3660 = vsel %vm552, %v3640, 0
    %3662 = vmatprep.subr.mxu0 0.0
    %3663 = vmatpush1.msra.mxu0 0.0
    %3664 = vmatprep.subr.mxu0 0.0
    %3665 = vmatpush1.msra.mxu0 0.0
    %3666 = vmatprep.subr.mxu0 0.0
    %3667 = vmatpush1.msra.mxu0 0.0
    %3668 = vmatprep.subr.mxu0 0.0
    %3669 = vmatpush1.msra.mxu0 0.0
    %3670 = vmatprep.subr.mxu0 0.0
    %3671 = vmatpush1.msra.mxu0 0.0
    %3672 = vmatprep.subr.mxu0 0.0
    %3673 = vmatpush1.msra.mxu0 0.0
    %3674 = vmatprep.subr.mxu0 0.0
    %3675 = vmatpush1.msra.mxu0 0.0
    %3676 = vmatprep.subr.mxu0 0.0
    %3677 = vmatpush1.msra.mxu0 0.0
    %3678 = vmatprep.subr.mxu0 0.0
    %3679 = vmatpush1.msra.mxu0 0.0
    %3680 = vmatprep.subr.mxu0 0.0
    %3681 = vmatpush1.msra.mxu0 0.0
    %3682 = vmatprep.subr.mxu0 0.0
    %3683 = vmatpush1.msra.mxu0 0.0
    %3684 = vmatprep.subr.mxu0 0.0
    %3685 = vmatpush1.msra.mxu0 0.0
    %3686 = vmatprep.subr.mxu0 0.0
    %3687 = vmatpush1.msra.mxu0 %v3645
    %3688 = vmatprep.subr.mxu0 0.0
    %3689 = vmatpush1.msra.mxu0 %v3644
    %3690 = vmatprep.subr.mxu0 0.0
    %3691 = vmatpush1.msra.mxu0 %v3643
    %3692 = vmatprep.subr.mxu0 0.0
    %3693 = vmatpush1.msra.mxu0 %v3642
    %3694 = vmatprep.subr.mxu0 0.0
    %3695 = vmatpush2.msra.mxu0 0.0
    %3696 = vmatprep.subr.mxu0 0.0
    %3697 = vmatpush2.msra.mxu0 0.0
    %3698 = vmatprep.subr.mxu0 0.0
    %3699 = vmatpush2.msra.mxu0 0.0
    %3700 = vmatprep.subr.mxu0 0.0
    %3701 = vmatpush2.msra.mxu0 0.0
    %3702 = vmatprep.subr.mxu0 0.0
    %3703 = vmatpush2.msra.mxu0 0.0
    %3704 = vmatprep.subr.mxu0 0.0
    %3705 = vmatpush2.msra.mxu0 0.0
    %3706 = vmatprep.subr.mxu0 0.0
    %3707 = vmatpush2.msra.mxu0 0.0
    %3708 = vmatprep.subr.mxu0 0.0
    %3709 = vmatpush2.msra.mxu0 0.0
    %3710 = vmatprep.subr.mxu0 0.0
    %3711 = vmatpush2.msra.mxu0 0.0
    %3712 = vmatprep.subr.mxu0 0.0
    %3713 = vmatpush2.msra.mxu0 0.0
    %3714 = vmatprep.subr.mxu0 0.0
    %3715 = vmatpush2.msra.mxu0 0.0
    %3716 = vmatprep.subr.mxu0 0.0
    %3717 = vmatpush2.msra.mxu0 0.0
    %3718 = vmatprep.subr.mxu0 0.0
    %3719 = vmatpush2.msra.mxu0 0.0
    %3720 = vmatprep.subr.mxu0 0.0
    %3721 = vmatpush2.msra.mxu0 0.0
    %3722 = vmatprep.subr.mxu0 0.0
    %3723 = vmatpush2.msra.mxu0 0.0
    %3724 = vmatprep.subr.mxu0 0.0
    %3725 = vmatpush2.msra.mxu0 0.0
    %3726 = vmatprep.mubr.f32.mxu0 0.0
    %3727 = vmatmul.mubr.f32.gmra.mxu0 %v3651
    %v3728 = vpop.f32.mrf.mxu0
    %v3729 = vadd.f32 %v3649, %v3728
    %v3730 = vpop.f32.mrf.mxu0
    %3731 = vmatprep.mubr.f32.mxu0 0.0
    %3732 = vmatmul.mubr.f32.gmra.mxu0 %v3654
    %v3733 = vpop.f32.mrf.mxu0
    %v3734 = vadd.f32 %v3649, %v3733
    %v3735 = vpop.f32.mrf.mxu0
    %3736 = vmatprep.mubr.f32.mxu0 0.0
    %3737 = vmatmul.mubr.f32.gmra.mxu0 %v3657
    %v3738 = vpop.f32.mrf.mxu0
    %v3739 = vadd.f32 %v3649, %v3738
    %v3740 = vpop.f32.mrf.mxu0
    %3741 = vmatprep.mubr.f32.mxu0 0.0
    %3742 = vmatmul.mubr.f32.gmra.mxu0 %v3660
    %v3743 = vpop.f32.mrf.mxu0
    %v3744 = vadd.f32 %v3649, %v3743
    %v3745 = vpop.f32.mrf.mxu0
    %3746 = vdwg.mxu0
    %v3747 = vmax.f32 %v3729, 0.0
    %v3748 = vmax.f32 %v3734, 0.0
    %v3749 = vmax.f32 %v3739, 0.0
    %v3750 = vmax.f32 %v3744, 0.0
    %v3751 = vsel %vm552, %v3747, 0.0
    %3752 = vadd.xlane.f32.xlu0 %v3751
    %v3753 = vpop.xlane.xlu0 %3752
    %v3754 = vsel %vm552, %v3748, 0.0
    %3755 = vadd.xlane.f32.xlu0 %v3754
    %v3756 = vpop.xlane.xlu0 %3755
    %v3757 = vsel %vm552, %v3749, 0.0
    %3758 = vadd.xlane.f32.xlu0 %v3757
    %v3759 = vpop.xlane.xlu0 %3758
    %v3760 = vsel %vm552, %v3750, 0.0
    %3761 = vadd.xlane.f32.xlu0 %v3760
    %v3762 = vpop.xlane.xlu0 %3761
    %v3763 = vrcp.pop 32.0
    %v3764 = vmul.f32 %v3753, %v3763
    %v3765 = vmul.f32 %v3756, %v3763
    %v3766 = vmul.f32 %v3759, %v3763
    %v3767 = vmul.f32 %v3762, %v3763
    %v3768 = vsub.f32 %v3747, %v3764
    %v3769 = vsub.f32 %v3748, %v3765
    %v3770 = vsub.f32 %v3749, %v3766
    %v3771 = vsub.f32 %v3750, %v3767
    %v3772 = vmul.f32 %v3768, %v3768
    %v3773 = vmul.f32 %v3769, %v3769
    %v3774 = vmul.f32 %v3770, %v3770
    %v3775 = vmul.f32 %v3771, %v3771
    %v3776 = vsel %vm552, %v3772, 0.0
    %3777 = vadd.xlane.f32.xlu0 %v3776
    %v3778 = vpop.xlane.xlu0 %3777
    %v3779 = vsel %vm552, %v3773, 0.0
    %3780 = vadd.xlane.f32.xlu0 %v3779
    %v3781 = vpop.xlane.xlu0 %3780
    %v3782 = vsel %vm552, %v3774, 0.0
    %3783 = vadd.xlane.f32.xlu0 %v3782
    %v3784 = vpop.xlane.xlu0 %3783
    %v3785 = vsel %vm552, %v3775, 0.0
    %3786 = vadd.xlane.f32.xlu0 %v3785
    %v3787 = vpop.xlane.xlu0 %3786
    %v3788 = vmul.f32 %v3778, 0.032258064
    %v3789 = vmul.f32 %v3781, 0.032258064
    %v3790 = vmul.f32 %v3784, 0.032258064
    %v3791 = vmul.f32 %v3787, 0.032258064
    %v3792 = vrsqrt.pop %v3788
    %v3793 = vmul.f32 %v3788, %v3792
    %vm3794 = vcmp.eq.f32.partialorder %v3788, inf
    %v3795 = vsel %vm3794, %v3788, %v3793
    %vm3796 = vcmp.eq.f32.partialorder %v3788, 0.0
    %v3797 = vand.u32 %v3788, 2147483648
    %v3798 = vsel %vm3796, %v3797, %v3795
    %v3799 = vrsqrt.pop %v3789
    %v3800 = vmul.f32 %v3789, %v3799
    %vm3801 = vcmp.eq.f32.partialorder %v3789, inf
    %v3802 = vsel %vm3801, %v3789, %v3800
    %vm3803 = vcmp.eq.f32.partialorder %v3789, 0.0
    %v3804 = vand.u32 %v3789, 2147483648
    %v3805 = vsel %vm3803, %v3804, %v3802
    %v3806 = vrsqrt.pop %v3790
    %v3807 = vmul.f32 %v3790, %v3806
    %vm3808 = vcmp.eq.f32.partialorder %v3790, inf
    %v3809 = vsel %vm3808, %v3790, %v3807
    %vm3810 = vcmp.eq.f32.partialorder %v3790, 0.0
    %v3811 = vand.u32 %v3790, 2147483648
    %v3812 = vsel %vm3810, %v3811, %v3809
    %v3813 = vrsqrt.pop %v3791
    %v3814 = vmul.f32 %v3791, %v3813
    %vm3815 = vcmp.eq.f32.partialorder %v3791, inf
    %v3816 = vsel %vm3815, %v3791, %v3814
    %vm3817 = vcmp.eq.f32.partialorder %v3791, 0.0
    %v3818 = vand.u32 %v3791, 2147483648
    %v3819 = vsel %vm3817, %v3818, %v3816
    %v3820 = vadd.f32 %v3798, 1e-06
    %v3821 = vadd.f32 %v3805, 1e-06
    %v3822 = vadd.f32 %v3812, 1e-06
    %v3823 = vadd.f32 %v3819, 1e-06
    %v3824 = vrcp.pop %v3820
    %v3825 = vrcp.pop %v3821
    %v3826 = vrcp.pop %v3822
    %v3827 = vrcp.pop %v3823
    %v3828 = vlaneseq
    %v3829 = vshrl.u32 %v3828, 7
    %v3830 = vsub.s32 3, %v3829
    %v3831 = vrot.slane %v3421, %v3830
    %v3832 = vmul.f32 %v3831, %v3768
    %v3833 = vmul.f32 %v3831, %v3769
    %v3834 = vmul.f32 %v3831, %v3770
    %v3835 = vmul.f32 %v3831, %v3771
    %v3836 = vmul.f32 %v3832, %v3824
    %v3837 = vmul.f32 %v3833, %v3825
    %v3838 = vmul.f32 %v3834, %v3826
    %v3839 = vmul.f32 %v3835, %v3827
    %v3840 = vlaneseq
    %v3841 = vshrl.u32 %v3840, 7
    %v3842 = vsub.s32 4, %v3841
    %v3843 = vrot.slane %v3421, %v3842
    %v3844 = vadd.f32 %v3836, %v3843
    %v3845 = vadd.f32 %v3837, %v3843
    %v3846 = vadd.f32 %v3838, %v3843
    %v3847 = vadd.f32 %v3839, %v3843
    %3848 = vst.msk [vmem:[#allocation7] sm:$0xff] %vm552, %v3844
    %3849 = vst.msk [vmem:[#allocation7 + $0x8] sm:$0xff] %vm552, %v3845
    %3850 = vst.msk [vmem:[#allocation7 + $0x10] sm:$0xff] %vm552, %v3846
    %3851 = vst.msk [vmem:[#allocation7 + $0x18] sm:$0xff] %vm552, %v3847
    %v3852 = vld [vmem:[%s0] sm:$0xff]
    %v3853 = vld [vmem:[%s0 + $0x8] sm:$0xff]
    %v3854 = vlaneseq
    %v3855 = vand.u32 %v3854, 127
    %3856 = vset.pattern.permute.xlu0 0
    %3857 = vperm.xlu0 %3856, %v3852
    %v3858 = vpop.permute.xlu0 %3857
    %3859 = vset.pattern.permute.xlu0 0
    %3860 = vperm.xlu0 %3859, %v3853
    %v3861 = vpop.permute.xlu0 %3860
    %vm3862 = vcmp.eq.s32.totalorder %v3855, %v3858
    %vm3863 = vcmp.eq.s32.totalorder %v3855, %v3861
    %v3864 = vsel %vm3862, 1, 0
    %v3865 = vsel %vm3863, 1, 0
    %v3866 = vcvt.s32.f32 %v3864
    %v3867 = vcvt.s32.f32 %v3865
    %v3869 = vsel %vm552, %v3866, 0
    %v3872 = vsel %vm552, %v3867, 0
    %3874 = vmatprep.subr.mxu0 0.0
    %3875 = vmatpush1.msra.mxu0 0.0
    %3876 = vmatprep.subr.mxu0 0.0
    %3877 = vmatpush1.msra.mxu0 0.0
    %3878 = vmatprep.subr.mxu0 0.0
    %3879 = vmatpush1.msra.mxu0 0.0
    %3880 = vmatprep.subr.mxu0 0.0
    %3881 = vmatpush1.msra.mxu0 0.0
    %3882 = vmatprep.subr.mxu0 0.0
    %3883 = vmatpush1.msra.mxu0 0.0
    %3884 = vmatprep.subr.mxu0 0.0
    %3885 = vmatpush1.msra.mxu0 0.0
    %3886 = vmatprep.subr.mxu0 0.0
    %3887 = vmatpush1.msra.mxu0 0.0
    %3888 = vmatprep.subr.mxu0 0.0
    %3889 = vmatpush1.msra.mxu0 0.0
    %3890 = vmatprep.subr.mxu0 0.0
    %3891 = vmatpush1.msra.mxu0 0.0
    %3892 = vmatprep.subr.mxu0 0.0
    %3893 = vmatpush1.msra.mxu0 0.0
    %3894 = vmatprep.subr.mxu0 0.0
    %3895 = vmatpush1.msra.mxu0 0.0
    %3896 = vmatprep.subr.mxu0 0.0
    %3897 = vmatpush1.msra.mxu0 0.0
    %3898 = vmatprep.subr.mxu0 0.0
    %3899 = vmatpush1.msra.mxu0 %v3847
    %3900 = vmatprep.subr.mxu0 0.0
    %3901 = vmatpush1.msra.mxu0 %v3846
    %3902 = vmatprep.subr.mxu0 0.0
    %3903 = vmatpush1.msra.mxu0 %v3845
    %3904 = vmatprep.subr.mxu0 0.0
    %3905 = vmatpush1.msra.mxu0 %v3844
    %3906 = vmatprep.subr.mxu0 0.0
    %3907 = vmatpush2.msra.mxu0 0.0
    %3908 = vmatprep.subr.mxu0 0.0
    %3909 = vmatpush2.msra.mxu0 0.0
    %3910 = vmatprep.subr.mxu0 0.0
    %3911 = vmatpush2.msra.mxu0 0.0
    %3912 = vmatprep.subr.mxu0 0.0
    %3913 = vmatpush2.msra.mxu0 0.0
    %3914 = vmatprep.subr.mxu0 0.0
    %3915 = vmatpush2.msra.mxu0 0.0
    %3916 = vmatprep.subr.mxu0 0.0
    %3917 = vmatpush2.msra.mxu0 0.0
    %3918 = vmatprep.subr.mxu0 0.0
    %3919 = vmatpush2.msra.mxu0 0.0
    %3920 = vmatprep.subr.mxu0 0.0
    %3921 = vmatpush2.msra.mxu0 0.0
    %3922 = vmatprep.subr.mxu0 0.0
    %3923 = vmatpush2.msra.mxu0 0.0
    %3924 = vmatprep.subr.mxu0 0.0
    %3925 = vmatpush2.msra.mxu0 0.0
    %3926 = vmatprep.subr.mxu0 0.0
    %3927 = vmatpush2.msra.mxu0 0.0
    %3928 = vmatprep.subr.mxu0 0.0
    %3929 = vmatpush2.msra.mxu0 0.0
    %3930 = vmatprep.subr.mxu0 0.0
    %3931 = vmatpush2.msra.mxu0 0.0
    %3932 = vmatprep.subr.mxu0 0.0
    %3933 = vmatpush2.msra.mxu0 0.0
    %3934 = vmatprep.subr.mxu0 0.0
    %3935 = vmatpush2.msra.mxu0 0.0
    %3936 = vmatprep.subr.mxu0 0.0
    %3937 = vmatpush2.msra.mxu0 0.0
    %3938 = vmatprep.mubr.f32.mxu0 0.0
    %3939 = vmatmul.mubr.f32.gmra.mxu0 %v3869
    %v3940 = vpop.f32.mrf.mxu0
    %v3941 = vadd.f32 0.0, %v3940
    %v3942 = vpop.f32.mrf.mxu0
    %3943 = vmatprep.mubr.f32.mxu0 0.0
    %3944 = vmatmul.mubr.f32.gmra.mxu0 %v3872
    %v3945 = vpop.f32.mrf.mxu0
    %v3946 = vadd.f32 0.0, %v3945
    %v3947 = vpop.f32.mrf.mxu0
    %3948 = vdwg.mxu0
    %v3949 = vld [vmem:[%s8] sm:$0xff]
    %v3950 = vld [vmem:[%s8 + $0x8] sm:$0xff]
    %v3951 = vld [vmem:[%s8 + $0x10] sm:$0xff]
    %v3952 = vld [vmem:[%s8 + $0x18] sm:$0xff]
    %v3953 = vld [vmem:[%s8 + $0x20] sm:$0xff]
    %v3954 = vld [vmem:[%s8 + $0x28] sm:$0xff]
    %v3955 = vld [vmem:[%s8 + $0x30] sm:$0xff]
    %v3956 = vld [vmem:[%s8 + $0x38] sm:$0xff]
    %v3957 = vld [vmem:[%s8 + $0x40] sm:$0xff]
    %v3958 = vld [vmem:[%s8 + $0x48] sm:$0xff]
    %v3959 = vld [vmem:[%s8 + $0x50] sm:$0xff]
    %v3960 = vld [vmem:[%s8 + $0x58] sm:$0xff]
    %v3962 = vsel %vm552, %v3946, 0
    %3964 = vmatprep.subr.mxu0 0.0
    %3965 = vmatpush1.msra.mxu0 0.0
    %3966 = vmatprep.subr.mxu0 0.0
    %3967 = vmatpush1.msra.mxu0 0.0
    %3968 = vmatprep.subr.mxu0 0.0
    %3969 = vmatpush1.msra.mxu0 0.0
    %3970 = vmatprep.subr.mxu0 0.0
    %3971 = vmatpush1.msra.mxu0 0.0
    %3972 = vmatprep.subr.mxu0 0.0
    %3973 = vmatpush1.msra.mxu0 0.0
    %3974 = vmatprep.subr.mxu0 0.0
    %3975 = vmatpush1.msra.mxu0 0.0
    %3976 = vmatprep.subr.mxu0 0.0
    %3977 = vmatpush1.msra.mxu0 0.0
    %3978 = vmatprep.subr.mxu0 0.0
    %3979 = vmatpush1.msra.mxu0 0.0
    %3980 = vmatprep.subr.mxu0 0.0
    %3981 = vmatpush1.msra.mxu0 0.0
    %3982 = vmatprep.subr.mxu0 0.0
    %3983 = vmatpush1.msra.mxu0 0.0
    %3984 = vmatprep.subr.mxu0 0.0
    %3985 = vmatpush1.msra.mxu0 0.0
    %3986 = vmatprep.subr.mxu0 0.0
    %3987 = vmatpush1.msra.mxu0 0.0
    %3988 = vmatprep.subr.mxu0 0.0
    %3989 = vmatpush1.msra.mxu0 %v3956
    %3990 = vmatprep.subr.mxu0 0.0
    %3991 = vmatpush1.msra.mxu0 %v3955
    %3992 = vmatprep.subr.mxu0 0.0
    %3993 = vmatpush1.msra.mxu0 %v3954
    %3994 = vmatprep.subr.mxu0 0.0
    %3995 = vmatpush1.msra.mxu0 %v3953
    %3996 = vmatprep.subr.mxu0 0.0
    %3997 = vmatpush2.msra.mxu0 0.0
    %3998 = vmatprep.subr.mxu0 0.0
    %3999 = vmatpush2.msra.mxu0 0.0
    %4000 = vmatprep.subr.mxu0 0.0
    %4001 = vmatpush2.msra.mxu0 0.0
    %4002 = vmatprep.subr.mxu0 0.0
    %4003 = vmatpush2.msra.mxu0 0.0
    %4004 = vmatprep.subr.mxu0 0.0
    %4005 = vmatpush2.msra.mxu0 0.0
    %4006 = vmatprep.subr.mxu0 0.0
    %4007 = vmatpush2.msra.mxu0 0.0
    %4008 = vmatprep.subr.mxu0 0.0
    %4009 = vmatpush2.msra.mxu0 0.0
    %4010 = vmatprep.subr.mxu0 0.0
    %4011 = vmatpush2.msra.mxu0 0.0
    %4012 = vmatprep.subr.mxu0 0.0
    %4013 = vmatpush2.msra.mxu0 0.0
    %4014 = vmatprep.subr.mxu0 0.0
    %4015 = vmatpush2.msra.mxu0 0.0
    %4016 = vmatprep.subr.mxu0 0.0
    %4017 = vmatpush2.msra.mxu0 0.0
    %4018 = vmatprep.subr.mxu0 0.0
    %4019 = vmatpush2.msra.mxu0 0.0
    %4020 = vmatprep.subr.mxu0 0.0
    %4021 = vmatpush2.msra.mxu0 0.0
    %4022 = vmatprep.subr.mxu0 0.0
    %4023 = vmatpush2.msra.mxu0 0.0
    %4024 = vmatprep.subr.mxu0 0.0
    %4025 = vmatpush2.msra.mxu0 0.0
    %4026 = vmatprep.subr.mxu0 0.0
    %4027 = vmatpush2.msra.mxu0 0.0
    %4028 = vmatprep.mubr.f32.mxu0 0.0
    %4029 = vmatmul.mubr.f32.gmra.mxu0 %v3962
    %v4030 = vpop.f32.mrf.mxu0
    %v4031 = vadd.f32 0.0, %v4030
    %v4032 = vpop.f32.mrf.mxu0
    %4033 = vdwg.mxu0
    %v4035 = vsel %vm552, %v3941, 0
    %4037 = vmatprep.subr.mxu0 0.0
    %4038 = vmatpush1.msra.mxu0 0.0
    %4039 = vmatprep.subr.mxu0 0.0
    %4040 = vmatpush1.msra.mxu0 0.0
    %4041 = vmatprep.subr.mxu0 0.0
    %4042 = vmatpush1.msra.mxu0 0.0
    %4043 = vmatprep.subr.mxu0 0.0
    %4044 = vmatpush1.msra.mxu0 0.0
    %4045 = vmatprep.subr.mxu0 0.0
    %4046 = vmatpush1.msra.mxu0 0.0
    %4047 = vmatprep.subr.mxu0 0.0
    %4048 = vmatpush1.msra.mxu0 0.0
    %4049 = vmatprep.subr.mxu0 0.0
    %4050 = vmatpush1.msra.mxu0 0.0
    %4051 = vmatprep.subr.mxu0 0.0
    %4052 = vmatpush1.msra.mxu0 0.0
    %4053 = vmatprep.subr.mxu0 0.0
    %4054 = vmatpush1.msra.mxu0 0.0
    %4055 = vmatprep.subr.mxu0 0.0
    %4056 = vmatpush1.msra.mxu0 0.0
    %4057 = vmatprep.subr.mxu0 0.0
    %4058 = vmatpush1.msra.mxu0 0.0
    %4059 = vmatprep.subr.mxu0 0.0
    %4060 = vmatpush1.msra.mxu0 0.0
    %4061 = vmatprep.subr.mxu0 0.0
    %4062 = vmatpush1.msra.mxu0 %v3952
    %4063 = vmatprep.subr.mxu0 0.0
    %4064 = vmatpush1.msra.mxu0 %v3951
    %4065 = vmatprep.subr.mxu0 0.0
    %4066 = vmatpush1.msra.mxu0 %v3950
    %4067 = vmatprep.subr.mxu0 0.0
    %4068 = vmatpush1.msra.mxu0 %v3949
    %4069 = vmatprep.subr.mxu0 0.0
    %4070 = vmatpush2.msra.mxu0 0.0
    %4071 = vmatprep.subr.mxu0 0.0
    %4072 = vmatpush2.msra.mxu0 0.0
    %4073 = vmatprep.subr.mxu0 0.0
    %4074 = vmatpush2.msra.mxu0 0.0
    %4075 = vmatprep.subr.mxu0 0.0
    %4076 = vmatpush2.msra.mxu0 0.0
    %4077 = vmatprep.subr.mxu0 0.0
    %4078 = vmatpush2.msra.mxu0 0.0
    %4079 = vmatprep.subr.mxu0 0.0
    %4080 = vmatpush2.msra.mxu0 0.0
    %4081 = vmatprep.subr.mxu0 0.0
    %4082 = vmatpush2.msra.mxu0 0.0
    %4083 = vmatprep.subr.mxu0 0.0
    %4084 = vmatpush2.msra.mxu0 0.0
    %4085 = vmatprep.subr.mxu0 0.0
    %4086 = vmatpush2.msra.mxu0 0.0
    %4087 = vmatprep.subr.mxu0 0.0
    %4088 = vmatpush2.msra.mxu0 0.0
    %4089 = vmatprep.subr.mxu0 0.0
    %4090 = vmatpush2.msra.mxu0 0.0
    %4091 = vmatprep.subr.mxu0 0.0
    %4092 = vmatpush2.msra.mxu0 0.0
    %4093 = vmatprep.subr.mxu0 0.0
    %4094 = vmatpush2.msra.mxu0 0.0
    %4095 = vmatprep.subr.mxu0 0.0
    %4096 = vmatpush2.msra.mxu0 0.0
    %4097 = vmatprep.subr.mxu0 0.0
    %4098 = vmatpush2.msra.mxu0 0.0
    %4099 = vmatprep.subr.mxu0 0.0
    %4100 = vmatpush2.msra.mxu0 0.0
    %4101 = vmatprep.mubr.f32.mxu0 0.0
    %4102 = vmatmul.mubr.f32.gmra.mxu0 %v4035
    %v4103 = vpop.f32.mrf.mxu0
    %v4104 = vadd.f32 %v4031, %v4103
    %v4105 = vpop.f32.mrf.mxu0
    %4106 = vdwg.mxu0
    %v4107 = vlaneseq
    %v4108 = vshrl.u32 %v4107, 7
    %v4109 = vsub.s32 5, %v4108
    %v4110 = vrot.slane %v3421, %v4109
    %v4111 = vadd.f32 %v4104, %v4110
    %v4112 = vmax.f32 %v4111, 0.0
    %v4114 = vsel %vm552, %v4112, 0
    %4116 = vmatprep.subr.mxu0 0.0
    %4117 = vmatpush1.msra.mxu0 0.0
    %4118 = vmatprep.subr.mxu0 0.0
    %4119 = vmatpush1.msra.mxu0 0.0
    %4120 = vmatprep.subr.mxu0 0.0
    %4121 = vmatpush1.msra.mxu0 0.0
    %4122 = vmatprep.subr.mxu0 0.0
    %4123 = vmatpush1.msra.mxu0 0.0
    %4124 = vmatprep.subr.mxu0 0.0
    %4125 = vmatpush1.msra.mxu0 0.0
    %4126 = vmatprep.subr.mxu0 0.0
    %4127 = vmatpush1.msra.mxu0 0.0
    %4128 = vmatprep.subr.mxu0 0.0
    %4129 = vmatpush1.msra.mxu0 0.0
    %4130 = vmatprep.subr.mxu0 0.0
    %4131 = vmatpush1.msra.mxu0 0.0
    %4132 = vmatprep.subr.mxu0 0.0
    %4133 = vmatpush1.msra.mxu0 0.0
    %4134 = vmatprep.subr.mxu0 0.0
    %4135 = vmatpush1.msra.mxu0 0.0
    %4136 = vmatprep.subr.mxu0 0.0
    %4137 = vmatpush1.msra.mxu0 0.0
    %4138 = vmatprep.subr.mxu0 0.0
    %4139 = vmatpush1.msra.mxu0 0.0
    %4140 = vmatprep.subr.mxu0 0.0
    %4141 = vmatpush1.msra.mxu0 %v3960
    %4142 = vmatprep.subr.mxu0 0.0
    %4143 = vmatpush1.msra.mxu0 %v3959
    %4144 = vmatprep.subr.mxu0 0.0
    %4145 = vmatpush1.msra.mxu0 %v3958
    %4146 = vmatprep.subr.mxu0 0.0
    %4147 = vmatpush1.msra.mxu0 %v3957
    %4148 = vmatprep.subr.mxu0 0.0
    %4149 = vmatpush2.msra.mxu0 0.0
    %4150 = vmatprep.subr.mxu0 0.0
    %4151 = vmatpush2.msra.mxu0 0.0
    %4152 = vmatprep.subr.mxu0 0.0
    %4153 = vmatpush2.msra.mxu0 0.0
    %4154 = vmatprep.subr.mxu0 0.0
    %4155 = vmatpush2.msra.mxu0 0.0
    %4156 = vmatprep.subr.mxu0 0.0
    %4157 = vmatpush2.msra.mxu0 0.0
    %4158 = vmatprep.subr.mxu0 0.0
    %4159 = vmatpush2.msra.mxu0 0.0
    %4160 = vmatprep.subr.mxu0 0.0
    %4161 = vmatpush2.msra.mxu0 0.0
    %4162 = vmatprep.subr.mxu0 0.0
    %4163 = vmatpush2.msra.mxu0 0.0
    %4164 = vmatprep.subr.mxu0 0.0
    %4165 = vmatpush2.msra.mxu0 0.0
    %4166 = vmatprep.subr.mxu0 0.0
    %4167 = vmatpush2.msra.mxu0 0.0
    %4168 = vmatprep.subr.mxu0 0.0
    %4169 = vmatpush2.msra.mxu0 0.0
    %4170 = vmatprep.subr.mxu0 0.0
    %4171 = vmatpush2.msra.mxu0 0.0
    %4172 = vmatprep.subr.mxu0 0.0
    %4173 = vmatpush2.msra.mxu0 0.0
    %4174 = vmatprep.subr.mxu0 0.0
    %4175 = vmatpush2.msra.mxu0 0.0
    %4176 = vmatprep.subr.mxu0 0.0
    %4177 = vmatpush2.msra.mxu0 0.0
    %4178 = vmatprep.subr.mxu0 0.0
    %4179 = vmatpush2.msra.mxu0 0.0
    %4180 = vmatprep.mubr.f32.mxu0 0.0
    %4181 = vmatmul.mubr.f32.gmra.mxu0 %v4114
    %v4182 = vpop.f32.mrf.mxu0
    %v4183 = vadd.f32 0.0, %v4182
    %v4184 = vpop.f32.mrf.mxu0
    %4185 = vdwg.mxu0
    %v4186 = vlaneseq
    %v4187 = vshrl.u32 %v4186, 7
    %v4188 = vsub.s32 6, %v4187
    %v4189 = vrot.slane %v3421, %v4188
    %v4190 = vadd.f32 %v4183, %v4189
    %v4191 = vxor.u32 %v4190, 2147483648
    %v4192 = vmul.f32 %v4191, 1.442695
    %v4193 = vpow.pop %v4192
    %v4194 = vadd.f32 %v4193, 1.0
    %v4195 = vrcp.pop %v4194
    %v4196 = vmul.f32 1.0, %v4195
    %vm4197 = vcmask 7168
    %4198 = vst.msk [vmem:[%s9] sm:$0xff] %vm4197, %v4196
    // Predicated region
    $region46: #{gae_recurrent_forward.1} parent=1 // pred_check
      _
    $region47: #{gae_recurrent_forward.1} parent=1 // pred_check_branch
      %4200 = sbr.rel (0) target = $region49
    $region48: #{gae_recurrent_forward.1} parent=1 // pred_region
      _
    $region49: #{gae_recurrent_forward.1} parent=1 // pred_fallthru
      _
    // Predicated region
    $region50: #{gae_recurrent_forward.1} parent=1 // pred_check
      _
    $region51: #{gae_recurrent_forward.1} parent=1 // pred_check_branch
      %4202 = sbr.rel (0) target = $region53
    $region52: #{gae_recurrent_forward.1} parent=1 // pred_region
      %s4204 = ssub.s32 512, 512
      %4205 = vsyncadd [#allocation4], %s4204
      %s4206 = sshll.u32 [#allocation7], 4
      %s4207 = int_to_ptr.vmem [resolvable:$true] %s4206
      %4212 = dma.vmem_to_hbm [thread:$0]  %s4207, 512, %s10, [#allocation4], 128, 128, 8
    $region53: #{gae_recurrent_forward.1} parent=1 // pred_fallthru
      _
    // Predicated region
    $region54: #{gae_recurrent_forward.1} parent=1 // pred_check
      _
    $region55: #{gae_recurrent_forward.1} parent=1 // pred_check_branch
      %4214 = sbr.rel (0) target = $region57
    $region56: #{gae_recurrent_forward.1} parent=1 // pred_region
      _
    $region57: #{gae_recurrent_forward.1} parent=1 // pred_fallthru
      _
    // Predicated region
    $region58: #{gae_recurrent_forward.1} parent=1 // pred_check
      _
    $region59: #{gae_recurrent_forward.1} parent=1 // pred_check_branch
      %4216 = sbr.rel (0) target = $region61
    $region60: #{gae_recurrent_forward.1} parent=1 // pred_region
      %4217 = dma.done [#allocation4], 512
    $region61: #{gae_recurrent_forward.1} parent=1 // pred_fallthru
      _
    %4218 = vsyncpa [#allocation3], 1
    %4219 = vsyncpa [#allocation6], 1
    %4220 = vsyncpa [#allocation4], 1

</llo_original>
